<compile_context>
chip_gen: v7x
topology: tpu7x:2x2x1
jax: 0.10.0
libtpu: 0.0.40
codegen_flags: <defaults>
</compile_context>

<pallas_src>
import functools

import jax
import jax.numpy as jnp
from jax import lax
from jax.experimental import pallas as pl
from jax.experimental.pallas import tpu as pltpu

LANE = 128


def _round_up(x, m):
    return (x + m - 1) // m * m


def _vmem_limit(est_bytes):
    """Clamp the VMEM request to the current generation's physical capacity."""
    try:
        cap = int(pltpu.get_tpu_info().vmem_capacity_bytes)
    except Exception:
        cap = 64 * 2**20
    want = max(32 * 2**20, int(1.25 * est_bytes))
    return int(max(min(want, int(0.8 * cap)), 16 * 2**20))


# ---------------------------------------------------------------------------
# Pallas kernels: tap-decomposed conv + folded-BN shift + ReLU (+ shortcut)
# ---------------------------------------------------------------------------
def _taps_matmul(x_ref, w_ref, *, ksize, stride, ho, wo):
    """Sum of k*k shifted-window matmuls, accumulated in f32.

    x_ref: (stride*stride, Gh, Gw, Cinp) bf16 phase-split, spatially padded.
    w_ref: (k*k, Cinp, Coutp) bf16 per-tap (BN-scale-folded) weights.
    Returns (ho*wo, Coutp) f32.
    """
    cinp = x_ref.shape[-1]
    acc = None
    for ky in range(ksize):
        qy, ry = divmod(ky, stride)
        for kx in range(ksize):
            qx, rx = divmod(kx, stride)
            ph = ry * stride + rx                               # phase index
            win = x_ref[ph, pl.ds(qy, ho), pl.ds(qx, wo), :]    # (ho, wo, Cinp)
            lhs = win.reshape(ho * wo, cinp)
            part = jnp.dot(lhs, w_ref[ky * ksize + kx],
                           preferred_element_type=jnp.float32)
            acc = part if acc is None else acc + part
    return acc


def _conv1_pad_kernel(x_ref, w_ref, shift_ref, o_ref, *, ksize, stride, ho, wo):
    """conv1 + folded-BN + ReLU, written directly into a 1px-halo padded layout
    (halo zeroed in-kernel) so conv2 needs no wrapper-side pad of y1."""
    acc = _taps_matmul(x_ref, w_ref, ksize=ksize, stride=stride, ho=ho, wo=wo)
    y = jnp.maximum(acc + shift_ref[...], 0.0)
    coutp = o_ref.shape[-1]
    o_ref[...] = jnp.zeros_like(o_ref)                       # zero the halo
    o_ref[0, pl.ds(1, ho), pl.ds(1, wo), :] = (
        y.astype(o_ref.dtype).reshape(ho, wo, coutp))


def _conv2_proj_kernel(y1_ref, w2_ref, shift2_ref, xs_ref, ws_ref, shifts_ref,
                       o_ref, *, ho, wo, off):
    """conv2 + folded-BN + ReLU, fused with the 1x1 projection shortcut
    (conv+BN+ReLU) and the residual add."""
    acc = _taps_matmul(y1_ref, w2_ref, ksize=3, stride=1, ho=ho, wo=wo)
    y = jnp.maximum(acc + shift2_ref[...], 0.0)
    cinp = xs_ref.shape[-1]
    xs = xs_ref[0, pl.ds(off, ho), pl.ds(off, wo), :].reshape(ho * wo, cinp)
    sc = jnp.dot(xs, ws_ref[0], preferred_element_type=jnp.float32)
    sc = jnp.maximum(sc + shifts_ref[...], 0.0)
    o_ref[0] = (y + sc).astype(o_ref.dtype)


def _conv2_ident_kernel(y1_ref, w2_ref, shift2_ref, xs_ref, o_ref, *,
                        ho, wo, off):
    """conv2 + folded-BN + ReLU, fused with the identity-shortcut residual add."""
    acc = _taps_matmul(y1_ref, w2_ref, ksize=3, stride=1, ho=ho, wo=wo)
    y = jnp.maximum(acc + shift2_ref[...], 0.0)
    cp = xs_ref.shape[-1]
    xs = xs_ref[0, pl.ds(off, ho), pl.ds(off, wo), :].reshape(ho * wo, cp)
    o_ref[0] = (y + xs.astype(jnp.float32)).astype(o_ref.dtype)


# ---------------------------------------------------------------------------
# Parameter preparation (done once, outside the forward)
# ---------------------------------------------------------------------------
def fold_bn(gamma, beta, mean, var, eps=1e-5):
    scale = gamma / jnp.sqrt(var + eps)
    shift = beta - mean * scale
    return scale, shift


def _prep_conv(w_oihw, scale, cinp, coutp):
    # Fold the BN scale into the f32 weights BEFORE the bf16 cast, then lay out
    # as (kH*kW, Cinp, Coutp) lane-padded taps.
    cout, cin, kh, kw = w_oihw.shape
    wf = w_oihw * scale[:, None, None, None]
    wt = jnp.transpose(wf, (2, 3, 1, 0)).reshape(kh * kw, cin, cout)
    wt = jnp.pad(wt, ((0, 0), (0, cinp - cin), (0, coutp - cout)))
    return wt.astype(jnp.bfloat16)


def _prep_shift(shift, coutp):
    c = shift.shape[0]
    return jnp.pad(shift, (0, coutp - c)).reshape(1, coutp).astype(jnp.float32)


def init_basic_block_params(key, in_channels, out_channels):
    ks = jax.random.split(key, 15)

    def bn(k0, k1, k2, k3, c):
        gamma = jax.random.uniform(k0, (c,), jnp.float32, 0.5, 1.5)
        beta = 0.1 * jax.random.normal(k1, (c,), jnp.float32)
        mean = 0.1 * jax.random.normal(k2, (c,), jnp.float32)
        var = jax.random.uniform(k3, (c,), jnp.float32, 0.5, 1.5)
        return gamma, beta, mean, var

    return dict(
        w1=0.1 * jax.random.normal(ks[0], (out_channels, in_channels, 3, 3), jnp.float32),
        w2=0.1 * jax.random.normal(ks[1], (out_channels, out_channels, 3, 3), jnp.float32),
        ws=0.1 * jax.random.normal(ks[2], (out_channels, in_channels, 1, 1), jnp.float32),
        bn1=bn(ks[3], ks[4], ks[5], ks[6], out_channels),
        bn2=bn(ks[7], ks[8], ks[9], ks[10], out_channels),
        bns=bn(ks[11], ks[12], ks[13], ks[14], out_channels),
    )


def prepare_basic_block_params(raw, in_channels, out_channels):
    cinp = _round_up(in_channels, LANE)
    coutp = _round_up(out_channels, LANE)
    s1, b1 = fold_bn(*raw["bn1"])
    s2, b2 = fold_bn(*raw["bn2"])
    sc_s, sc_b = fold_bn(*raw["bns"])
    return dict(
        w1=_prep_conv(raw["w1"], s1, cinp, coutp),
        w2=_prep_conv(raw["w2"], s2, coutp, coutp),
        ws=_prep_conv(raw["ws"], sc_s, cinp, coutp),
        shift1=_prep_shift(b1, coutp),
        shift2=_prep_shift(b2, coutp),
        shifts=_prep_shift(sc_b, coutp),
    )


# ---------------------------------------------------------------------------
# BasicBlock forward: two pallas_calls (conv1 -> padded y1; conv2 + shortcut)
# ---------------------------------------------------------------------------
def basic_block_forward(x_nchw, prep, *, stride, out_channels):
    cin = x_nchw.shape[1]
    cout = out_channels
    cinp = prep["w1"].shape[1]
    coutp = prep["w1"].shape[2]

    n, _, h, w = x_nchw.shape
    s = stride
    ss = s * s

    # Output / padded-phase geometry for conv1 (k=3, pad=1, stride s).
    ho = (h - 1) // s + 1
    wo = (w - 1) // s + 1
    gh1 = 2 // s + ho
    gw1 = 2 // s + wo
    hp1, wp1 = s * gh1, s * gw1

    # NCHW -> NHWC once; lane-pad channels; bf16 operands for the MXU.
    x = jnp.transpose(x_nchw, (0, 2, 3, 1))
    x = jnp.pad(x, ((0, 0), (0, 0), (0, 0), (0, cinp - cin))).astype(jnp.bfloat16)

    # Spatial pad + phase split (stride^2 phases) of the block input so every
    # conv1 tap (and the fused shortcut window) is a contiguous VMEM window.
    x_pad = jnp.pad(x, ((0, 0), (1, hp1 - h - 1), (1, wp1 - w - 1), (0, 0)))
    if ss == 1:
        xph = x_pad                                           # (n, gh1, gw1, cinp)
    else:
        xph = x_pad.reshape(n, gh1, s, gw1, s, cinp)
        xph = xph.transpose(0, 2, 4, 1, 3, 5).reshape(n * ss, gh1, gw1, cinp)

    # ---- conv1: 3x3 stride s + folded-BN + ReLU, output in padded layout ----
    gh2, gw2 = ho + 2, wo + 2
    est1 = (2 * ss * gh1 * gw1 * cinp * 2 + 2 * gh2 * gw2 * coutp * 2
            + 2 * 9 * cinp * coutp * 2 + 2 * ho * wo * coutp * 4)
    conv1 = functools.partial(_conv1_pad_kernel, ksize=3, stride=s, ho=ho, wo=wo)
    y1pad = pl.pallas_call(
        conv1,
        out_shape=jax.ShapeDtypeStruct((n, gh2, gw2, coutp), jnp.bfloat16),
        grid=(n,),
        in_specs=[
            pl.BlockSpec((ss, gh1, gw1, cinp), lambda i: (i, 0, 0, 0)),
            pl.BlockSpec((9, cinp, coutp), lambda i: (0, 0, 0)),   # resident taps
            pl.BlockSpec((1, coutp), lambda i: (0, 0)),            # BN shift
        ],
        out_specs=pl.BlockSpec((1, gh2, gw2, coutp), lambda i: (i, 0, 0, 0)),
        compiler_params=pltpu.CompilerParams(
            dimension_semantics=("parallel",),
            vmem_limit_bytes=_vmem_limit(est1)),
    )(xph, prep["w1"], prep["shift1"])

    # ---- conv2: 3x3 stride 1 + folded-BN + ReLU, fused shortcut + residual ----
    # The shortcut needs x[a*s, b*s]; inside the phase-split padded input that
    # is phase (1%s, 1%s) at offset (1//s, 1//s) -- read straight from xph.
    ph_idx = (1 % s) * s + (1 % s)
    off = 1 // s
    project = (s != 1) or (cin != cout)

    if project:
        kernel2 = functools.partial(_conv2_proj_kernel, ho=ho, wo=wo, off=off)
        in_specs2 = [
            pl.BlockSpec((1, gh2, gw2, coutp), lambda i: (i, 0, 0, 0)),
            pl.BlockSpec((9, coutp, coutp), lambda i: (0, 0, 0)),
            pl.BlockSpec((1, coutp), lambda i: (0, 0)),
            pl.BlockSpec((1, gh1, gw1, cinp),
                         lambda i: (i * ss + ph_idx, 0, 0, 0)),    # shortcut phase
            pl.BlockSpec((1, cinp, coutp), lambda i: (0, 0, 0)),   # 1x1 weights
            pl.BlockSpec((1, coutp), lambda i: (0, 0)),            # shortcut shift
        ]
        args2 = [y1pad, prep["w2"], prep["shift2"], xph, prep["ws"], prep["shifts"]]
        est2 = (2 * gh2 * gw2 * coutp * 2 + 2 * gh1 * gw1 * cinp * 2
                + 2 * 9 * coutp * coutp * 2 + 2 * cinp * coutp * 2
                + 2 * ho * wo * coutp * 2 + 2 * ho * wo * coutp * 4)
    else:
        assert cinp == coutp, "identity shortcut requires cinp == coutp"
        kernel2 = functools.partial(_conv2_ident_kernel, ho=ho, wo=wo, off=off)
        in_specs2 = [
            pl.BlockSpec((1, gh2, gw2, coutp), lambda i: (i, 0, 0, 0)),
            pl.BlockSpec((9, coutp, coutp), lambda i: (0, 0, 0)),
            pl.BlockSpec((1, coutp), lambda i: (0, 0)),
            pl.BlockSpec((1, gh1, gw1, cinp),
                         lambda i: (i * ss + ph_idx, 0, 0, 0)),    # residual window
        ]
        args2 = [y1pad, prep["w2"], prep["shift2"], xph]
        est2 = (2 * gh2 * gw2 * coutp * 2 + 2 * gh1 * gw1 * cinp * 2
                + 2 * 9 * coutp * coutp * 2
                + 2 * ho * wo * coutp * 2 + 2 * ho * wo * coutp * 4)

    out = pl.pallas_call(
        kernel2,
        out_shape=jax.ShapeDtypeStruct((n, ho * wo, coutp), jnp.bfloat16),
        grid=(n,),
        in_specs=in_specs2,
        out_specs=pl.BlockSpec((1, ho * wo, coutp), lambda i: (i, 0, 0)),
        compiler_params=pltpu.CompilerParams(
            dimension_semantics=("parallel",),
            vmem_limit_bytes=_vmem_limit(est2)),
    )(*args2)

    # Lane-padded NHWC -> NCHW at the model boundary; transpose in bf16, cast last.
    out = out.reshape(n, ho, wo, coutp)[..., :cout]
    return jnp.transpose(out, (0, 3, 1, 2)).astype(jnp.float32)


# ---------------------------------------------------------------------------
# Reference (lax.conv) with matching bf16-operand / f32-accumulation numerics
# ---------------------------------------------------------------------------
def _ref_basic_block(x, raw, stride, in_channels, out_channels):
    def cbr(inp, w_oihw, bn_params, s, pad):
        scale, shift = fold_bn(*bn_params)
        y = lax.conv_general_dilated(
            inp.astype(jnp.bfloat16), w_oihw.astype(jnp.bfloat16),
            (s, s), [(pad, pad), (pad, pad)],
            dimension_numbers=("NCHW", "OIHW", "NCHW"),
            preferred_element_type=jnp.float32)
        y = y * scale.reshape(1, -1, 1, 1) + shift.reshape(1, -1, 1, 1)
        return jnp.maximum(y, 0.0)

    y1 = cbr(x, raw["w1"], raw["bn1"], stride, 1).astype(jnp.bfloat16)
    y2 = cbr(y1, raw["w2"], raw["bn2"], 1, 1)                       # f32
    if stride != 1 or in_channels != out_channels:
        sc = cbr(x, raw["ws"], raw["bns"], stride, 0).astype(jnp.bfloat16)
    else:
        sc = x.astype(jnp.bfloat16)
    return y2 + sc.astype(jnp.float32)


if __name__ == "__main__":
    key = jax.random.PRNGKey(0)

    def run_case(case_key, batch, cin, cout, spatial, stride):
        kx, kp = jax.random.split(case_key)
        x = jax.random.normal(kx, (batch, cin, spatial, spatial), jnp.float32)
        raw = init_basic_block_params(kp, cin, cout)
        prep = prepare_basic_block_params(raw, cin, cout)
        fwd = jax.jit(functools.partial(basic_block_forward, stride=stride,
                                        out_channels=cout))
        out = jax.block_until_ready(fwd(x, prep))
        ref = jax.block_until_ready(_ref_basic_block(x, raw, stride, cin, cout))
        so = (spatial - 1) // stride + 1
        assert out.shape == ref.shape == (batch, cout, so, so), (out.shape, ref.shape)
        max_err = float(jnp.max(jnp.abs(out - ref)))
        assert jnp.allclose(out, ref, atol=5e-2, rtol=5e-2), max_err

    k1, k2 = jax.random.split(key)
    # Downsampling block: fused 1x1 projection shortcut.
    run_case(k1, batch=2, cin=4, cout=8, spatial=16, stride=2)
    # Identity block: fused residual add.
    run_case(k2, batch=2, cin=8, cout=8, spatial=16, stride=1)

    print("KERNEL_OK")
</pallas_src>

<mosaic_0001>
module attributes {stable_mosaic.version = 11 : i64} {
  func.func @_conv2_proj_kernel(%arg0: i32, %arg1: memref<1x10x10x128xbf16, #tpu.memory_space<vmem>>, %arg2: memref<9x128x128xbf16, #tpu.memory_space<vmem>>, %arg3: memref<1x128xf32, #tpu.memory_space<vmem>>, %arg4: memref<1x9x9x128xbf16, #tpu.memory_space<vmem>>, %arg5: memref<1x128x128xbf16, #tpu.memory_space<vmem>>, %arg6: memref<1x128xf32, #tpu.memory_space<vmem>>, %arg7: memref<1x64x128xbf16, #tpu.memory_space<vmem>>) attributes {dimension_semantics = [#tpu.dimension_semantics<parallel>], iteration_bounds = array<i64: 2>, scalar_prefetch = 0 : i64, scratch_operands = 0 : i64, tpu.core_type = #tpu.core_type<tc>, window_params = [{transform_indices = @transform_0, window_bounds = array<i64: 1, 10, 10, 128>}, {pipeline_mode = #tpu.pipeline_mode<synchronous>, transform_indices = @transform_1, window_bounds = array<i64: 9, 128, 128>}, {pipeline_mode = #tpu.pipeline_mode<synchronous>, transform_indices = @transform_2, window_bounds = array<i64: 1, 128>}, {transform_indices = @transform_3, window_bounds = array<i64: 1, 9, 9, 128>}, {pipeline_mode = #tpu.pipeline_mode<synchronous>, transform_indices = @transform_4, window_bounds = array<i64: 1, 128, 128>}, {pipeline_mode = #tpu.pipeline_mode<synchronous>, transform_indices = @transform_5, window_bounds = array<i64: 1, 128>}, {transform_indices = @transform_6, window_bounds = array<i64: 1, 64, 128>}]} {
    %c0 = arith.constant 0 : index
    %c0_0 = arith.constant 0 : index
    %c0_1 = arith.constant 0 : index
    %c0_2 = arith.constant 0 : index
    %0 = vector.load %arg1[%c0, %c0_0, %c0_1, %c0_2] : memref<1x10x10x128xbf16, #tpu.memory_space<vmem>>, vector<1x8x8x128xbf16>
    %1 = vector.shape_cast %0 : vector<1x8x8x128xbf16> to vector<8x8x128xbf16>
    %2 = vector.shape_cast %1 : vector<8x8x128xbf16> to vector<64x128xbf16>
    %c0_3 = arith.constant 0 : index
    %c0_4 = arith.constant 0 : index
    %c0_5 = arith.constant 0 : index
    %3 = vector.load %arg2[%c0_3, %c0_4, %c0_5] : memref<9x128x128xbf16, #tpu.memory_space<vmem>>, vector<1x128x128xbf16>
    %4 = vector.shape_cast %3 : vector<1x128x128xbf16> to vector<128x128xbf16>
    %cst = arith.constant dense<0.000000e+00> : vector<64x128xf32>
    %5 = tpu.matmul %2, %4, %cst {dimension_numbers = #tpu.dot_dimension_numbers<[1], [0], [0], [1], [0, 0, 1, 1], [], []>} : vector<64x128xbf16>, vector<128x128xbf16>, vector<64x128xf32> -> vector<64x128xf32>
    %c0_6 = arith.constant 0 : index
    %c0_7 = arith.constant 0 : index
    %c1 = arith.constant 1 : index
    %c0_8 = arith.constant 0 : index
    %6 = vector.load %arg1[%c0_6, %c0_7, %c1, %c0_8] : memref<1x10x10x128xbf16, #tpu.memory_space<vmem>>, vector<1x8x8x128xbf16>
    %7 = vector.shape_cast %6 : vector<1x8x8x128xbf16> to vector<8x8x128xbf16>
    %8 = vector.shape_cast %7 : vector<8x8x128xbf16> to vector<64x128xbf16>
    %c1_9 = arith.constant 1 : index
    %c0_10 = arith.constant 0 : index
    %c0_11 = arith.constant 0 : index
    %9 = vector.load %arg2[%c1_9, %c0_10, %c0_11] : memref<9x128x128xbf16, #tpu.memory_space<vmem>>, vector<1x128x128xbf16>
    %10 = vector.shape_cast %9 : vector<1x128x128xbf16> to vector<128x128xbf16>
    %cst_12 = arith.constant dense<0.000000e+00> : vector<64x128xf32>
    %11 = tpu.matmul %8, %10, %cst_12 {dimension_numbers = #tpu.dot_dimension_numbers<[1], [0], [0], [1], [0, 0, 1, 1], [], []>} : vector<64x128xbf16>, vector<128x128xbf16>, vector<64x128xf32> -> vector<64x128xf32>
    %12 = arith.addf %5, %11 : vector<64x128xf32>
    %c0_13 = arith.constant 0 : index
    %c0_14 = arith.constant 0 : index
    %c2 = arith.constant 2 : index
    %c0_15 = arith.constant 0 : index
    %13 = vector.load %arg1[%c0_13, %c0_14, %c2, %c0_15] : memref<1x10x10x128xbf16, #tpu.memory_space<vmem>>, vector<1x8x8x128xbf16>
    %14 = vector.shape_cast %13 : vector<1x8x8x128xbf16> to vector<8x8x128xbf16>
    %15 = vector.shape_cast %14 : vector<8x8x128xbf16> to vector<64x128xbf16>
    %c2_16 = arith.constant 2 : index
    %c0_17 = arith.constant 0 : index
    %c0_18 = arith.constant 0 : index
    %16 = vector.load %arg2[%c2_16, %c0_17, %c0_18] : memref<9x128x128xbf16, #tpu.memory_space<vmem>>, vector<1x128x128xbf16>
    %17 = vector.shape_cast %16 : vector<1x128x128xbf16> to vector<128x128xbf16>
    %cst_19 = arith.constant dense<0.000000e+00> : vector<64x128xf32>
    %18 = tpu.matmul %15, %17, %cst_19 {dimension_numbers = #tpu.dot_dimension_numbers<[1], [0], [0], [1], [0, 0, 1, 1], [], []>} : vector<64x128xbf16>, vector<128x128xbf16>, vector<64x128xf32> -> vector<64x128xf32>
    %19 = arith.addf %12, %18 : vector<64x128xf32>
    %c0_20 = arith.constant 0 : index
    %c1_21 = arith.constant 1 : index
    %c0_22 = arith.constant 0 : index
    %c0_23 = arith.constant 0 : index
    %20 = vector.load %arg1[%c0_20, %c1_21, %c0_22, %c0_23] : memref<1x10x10x128xbf16, #tpu.memory_space<vmem>>, vector<1x8x8x128xbf16>
    %21 = vector.shape_cast %20 : vector<1x8x8x128xbf16> to vector<8x8x128xbf16>
    %22 = vector.shape_cast %21 : vector<8x8x128xbf16> to vector<64x128xbf16>
    %c3 = arith.constant 3 : index
    %c0_24 = arith.constant 0 : index
    %c0_25 = arith.constant 0 : index
    %23 = vector.load %arg2[%c3, %c0_24, %c0_25] : memref<9x128x128xbf16, #tpu.memory_space<vmem>>, vector<1x128x128xbf16>
    %24 = vector.shape_cast %23 : vector<1x128x128xbf16> to vector<128x128xbf16>
    %cst_26 = arith.constant dense<0.000000e+00> : vector<64x128xf32>
    %25 = tpu.matmul %22, %24, %cst_26 {dimension_numbers = #tpu.dot_dimension_numbers<[1], [0], [0], [1], [0, 0, 1, 1], [], []>} : vector<64x128xbf16>, vector<128x128xbf16>, vector<64x128xf32> -> vector<64x128xf32>
    %26 = arith.addf %19, %25 : vector<64x128xf32>
    %c0_27 = arith.constant 0 : index
    %c1_28 = arith.constant 1 : index
    %c1_29 = arith.constant 1 : index
    %c0_30 = arith.constant 0 : index
    %27 = vector.load %arg1[%c0_27, %c1_28, %c1_29, %c0_30] : memref<1x10x10x128xbf16, #tpu.memory_space<vmem>>, vector<1x8x8x128xbf16>
    %28 = vector.shape_cast %27 : vector<1x8x8x128xbf16> to vector<8x8x128xbf16>
    %29 = vector.shape_cast %28 : vector<8x8x128xbf16> to vector<64x128xbf16>
    %c4 = arith.constant 4 : index
    %c0_31 = arith.constant 0 : index
    %c0_32 = arith.constant 0 : index
    %30 = vector.load %arg2[%c4, %c0_31, %c0_32] : memref<9x128x128xbf16, #tpu.memory_space<vmem>>, vector<1x128x128xbf16>
    %31 = vector.shape_cast %30 : vector<1x128x128xbf16> to vector<128x128xbf16>
    %cst_33 = arith.constant dense<0.000000e+00> : vector<64x128xf32>
    %32 = tpu.matmul %29, %31, %cst_33 {dimension_numbers = #tpu.dot_dimension_numbers<[1], [0], [0], [1], [0, 0, 1, 1], [], []>} : vector<64x128xbf16>, vector<128x128xbf16>, vector<64x128xf32> -> vector<64x128xf32>
    %33 = arith.addf %26, %32 : vector<64x128xf32>
    %c0_34 = arith.constant 0 : index
    %c1_35 = arith.constant 1 : index
    %c2_36 = arith.constant 2 : index
    %c0_37 = arith.constant 0 : index
    %34 = vector.load %arg1[%c0_34, %c1_35, %c2_36, %c0_37] : memref<1x10x10x128xbf16, #tpu.memory_space<vmem>>, vector<1x8x8x128xbf16>
    %35 = vector.shape_cast %34 : vector<1x8x8x128xbf16> to vector<8x8x128xbf16>
    %36 = vector.shape_cast %35 : vector<8x8x128xbf16> to vector<64x128xbf16>
    %c5 = arith.constant 5 : index
    %c0_38 = arith.constant 0 : index
    %c0_39 = arith.constant 0 : index
    %37 = vector.load %arg2[%c5, %c0_38, %c0_39] : memref<9x128x128xbf16, #tpu.memory_space<vmem>>, vector<1x128x128xbf16>
    %38 = vector.shape_cast %37 : vector<1x128x128xbf16> to vector<128x128xbf16>
    %cst_40 = arith.constant dense<0.000000e+00> : vector<64x128xf32>
    %39 = tpu.matmul %36, %38, %cst_40 {dimension_numbers = #tpu.dot_dimension_numbers<[1], [0], [0], [1], [0, 0, 1, 1], [], []>} : vector<64x128xbf16>, vector<128x128xbf16>, vector<64x128xf32> -> vector<64x128xf32>
    %40 = arith.addf %33, %39 : vector<64x128xf32>
    %c0_41 = arith.constant 0 : index
    %c2_42 = arith.constant 2 : index
    %c0_43 = arith.constant 0 : index
    %c0_44 = arith.constant 0 : index
    %41 = vector.load %arg1[%c0_41, %c2_42, %c0_43, %c0_44] : memref<1x10x10x128xbf16, #tpu.memory_space<vmem>>, vector<1x8x8x128xbf16>
    %42 = vector.shape_cast %41 : vector<1x8x8x128xbf16> to vector<8x8x128xbf16>
    %43 = vector.shape_cast %42 : vector<8x8x128xbf16> to vector<64x128xbf16>
    %c6 = arith.constant 6 : index
    %c0_45 = arith.constant 0 : index
    %c0_46 = arith.constant 0 : index
    %44 = vector.load %arg2[%c6, %c0_45, %c0_46] : memref<9x128x128xbf16, #tpu.memory_space<vmem>>, vector<1x128x128xbf16>
    %45 = vector.shape_cast %44 : vector<1x128x128xbf16> to vector<128x128xbf16>
    %cst_47 = arith.constant dense<0.000000e+00> : vector<64x128xf32>
    %46 = tpu.matmul %43, %45, %cst_47 {dimension_numbers = #tpu.dot_dimension_numbers<[1], [0], [0], [1], [0, 0, 1, 1], [], []>} : vector<64x128xbf16>, vector<128x128xbf16>, vector<64x128xf32> -> vector<64x128xf32>
    %47 = arith.addf %40, %46 : vector<64x128xf32>
    %c0_48 = arith.constant 0 : index
    %c2_49 = arith.constant 2 : index
    %c1_50 = arith.constant 1 : index
    %c0_51 = arith.constant 0 : index
    %48 = vector.load %arg1[%c0_48, %c2_49, %c1_50, %c0_51] : memref<1x10x10x128xbf16, #tpu.memory_space<vmem>>, vector<1x8x8x128xbf16>
    %49 = vector.shape_cast %48 : vector<1x8x8x128xbf16> to vector<8x8x128xbf16>
    %50 = vector.shape_cast %49 : vector<8x8x128xbf16> to vector<64x128xbf16>
    %c7 = arith.constant 7 : index
    %c0_52 = arith.constant 0 : index
    %c0_53 = arith.constant 0 : index
    %51 = vector.load %arg2[%c7, %c0_52, %c0_53] : memref<9x128x128xbf16, #tpu.memory_space<vmem>>, vector<1x128x128xbf16>
    %52 = vector.shape_cast %51 : vector<1x128x128xbf16> to vector<128x128xbf16>
    %cst_54 = arith.constant dense<0.000000e+00> : vector<64x128xf32>
    %53 = tpu.matmul %50, %52, %cst_54 {dimension_numbers = #tpu.dot_dimension_numbers<[1], [0], [0], [1], [0, 0, 1, 1], [], []>} : vector<64x128xbf16>, vector<128x128xbf16>, vector<64x128xf32> -> vector<64x128xf32>
    %54 = arith.addf %47, %53 : vector<64x128xf32>
    %c0_55 = arith.constant 0 : index
    %c2_56 = arith.constant 2 : index
    %c2_57 = arith.constant 2 : index
    %c0_58 = arith.constant 0 : index
    %55 = vector.load %arg1[%c0_55, %c2_56, %c2_57, %c0_58] : memref<1x10x10x128xbf16, #tpu.memory_space<vmem>>, vector<1x8x8x128xbf16>
    %56 = vector.shape_cast %55 : vector<1x8x8x128xbf16> to vector<8x8x128xbf16>
    %57 = vector.shape_cast %56 : vector<8x8x128xbf16> to vector<64x128xbf16>
    %c8 = arith.constant 8 : index
    %c0_59 = arith.constant 0 : index
    %c0_60 = arith.constant 0 : index
    %58 = vector.load %arg2[%c8, %c0_59, %c0_60] : memref<9x128x128xbf16, #tpu.memory_space<vmem>>, vector<1x128x128xbf16>
    %59 = vector.shape_cast %58 : vector<1x128x128xbf16> to vector<128x128xbf16>
    %cst_61 = arith.constant dense<0.000000e+00> : vector<64x128xf32>
    %60 = tpu.matmul %57, %59, %cst_61 {dimension_numbers = #tpu.dot_dimension_numbers<[1], [0], [0], [1], [0, 0, 1, 1], [], []>} : vector<64x128xbf16>, vector<128x128xbf16>, vector<64x128xf32> -> vector<64x128xf32>
    %61 = arith.addf %54, %60 : vector<64x128xf32>
    %c0_62 = arith.constant 0 : index
    %c0_63 = arith.constant 0 : index
    %62 = vector.load %arg3[%c0_62, %c0_63] : memref<1x128xf32, #tpu.memory_space<vmem>>, vector<1x128xf32>
    %63 = vector.broadcast %62 : vector<1x128xf32> to vector<64x128xf32>
    %64 = arith.addf %61, %63 : vector<64x128xf32>
    %cst_64 = arith.constant 0.000000e+00 : f32
    %65 = vector.broadcast %cst_64 : f32 to vector<64x128xf32>
    %66 = arith.maximumf %64, %65 : vector<64x128xf32>
    %c0_65 = arith.constant 0 : index
    %c0_66 = arith.constant 0 : index
    %c0_67 = arith.constant 0 : index
    %c0_68 = arith.constant 0 : index
    %67 = vector.load %arg4[%c0_65, %c0_66, %c0_67, %c0_68] : memref<1x9x9x128xbf16, #tpu.memory_space<vmem>>, vector<1x8x8x128xbf16>
    %68 = vector.shape_cast %67 : vector<1x8x8x128xbf16> to vector<8x8x128xbf16>
    %69 = vector.shape_cast %68 : vector<8x8x128xbf16> to vector<64x128xbf16>
    %c0_69 = arith.constant 0 : index
    %c0_70 = arith.constant 0 : index
    %c0_71 = arith.constant 0 : index
    %70 = vector.load %arg5[%c0_69, %c0_70, %c0_71] : memref<1x128x128xbf16, #tpu.memory_space<vmem>>, vector<1x128x128xbf16>
    %71 = vector.shape_cast %70 : vector<1x128x128xbf16> to vector<128x128xbf16>
    %cst_72 = arith.constant dense<0.000000e+00> : vector<64x128xf32>
    %72 = tpu.matmul %69, %71, %cst_72 {dimension_numbers = #tpu.dot_dimension_numbers<[1], [0], [0], [1], [0, 0, 1, 1], [], []>} : vector<64x128xbf16>, vector<128x128xbf16>, vector<64x128xf32> -> vector<64x128xf32>
    %c0_73 = arith.constant 0 : index
    %c0_74 = arith.constant 0 : index
    %73 = vector.load %arg6[%c0_73, %c0_74] : memref<1x128xf32, #tpu.memory_space<vmem>>, vector<1x128xf32>
    %74 = vector.broadcast %73 : vector<1x128xf32> to vector<64x128xf32>
    %75 = arith.addf %72, %74 : vector<64x128xf32>
    %cst_75 = arith.constant 0.000000e+00 : f32
    %76 = vector.broadcast %cst_75 : f32 to vector<64x128xf32>
    %77 = arith.maximumf %75, %76 : vector<64x128xf32>
    %78 = arith.addf %66, %77 : vector<64x128xf32>
    %79 = arith.truncf %78 : vector<64x128xf32> to vector<64x128xbf16>
    %c0_76 = arith.constant 0 : index
    %c0_77 = arith.constant 0 : index
    %c0_78 = arith.constant 0 : index
    %80 = vector.load %arg7[%c0_76, %c0_77, %c0_78] : memref<1x64x128xbf16, #tpu.memory_space<vmem>>, vector<1x64x128xbf16>
    %81 = vector.shape_cast %80 : vector<1x64x128xbf16> to vector<64x128xbf16>
    %82 = vector.shape_cast %79 : vector<64x128xbf16> to vector<1x64x128xbf16>
    tpu.vector_store %arg7[%c0_76, %c0_77, %c0_78], %82 {strides = array<i32>} : memref<1x64x128xbf16, #tpu.memory_space<vmem>>, vector<1x64x128xbf16>,
    return
  }
  func.func @transform_0(%arg0: i32) -> (i32, i32, i32, i32) {
    %c0_i32 = arith.constant 0 : i32
    %c0_i32_0 = arith.constant 0 : i32
    %c0_i32_1 = arith.constant 0 : i32
    %c0_i32_2 = arith.constant 0 : i32
    return %arg0, %c0_i32, %c0_i32_0, %c0_i32_1 : i32, i32, i32, i32
  }
  func.func @transform_1(%arg0: i32) -> (i32, i32, i32) {
    %c0_i32 = arith.constant 0 : i32
    %c0_i32_0 = arith.constant 0 : i32
    %c0_i32_1 = arith.constant 0 : i32
    %c0_i32_2 = arith.constant 0 : i32
    return %c0_i32, %c0_i32_0, %c0_i32_1 : i32, i32, i32
  }
  func.func @transform_2(%arg0: i32) -> (i32, i32) {
    %c0_i32 = arith.constant 0 : i32
    %c0_i32_0 = arith.constant 0 : i32
    %c0_i32_1 = arith.constant 0 : i32
    return %c0_i32, %c0_i32_0 : i32, i32
  }
  func.func @transform_3(%arg0: i32) -> (i32, i32, i32, i32) {
    %c4_i32 = arith.constant 4 : i32
    %0 = arith.muli %arg0, %c4_i32 : i32
    %c3_i32 = arith.constant 3 : i32
    %1 = arith.addi %0, %c3_i32 : i32
    %c0_i32 = arith.constant 0 : i32
    %c0_i32_0 = arith.constant 0 : i32
    %c0_i32_1 = arith.constant 0 : i32
    %c0_i32_2 = arith.constant 0 : i32
    return %1, %c0_i32, %c0_i32_0, %c0_i32_1 : i32, i32, i32, i32
  }
  func.func @transform_4(%arg0: i32) -> (i32, i32, i32) {
    %c0_i32 = arith.constant 0 : i32
    %c0_i32_0 = arith.constant 0 : i32
    %c0_i32_1 = arith.constant 0 : i32
    %c0_i32_2 = arith.constant 0 : i32
    return %c0_i32, %c0_i32_0, %c0_i32_1 : i32, i32, i32
  }
  func.func @transform_5(%arg0: i32) -> (i32, i32) {
    %c0_i32 = arith.constant 0 : i32
    %c0_i32_0 = arith.constant 0 : i32
    %c0_i32_1 = arith.constant 0 : i32
    return %c0_i32, %c0_i32_0 : i32, i32
  }
  func.func @transform_6(%arg0: i32) -> (i32, i32, i32) {
    %c0_i32 = arith.constant 0 : i32
    %c0_i32_0 = arith.constant 0 : i32
    %c0_i32_1 = arith.constant 0 : i32
    return %arg0, %c0_i32, %c0_i32_0 : i32, i32, i32
  }
}

module attributes {stable_mosaic.version = 11 : i64} {
  func.func @_conv1_pad_kernel(%arg0: i32, %arg1: memref<4x9x9x128xbf16, #tpu.memory_space<vmem>>, %arg2: memref<9x128x128xbf16, #tpu.memory_space<vmem>>, %arg3: memref<1x128xf32, #tpu.memory_space<vmem>>, %arg4: memref<1x10x10x128xbf16, #tpu.memory_space<vmem>>) attributes {dimension_semantics = [#tpu.dimension_semantics<parallel>], iteration_bounds = array<i64: 2>, scalar_prefetch = 0 : i64, scratch_operands = 0 : i64, tpu.core_type = #tpu.core_type<tc>, window_params = [{transform_indices = @transform_0, window_bounds = array<i64: 4, 9, 9, 128>}, {pipeline_mode = #tpu.pipeline_mode<synchronous>, transform_indices = @transform_1, window_bounds = array<i64: 9, 128, 128>}, {pipeline_mode = #tpu.pipeline_mode<synchronous>, transform_indices = @transform_2, window_bounds = array<i64: 1, 128>}, {transform_indices = @transform_3, window_bounds = array<i64: 1, 10, 10, 128>}]} {
    %c0 = arith.constant 0 : index
    %c0_0 = arith.constant 0 : index
    %c0_1 = arith.constant 0 : index
    %c0_2 = arith.constant 0 : index
    %0 = vector.load %arg1[%c0, %c0_0, %c0_1, %c0_2] : memref<4x9x9x128xbf16, #tpu.memory_space<vmem>>, vector<1x8x8x128xbf16>
    %1 = vector.shape_cast %0 : vector<1x8x8x128xbf16> to vector<8x8x128xbf16>
    %2 = vector.shape_cast %1 : vector<8x8x128xbf16> to vector<64x128xbf16>
    %c0_3 = arith.constant 0 : index
    %c0_4 = arith.constant 0 : index
    %c0_5 = arith.constant 0 : index
    %3 = vector.load %arg2[%c0_3, %c0_4, %c0_5] : memref<9x128x128xbf16, #tpu.memory_space<vmem>>, vector<1x128x128xbf16>
    %4 = vector.shape_cast %3 : vector<1x128x128xbf16> to vector<128x128xbf16>
    %cst = arith.constant dense<0.000000e+00> : vector<64x128xf32>
    %5 = tpu.matmul %2, %4, %cst {dimension_numbers = #tpu.dot_dimension_numbers<[1], [0], [0], [1], [0, 0, 1, 1], [], []>} : vector<64x128xbf16>, vector<128x128xbf16>, vector<64x128xf32> -> vector<64x128xf32>
    %c1 = arith.constant 1 : index
    %c0_6 = arith.constant 0 : index
    %c0_7 = arith.constant 0 : index
    %c0_8 = arith.constant 0 : index
    %6 = vector.load %arg1[%c1, %c0_6, %c0_7, %c0_8] : memref<4x9x9x128xbf16, #tpu.memory_space<vmem>>, vector<1x8x8x128xbf16>
    %7 = vector.shape_cast %6 : vector<1x8x8x128xbf16> to vector<8x8x128xbf16>
    %8 = vector.shape_cast %7 : vector<8x8x128xbf16> to vector<64x128xbf16>
    %c1_9 = arith.constant 1 : index
    %c0_10 = arith.constant 0 : index
    %c0_11 = arith.constant 0 : index
    %9 = vector.load %arg2[%c1_9, %c0_10, %c0_11] : memref<9x128x128xbf16, #tpu.memory_space<vmem>>, vector<1x128x128xbf16>
    %10 = vector.shape_cast %9 : vector<1x128x128xbf16> to vector<128x128xbf16>
    %cst_12 = arith.constant dense<0.000000e+00> : vector<64x128xf32>
    %11 = tpu.matmul %8, %10, %cst_12 {dimension_numbers = #tpu.dot_dimension_numbers<[1], [0], [0], [1], [0, 0, 1, 1], [], []>} : vector<64x128xbf16>, vector<128x128xbf16>, vector<64x128xf32> -> vector<64x128xf32>
    %12 = arith.addf %5, %11 : vector<64x128xf32>
    %c0_13 = arith.constant 0 : index
    %c0_14 = arith.constant 0 : index
    %c1_15 = arith.constant 1 : index
    %c0_16 = arith.constant 0 : index
    %13 = vector.load %arg1[%c0_13, %c0_14, %c1_15, %c0_16] : memref<4x9x9x128xbf16, #tpu.memory_space<vmem>>, vector<1x8x8x128xbf16>
    %14 = vector.shape_cast %13 : vector<1x8x8x128xbf16> to vector<8x8x128xbf16>
    %15 = vector.shape_cast %14 : vector<8x8x128xbf16> to vector<64x128xbf16>
    %c2 = arith.constant 2 : index
    %c0_17 = arith.constant 0 : index
    %c0_18 = arith.constant 0 : index
    %16 = vector.load %arg2[%c2, %c0_17, %c0_18] : memref<9x128x128xbf16, #tpu.memory_space<vmem>>, vector<1x128x128xbf16>
    %17 = vector.shape_cast %16 : vector<1x128x128xbf16> to vector<128x128xbf16>
    %cst_19 = arith.constant dense<0.000000e+00> : vector<64x128xf32>
    %18 = tpu.matmul %15, %17, %cst_19 {dimension_numbers = #tpu.dot_dimension_numbers<[1], [0], [0], [1], [0, 0, 1, 1], [], []>} : vector<64x128xbf16>, vector<128x128xbf16>, vector<64x128xf32> -> vector<64x128xf32>
    %19 = arith.addf %12, %18 : vector<64x128xf32>
    %c2_20 = arith.constant 2 : index
    %c0_21 = arith.constant 0 : index
    %c0_22 = arith.constant 0 : index
    %c0_23 = arith.constant 0 : index
    %20 = vector.load %arg1[%c2_20, %c0_21, %c0_22, %c0_23] : memref<4x9x9x128xbf16, #tpu.memory_space<vmem>>, vector<1x8x8x128xbf16>
    %21 = vector.shape_cast %20 : vector<1x8x8x128xbf16> to vector<8x8x128xbf16>
    %22 = vector.shape_cast %21 : vector<8x8x128xbf16> to vector<64x128xbf16>
    %c3 = arith.constant 3 : index
    %c0_24 = arith.constant 0 : index
    %c0_25 = arith.constant 0 : index
    %23 = vector.load %arg2[%c3, %c0_24, %c0_25] : memref<9x128x128xbf16, #tpu.memory_space<vmem>>, vector<1x128x128xbf16>
    %24 = vector.shape_cast %23 : vector<1x128x128xbf16> to vector<128x128xbf16>
    %cst_26 = arith.constant dense<0.000000e+00> : vector<64x128xf32>
    %25 = tpu.matmul %22, %24, %cst_26 {dimension_numbers = #tpu.dot_dimension_numbers<[1], [0], [0], [1], [0, 0, 1, 1], [], []>} : vector<64x128xbf16>, vector<128x128xbf16>, vector<64x128xf32> -> vector<64x128xf32>
    %26 = arith.addf %19, %25 : vector<64x128xf32>
    %c3_27 = arith.constant 3 : index
    %c0_28 = arith.constant 0 : index
    %c0_29 = arith.constant 0 : index
    %c0_30 = arith.constant 0 : index
    %27 = vector.load %arg1[%c3_27, %c0_28, %c0_29, %c0_30] : memref<4x9x9x128xbf16, #tpu.memory_space<vmem>>, vector<1x8x8x128xbf16>
    %28 = vector.shape_cast %27 : vector<1x8x8x128xbf16> to vector<8x8x128xbf16>
    %29 = vector.shape_cast %28 : vector<8x8x128xbf16> to vector<64x128xbf16>
    %c4 = arith.constant 4 : index
    %c0_31 = arith.constant 0 : index
    %c0_32 = arith.constant 0 : index
    %30 = vector.load %arg2[%c4, %c0_31, %c0_32] : memref<9x128x128xbf16, #tpu.memory_space<vmem>>, vector<1x128x128xbf16>
    %31 = vector.shape_cast %30 : vector<1x128x128xbf16> to vector<128x128xbf16>
    %cst_33 = arith.constant dense<0.000000e+00> : vector<64x128xf32>
    %32 = tpu.matmul %29, %31, %cst_33 {dimension_numbers = #tpu.dot_dimension_numbers<[1], [0], [0], [1], [0, 0, 1, 1], [], []>} : vector<64x128xbf16>, vector<128x128xbf16>, vector<64x128xf32> -> vector<64x128xf32>
    %33 = arith.addf %26, %32 : vector<64x128xf32>
    %c2_34 = arith.constant 2 : index
    %c0_35 = arith.constant 0 : index
    %c1_36 = arith.constant 1 : index
    %c0_37 = arith.constant 0 : index
    %34 = vector.load %arg1[%c2_34, %c0_35, %c1_36, %c0_37] : memref<4x9x9x128xbf16, #tpu.memory_space<vmem>>, vector<1x8x8x128xbf16>
    %35 = vector.shape_cast %34 : vector<1x8x8x128xbf16> to vector<8x8x128xbf16>
    %36 = vector.shape_cast %35 : vector<8x8x128xbf16> to vector<64x128xbf16>
    %c5 = arith.constant 5 : index
    %c0_38 = arith.constant 0 : index
    %c0_39 = arith.constant 0 : index
    %37 = vector.load %arg2[%c5, %c0_38, %c0_39] : memref<9x128x128xbf16, #tpu.memory_space<vmem>>, vector<1x128x128xbf16>
    %38 = vector.shape_cast %37 : vector<1x128x128xbf16> to vector<128x128xbf16>
    %cst_40 = arith.constant dense<0.000000e+00> : vector<64x128xf32>
    %39 = tpu.matmul %36, %38, %cst_40 {dimension_numbers = #tpu.dot_dimension_numbers<[1], [0], [0], [1], [0, 0, 1, 1], [], []>} : vector<64x128xbf16>, vector<128x128xbf16>, vector<64x128xf32> -> vector<64x128xf32>
    %40 = arith.addf %33, %39 : vector<64x128xf32>
    %c0_41 = arith.constant 0 : index
    %c1_42 = arith.constant 1 : index
    %c0_43 = arith.constant 0 : index
    %c0_44 = arith.constant 0 : index
    %41 = vector.load %arg1[%c0_41, %c1_42, %c0_43, %c0_44] : memref<4x9x9x128xbf16, #tpu.memory_space<vmem>>, vector<1x8x8x128xbf16>
    %42 = vector.shape_cast %41 : vector<1x8x8x128xbf16> to vector<8x8x128xbf16>
    %43 = vector.shape_cast %42 : vector<8x8x128xbf16> to vector<64x128xbf16>
    %c6 = arith.constant 6 : index
    %c0_45 = arith.constant 0 : index
    %c0_46 = arith.constant 0 : index
    %44 = vector.load %arg2[%c6, %c0_45, %c0_46] : memref<9x128x128xbf16, #tpu.memory_space<vmem>>, vector<1x128x128xbf16>
    %45 = vector.shape_cast %44 : vector<1x128x128xbf16> to vector<128x128xbf16>
    %cst_47 = arith.constant dense<0.000000e+00> : vector<64x128xf32>
    %46 = tpu.matmul %43, %45, %cst_47 {dimension_numbers = #tpu.dot_dimension_numbers<[1], [0], [0], [1], [0, 0, 1, 1], [], []>} : vector<64x128xbf16>, vector<128x128xbf16>, vector<64x128xf32> -> vector<64x128xf32>
    %47 = arith.addf %40, %46 : vector<64x128xf32>
    %c1_48 = arith.constant 1 : index
    %c1_49 = arith.constant 1 : index
    %c0_50 = arith.constant 0 : index
    %c0_51 = arith.constant 0 : index
    %48 = vector.load %arg1[%c1_48, %c1_49, %c0_50, %c0_51] : memref<4x9x9x128xbf16, #tpu.memory_space<vmem>>, vector<1x8x8x128xbf16>
    %49 = vector.shape_cast %48 : vector<1x8x8x128xbf16> to vector<8x8x128xbf16>
    %50 = vector.shape_cast %49 : vector<8x8x128xbf16> to vector<64x128xbf16>
    %c7 = arith.constant 7 : index
    %c0_52 = arith.constant 0 : index
    %c0_53 = arith.constant 0 : index
    %51 = vector.load %arg2[%c7, %c0_52, %c0_53] : memref<9x128x128xbf16, #tpu.memory_space<vmem>>, vector<1x128x128xbf16>
    %52 = vector.shape_cast %51 : vector<1x128x128xbf16> to vector<128x128xbf16>
    %cst_54 = arith.constant dense<0.000000e+00> : vector<64x128xf32>
    %53 = tpu.matmul %50, %52, %cst_54 {dimension_numbers = #tpu.dot_dimension_numbers<[1], [0], [0], [1], [0, 0, 1, 1], [], []>} : vector<64x128xbf16>, vector<128x128xbf16>, vector<64x128xf32> -> vector<64x128xf32>
    %54 = arith.addf %47, %53 : vector<64x128xf32>
    %c0_55 = arith.constant 0 : index
    %c1_56 = arith.constant 1 : index
    %c1_57 = arith.constant 1 : index
    %c0_58 = arith.constant 0 : index
    %55 = vector.load %arg1[%c0_55, %c1_56, %c1_57, %c0_58] : memref<4x9x9x128xbf16, #tpu.memory_space<vmem>>, vector<1x8x8x128xbf16>
    %56 = vector.shape_cast %55 : vector<1x8x8x128xbf16> to vector<8x8x128xbf16>
    %57 = vector.shape_cast %56 : vector<8x8x128xbf16> to vector<64x128xbf16>
    %c8 = arith.constant 8 : index
    %c0_59 = arith.constant 0 : index
    %c0_60 = arith.constant 0 : index
    %58 = vector.load %arg2[%c8, %c0_59, %c0_60] : memref<9x128x128xbf16, #tpu.memory_space<vmem>>, vector<1x128x128xbf16>
    %59 = vector.shape_cast %58 : vector<1x128x128xbf16> to vector<128x128xbf16>
    %cst_61 = arith.constant dense<0.000000e+00> : vector<64x128xf32>
    %60 = tpu.matmul %57, %59, %cst_61 {dimension_numbers = #tpu.dot_dimension_numbers<[1], [0], [0], [1], [0, 0, 1, 1], [], []>} : vector<64x128xbf16>, vector<128x128xbf16>, vector<64x128xf32> -> vector<64x128xf32>
    %61 = arith.addf %54, %60 : vector<64x128xf32>
    %c0_62 = arith.constant 0 : index
    %c0_63 = arith.constant 0 : index
    %62 = vector.load %arg3[%c0_62, %c0_63] : memref<1x128xf32, #tpu.memory_space<vmem>>, vector<1x128xf32>
    %63 = vector.broadcast %62 : vector<1x128xf32> to vector<64x128xf32>
    %64 = arith.addf %61, %63 : vector<64x128xf32>
    %cst_64 = arith.constant 0.000000e+00 : f32
    %65 = vector.broadcast %cst_64 : f32 to vector<64x128xf32>
    %66 = arith.maximumf %64, %65 : vector<64x128xf32>
    %cst_65 = arith.constant 0.000000e+00 : bf16
    %67 = vector.broadcast %cst_65 : bf16 to vector<1x10x10x128xbf16>
    %c0_66 = arith.constant 0 : index
    %c0_67 = arith.constant 0 : index
    %c0_68 = arith.constant 0 : index
    %c0_69 = arith.constant 0 : index
    %68 = vector.load %arg4[%c0_66, %c0_67, %c0_68, %c0_69] : memref<1x10x10x128xbf16, #tpu.memory_space<vmem>>, vector<1x10x10x128xbf16>
    tpu.vector_store %arg4[%c0_66, %c0_67, %c0_68, %c0_69], %67 {strides = array<i32>} : memref<1x10x10x128xbf16, #tpu.memory_space<vmem>>, vector<1x10x10x128xbf16>,
    %69 = arith.truncf %66 : vector<64x128xf32> to vector<64x128xbf16>
    %70 = vector.shape_cast %69 : vector<64x128xbf16> to vector<8x8x128xbf16>
    %c0_70 = arith.constant 0 : index
    %c1_71 = arith.constant 1 : index
    %c1_72 = arith.constant 1 : index
    %c0_73 = arith.constant 0 : index
    %71 = vector.load %arg4[%c0_70, %c1_71, %c1_72, %c0_73] : memref<1x10x10x128xbf16, #tpu.memory_space<vmem>>, vector<1x8x8x128xbf16>
    %72 = vector.shape_cast %71 : vector<1x8x8x128xbf16> to vector<8x8x128xbf16>
    %73 = vector.shape_cast %70 : vector<8x8x128xbf16> to vector<1x8x8x128xbf16>
    tpu.vector_store %arg4[%c0_70, %c1_71, %c1_72, %c0_73], %73 {strides = array<i32>} : memref<1x10x10x128xbf16, #tpu.memory_space<vmem>>, vector<1x8x8x128xbf16>,
    return
  }
  func.func @transform_0(%arg0: i32) -> (i32, i32, i32, i32) {
    %c0_i32 = arith.constant 0 : i32
    %c0_i32_0 = arith.constant 0 : i32
    %c0_i32_1 = arith.constant 0 : i32
    %c0_i32_2 = arith.constant 0 : i32
    return %arg0, %c0_i32, %c0_i32_0, %c0_i32_1 : i32, i32, i32, i32
  }
  func.func @transform_1(%arg0: i32) -> (i32, i32, i32) {
    %c0_i32 = arith.constant 0 : i32
    %c0_i32_0 = arith.constant 0 : i32
    %c0_i32_1 = arith.constant 0 : i32
    %c0_i32_2 = arith.constant 0 : i32
    return %c0_i32, %c0_i32_0, %c0_i32_1 : i32, i32, i32
  }
  func.func @transform_2(%arg0: i32) -> (i32, i32) {
    %c0_i32 = arith.constant 0 : i32
    %c0_i32_0 = arith.constant 0 : i32
    %c0_i32_1 = arith.constant 0 : i32
    return %c0_i32, %c0_i32_0 : i32, i32
  }
  func.func @transform_3(%arg0: i32) -> (i32, i32, i32, i32) {
    %c0_i32 = arith.constant 0 : i32
    %c0_i32_0 = arith.constant 0 : i32
    %c0_i32_1 = arith.constant 0 : i32
    %c0_i32_2 = arith.constant 0 : i32
    return %arg0, %c0_i32, %c0_i32_0, %c0_i32_1 : i32, i32, i32, i32
  }
}

</mosaic_0001>

<llo_original>
// kernel: basic_block_forward.2
$region0: #{basic_block_forward.2}
  #allocation0 [shape = 'u32[]', space=smem, size = 0x4, offset = 0x4, fixed_abs, tag = 'smem constant byte address 0x4 - core index']
  #allocation1 [shape = 'u32[144,128]{1,0:T(1,128)}', space=vmem, size = 0x12000, scoped, tag = 'internal scratch']
  %s0 = inlined_call_operand.vmem [shape: bf16[8,9,9,128], index: 0, kind: input, shape index: {}]
  %s1 = inlined_call_operand.vmem [shape: bf16[9,128,128], index: 1, kind: input, shape index: {}]
  %s2 = inlined_call_operand.vmem [shape: f32[1,128], index: 2, kind: input, shape index: {}]
  %s3 = inlined_call_operand.vmem [shape: bf16[2,10,10,128], index: 3, kind: output, shape index: {}]
  %s4 = sld [smem:[#allocation0]]
  $region45: #{basic_block_forward.2} parent=0
    _
  %s6 = ssub.s32 1, %s4
  %s7 = scalar_select 0, %s6, %s4
  loop: start=0, step=1, limit=4
  $region2: #{basic_block_forward.2} parent=0 // loop_pre_header
    _
  $region3: #{basic_block_forward.2} parent=0 // loop_header
    %s9 = sphi 0, %s13
    %p10 = scmp.ge.s32.totalorder %s9, 4
    %s19 = sphi 0, %s21
    %s22 = sphi 0, %s19
    %s23 = sphi 0, %s22
    %s39 = sphi 0, %s23
    %s43 = sphi 0, %s43
    %s45 = sphi 0, %s43
    %s46 = sphi 0, %s45
    %s60 = sphi 0, %s46
    %s64 = sphi 0, %s64
    %s66 = sphi 0, %s64
    %s67 = sphi 0, %s66
    %s81 = sphi 0, %s67
    %s87 = sphi 0, %s89
    %s90 = sphi 0, %s87
    %s91 = sphi 0, %s90
    %s107 = sphi 0, %s91
  $region4: #{basic_block_forward.2} parent=0 // loop_header_branch
    %12 = sbr.rel (%p10) target = $region8
  $region5: #{basic_block_forward.2} parent=0 // loop_body
    %s14 = ssub.s32 %s9, 1
    %s15 = ssub.s32 %s9, 2
    %s16 = sadd.s32 %s9, 1
    %s17 = ssub.s32 %s9, %s16
    %p18 = scmp.eq.s32.totalorder %s17, 0
    %s20 = sadd.s32 %s19, 1
    %s21 = scalar_select %p18, %s19, %s20
    %p24 = pneg %p18
    %p25 = scmp.eq.s32.totalorder %s9, 1
    %p26 = por %p24, %p25
    %p27 = scmp.ne.s32.totalorder %s19, %s22
    %p28 = scmp.eq.s32.totalorder %s9, 0
    %p29 = por %p27, %p28
    %p30 = scmp.ne.s32.totalorder %s19, %s22
    %p31 = scmp.eq.s32.totalorder %s14, 1
    %p32 = por %p30, %p31
    %p33 = scmp.ne.s32.totalorder %s22, %s23
    %p34 = scmp.eq.s32.totalorder %s14, 0
    %p35 = por %p33, %p34
    %p36 = scmp.ne.s32.totalorder %s22, %s23
    %p37 = scmp.eq.s32.totalorder %s15, 1
    %p38 = por %p36, %p37
    %p40 = scmp.ne.s32.totalorder %s23, %s39
    %p41 = scmp.eq.s32.totalorder %s15, 0
    %p42 = por %p40, %p41
    %s44 = sadd.s32 %s43, 1
    %p47 = scmp.eq.s32.totalorder %s9, 1
    %p48 = scmp.ne.s32.totalorder %s43, %s45
    %p49 = scmp.eq.s32.totalorder %s9, 0
    %p50 = por %p48, %p49
    %p51 = scmp.ne.s32.totalorder %s43, %s45
    %p52 = scmp.eq.s32.totalorder %s14, 1
    %p53 = por %p51, %p52
    %p54 = scmp.ne.s32.totalorder %s45, %s46
    %p55 = scmp.eq.s32.totalorder %s14, 0
    %p56 = por %p54, %p55
    %p57 = scmp.ne.s32.totalorder %s45, %s46
    %p58 = scmp.eq.s32.totalorder %s15, 1
    %p59 = por %p57, %p58
    %p61 = scmp.ne.s32.totalorder %s46, %s60
    %p62 = scmp.eq.s32.totalorder %s15, 0
    %p63 = por %p61, %p62
    %s65 = sadd.s32 %s64, 1
    %p68 = scmp.eq.s32.totalorder %s9, 1
    %p69 = scmp.ne.s32.totalorder %s64, %s66
    %p70 = scmp.eq.s32.totalorder %s9, 0
    %p71 = por %p69, %p70
    %p72 = scmp.ne.s32.totalorder %s64, %s66
    %p73 = scmp.eq.s32.totalorder %s14, 1
    %p74 = por %p72, %p73
    %p75 = scmp.ne.s32.totalorder %s66, %s67
    %p76 = scmp.eq.s32.totalorder %s14, 0
    %p77 = por %p75, %p76
    %p78 = scmp.ne.s32.totalorder %s66, %s67
    %p79 = scmp.eq.s32.totalorder %s15, 1
    %p80 = por %p78, %p79
    %p82 = scmp.ne.s32.totalorder %s67, %s81
    %p83 = scmp.eq.s32.totalorder %s15, 0
    %p84 = por %p82, %p83
    %s85 = ssub.s32 %s9, %s16
    %p86 = scmp.eq.s32.totalorder %s85, 0
    %s88 = sadd.s32 %s87, 1
    %s89 = scalar_select %p86, %s87, %s88
    %p92 = pneg %p86
    %p93 = scmp.eq.s32.totalorder %s9, 1
    %p94 = por %p92, %p93
    %p95 = scmp.ne.s32.totalorder %s87, %s90
    %p96 = scmp.eq.s32.totalorder %s9, 0
    %p97 = por %p95, %p96
    %p98 = scmp.ne.s32.totalorder %s87, %s90
    %p99 = scmp.eq.s32.totalorder %s14, 1
    %p100 = por %p98, %p99
    %p101 = scmp.ne.s32.totalorder %s90, %s91
    %p102 = scmp.eq.s32.totalorder %s14, 0
    %p103 = por %p101, %p102
    %p104 = scmp.ne.s32.totalorder %s90, %s91
    %p105 = scmp.eq.s32.totalorder %s15, 1
    %p106 = por %p104, %p105
    %p108 = scmp.ne.s32.totalorder %s91, %s107
    %p109 = scmp.eq.s32.totalorder %s15, 0
    %p110 = por %p108, %p109
    %p111 = scmp.le.s32.totalorder 1, %s9
    %p112 = scmp.lt.s32.totalorder %s9, 3
    %p113 = pnand %p111, %p112
    %p114 = pneg %p113
    // Predicated region
    $region9: #{basic_block_forward.2} parent=5 // pred_check
      _
    $region10: #{basic_block_forward.2} parent=5 // pred_check_branch
      %116 = sbr.rel (%p113) target = $region12
    $region11: #{basic_block_forward.2} parent=5 // pred_region
      %s117 = ssub.s32 %s9, 1
      // Predicated region
      $region13: #{basic_block_forward.2} parent=11 // pred_check
        %p118 = pneg %p56
      $region14: #{basic_block_forward.2} parent=11 // pred_check_branch
        %120 = sbr.rel (%p118) target = $region16
      $region15: #{basic_block_forward.2} parent=11 // pred_region
        _
      $region16: #{basic_block_forward.2} parent=11 // pred_fallthru
        _
      // Predicated region
      $region17: #{basic_block_forward.2} parent=11 // pred_check
        %p121 = pneg %p77
      $region18: #{basic_block_forward.2} parent=11 // pred_check_branch
        %123 = sbr.rel (%p121) target = $region20
      $region19: #{basic_block_forward.2} parent=11 // pred_region
        _
      $region20: #{basic_block_forward.2} parent=11 // pred_fallthru
        _
    $region12: #{basic_block_forward.2} parent=5 // pred_fallthru
      _
    %p124 = scmp.lt.s32.totalorder %s9, 2
    // Predicated region
    $region21: #{basic_block_forward.2} parent=5 // pred_check
      %p125 = pneg %p124
    $region22: #{basic_block_forward.2} parent=5 // pred_check_branch
      %127 = sbr.rel (%p125) target = $region24
    $region23: #{basic_block_forward.2} parent=5 // pred_region
      // Predicated region
      $region25: #{basic_block_forward.2} parent=23 // pred_check
        %p128 = pneg %p29
      $region26: #{basic_block_forward.2} parent=23 // pred_check_branch
        %130 = sbr.rel (%p128) target = $region28
      $region27: #{basic_block_forward.2} parent=23 // pred_region
        %s131 = smul.u32 4, %s9
        %p132 = scmp.lt.s32.totalorder %s131, 7
        %s133 = scalar_select %p132, %s131, 7
        %s134 = smul.addr %s133, 18
        %s135 = smul.addr %s134, 4
        %s136 = scalar_lea.vmem %s0, %s135
        %s137 = smul.u32 4, %s9
      $region28: #{basic_block_forward.2} parent=23 // pred_fallthru
        _
    $region24: #{basic_block_forward.2} parent=5 // pred_fallthru
      _
    %p138 = scmp.le.s32.totalorder 1, %s9
    %p139 = scmp.lt.s32.totalorder %s9, 3
    %p140 = pnand %p138, %p139
    %p141 = pneg %p140
    // Predicated region
    $region29: #{basic_block_forward.2} parent=5 // pred_check
      _
    $region30: #{basic_block_forward.2} parent=5 // pred_check_branch
      %143 = sbr.rel (%p140) target = $region32
    $region31: #{basic_block_forward.2} parent=5 // pred_region
      %s144 = ssub.s32 %s9, 1
      %s145 = smul.u32 4, %s14
      %p146 = scmp.lt.s32.totalorder %s145, 7
      %s147 = scalar_select %p146, %s145, 7
      %s148 = smul.addr %s147, 18
      %s149 = smul.addr %s148, 4
      %s150 = scalar_lea.vmem %s0, %s149
      %p151 = pneg %p35
      %p152 = pneg %p32
      %p153 = pneg %p56
      %p154 = pneg %p53
      %p155 = pneg %p77
      %p156 = pneg %p74
      %p157 = pneg %p103
      %p158 = pneg %p100
      %p159 = scmp.lt.s32.totalorder %s14, 1
      %s160 = scalar_select %p159, %s14, 1
      %s161 = smul.addr %s160, 20
      %s162 = smul.addr %s161, 4
      %s163 = scalar_lea.vmem %s3, %s162
      %s164 = smul.u32 4, %s14
      %p165 = scmp.lt.s32.totalorder %s164, 7
      %s166 = scalar_select %p165, %s164, 7
      %s167 = smul.addr %s166, 18
      %s168 = smul.addr %s167, 4
      %s169 = scalar_lea.vmem %s0, %s168
      %s170 = smul.u32 4, %s14
      %p171 = scmp.lt.s32.totalorder %s14, 1
      %s172 = scalar_select %p171, %s14, 1
      %s173 = smul.addr %s172, 20
      %s174 = smul.addr %s173, 4
      %s175 = scalar_lea.vmem %s3, %s174
      %v177 = vld [vmem:[%s169] sm:$0xf]
      %v178 = vld [vmem:[%s169 + $0x8] sm:$0xf]
      %v179 = vld [vmem:[%s169 + $0x10] sm:$0xf]
      %v180 = vld [vmem:[%s169 + $0x18] sm:$0xf]
      %v181 = vld [vmem:[%s169 + $0x20] sm:$0xf]
      %v182 = vld [vmem:[%s169 + $0x28] sm:$0xf]
      %v183 = vld [vmem:[%s169 + $0x30] sm:$0xf]
      %v184 = vld [vmem:[%s169 + $0x38] sm:$0xf]
      %v185 = vld [vmem:[%s1] sm:$0xf]
      %v186 = vld [vmem:[%s1 + $0x4] sm:$0xf]
      %v187 = vld [vmem:[%s1 + $0x8] sm:$0xf]
      %v188 = vld [vmem:[%s1 + $0xc] sm:$0xf]
      %v189 = vld [vmem:[%s1 + $0x10] sm:$0xf]
      %v190 = vld [vmem:[%s1 + $0x14] sm:$0xf]
      %v191 = vld [vmem:[%s1 + $0x18] sm:$0xf]
      %v192 = vld [vmem:[%s1 + $0x1c] sm:$0xf]
      %v193 = vld [vmem:[%s1 + $0x20] sm:$0xf]
      %v194 = vld [vmem:[%s1 + $0x24] sm:$0xf]
      %v195 = vld [vmem:[%s1 + $0x28] sm:$0xf]
      %v196 = vld [vmem:[%s1 + $0x2c] sm:$0xf]
      %v197 = vld [vmem:[%s1 + $0x30] sm:$0xf]
      %v198 = vld [vmem:[%s1 + $0x34] sm:$0xf]
      %v199 = vld [vmem:[%s1 + $0x38] sm:$0xf]
      %v200 = vld [vmem:[%s1 + $0x3c] sm:$0xf]
      %s201 = scalar_lea.vmem %s169, 72
      %v202 = vld [vmem:[%s201] sm:$0xf]
      %v203 = vld [vmem:[%s201 + $0x8] sm:$0xf]
      %v204 = vld [vmem:[%s201 + $0x10] sm:$0xf]
      %v205 = vld [vmem:[%s201 + $0x18] sm:$0xf]
      %v206 = vld [vmem:[%s201 + $0x20] sm:$0xf]
      %v207 = vld [vmem:[%s201 + $0x28] sm:$0xf]
      %v208 = vld [vmem:[%s201 + $0x30] sm:$0xf]
      %v209 = vld [vmem:[%s201 + $0x38] sm:$0xf]
      %s210 = scalar_lea.vmem %s1, 64
      %v211 = vld [vmem:[%s210] sm:$0xf]
      %v212 = vld [vmem:[%s210 + $0x4] sm:$0xf]
      %v213 = vld [vmem:[%s210 + $0x8] sm:$0xf]
      %v214 = vld [vmem:[%s210 + $0xc] sm:$0xf]
      %v215 = vld [vmem:[%s210 + $0x10] sm:$0xf]
      %v216 = vld [vmem:[%s210 + $0x14] sm:$0xf]
      %v217 = vld [vmem:[%s210 + $0x18] sm:$0xf]
      %v218 = vld [vmem:[%s210 + $0x1c] sm:$0xf]
      %v219 = vld [vmem:[%s210 + $0x20] sm:$0xf]
      %v220 = vld [vmem:[%s210 + $0x24] sm:$0xf]
      %v221 = vld [vmem:[%s210 + $0x28] sm:$0xf]
      %v222 = vld [vmem:[%s210 + $0x2c] sm:$0xf]
      %v223 = vld [vmem:[%s210 + $0x30] sm:$0xf]
      %v224 = vld [vmem:[%s210 + $0x34] sm:$0xf]
      %v225 = vld [vmem:[%s210 + $0x38] sm:$0xf]
      %v226 = vld [vmem:[%s210 + $0x3c] sm:$0xf]
      %v235 = vunpack.c.l.b16 %v202
      %v236 = vunpack.c.l.b16 %v203
      %v237 = vunpack.c.l.b16 %v204
      %v238 = vunpack.c.l.b16 %v205
      %v239 = vunpack.c.l.b16 %v206
      %v240 = vunpack.c.l.b16 %v207
      %v241 = vunpack.c.l.b16 %v208
      %v242 = vunpack.c.l.b16 %v209
      %v243 = vpack.c.b16 %v236, %v235
      %v244 = vpack.c.b16 %v238, %v237
      %v245 = vpack.c.b16 %v240, %v239
      %v246 = vpack.c.b16 %v242, %v241
      %v267 = vunpack.c.l.b16 %v211
      %v268 = vunpack.c.l.b16 %v212
      %v269 = vunpack.c.l.b16 %v213
      %v270 = vunpack.c.l.b16 %v214
      %v271 = vunpack.c.l.b16 %v215
      %v272 = vunpack.c.l.b16 %v216
      %v273 = vunpack.c.l.b16 %v217
      %v274 = vunpack.c.l.b16 %v218
      %v275 = vunpack.c.l.b16 %v219
      %v276 = vunpack.c.l.b16 %v220
      %v277 = vunpack.c.l.b16 %v221
      %v278 = vunpack.c.l.b16 %v222
      %v279 = vunpack.c.l.b16 %v223
      %v280 = vunpack.c.l.b16 %v224
      %v281 = vunpack.c.l.b16 %v225
      %v282 = vunpack.c.l.b16 %v226
      %v283 = vpack.c.b16 %v268, %v267
      %v284 = vpack.c.b16 %v270, %v269
      %v285 = vpack.c.b16 %v272, %v271
      %v286 = vpack.c.b16 %v274, %v273
      %v287 = vpack.c.b16 %v276, %v275
      %v288 = vpack.c.b16 %v278, %v277
      %v289 = vpack.c.b16 %v280, %v279
      %v290 = vpack.c.b16 %v282, %v281
      %299 = vmatprep.subr.bf16.mxu0 0
      %300 = vmatpush1.bf16.msra.mxu0 %v283
      %301 = vmatprep.subr.bf16.mxu0 0
      %302 = vmatpush1.bf16.msra.mxu0 %v284
      %303 = vmatprep.subr.bf16.mxu0 0
      %304 = vmatpush1.bf16.msra.mxu0 %v285
      %305 = vmatprep.subr.bf16.mxu0 0
      %306 = vmatpush1.bf16.msra.mxu0 %v286
      %307 = vmatprep.subr.bf16.mxu0 0
      %308 = vmatpush1.bf16.msra.mxu0 %v287
      %309 = vmatprep.subr.bf16.mxu0 0
      %310 = vmatpush1.bf16.msra.mxu0 %v288
      %311 = vmatprep.subr.bf16.mxu0 0
      %312 = vmatpush1.bf16.msra.mxu0 %v289
      %313 = vmatprep.subr.bf16.mxu0 0
      %314 = vmatpush1.bf16.msra.mxu0 %v290
      %315 = vmatprep.subr.bf16.mxu0 0
      %316 = vmatpush1.bf16.msra.mxu0 0
      %317 = vmatprep.subr.bf16.mxu0 0
      %318 = vmatpush1.bf16.msra.mxu0 0
      %319 = vmatprep.subr.bf16.mxu0 0
      %320 = vmatpush1.bf16.msra.mxu0 0
      %321 = vmatprep.subr.bf16.mxu0 0
      %322 = vmatpush1.bf16.msra.mxu0 0
      %323 = vmatprep.subr.bf16.mxu0 0
      %324 = vmatpush1.bf16.msra.mxu0 0
      %325 = vmatprep.subr.bf16.mxu0 0
      %326 = vmatpush1.bf16.msra.mxu0 0
      %327 = vmatprep.subr.bf16.mxu0 0
      %328 = vmatpush1.bf16.msra.mxu0 0
      %329 = vmatprep.subr.bf16.mxu0 0
      %330 = vmatpush1.bf16.msra.mxu0 0
      %331 = vmatprep.mubr.bf16.mxu0 0
      %332 = vmatmul.mubr.bf16.gmra.mrb[0].mxu0 %v243
      %v333 = vpop.f32.mrb[0].mxu0
      %v334 = vadd.f32 0.0, %v333
      %v335 = vpop.f32.mrb[0].mxu0
      %v336 = vpop.f32.mrb[0].mxu0
      %v337 = vadd.f32 0.0, %v336
      %v338 = vpop.f32.mrb[0].mxu0
      %339 = vmatprep.mubr.bf16.mxu0 0
      %340 = vmatmul.mubr.bf16.gmra.mrb[0].mxu0 %v244
      %v341 = vpop.f32.mrb[0].mxu0
      %v342 = vadd.f32 0.0, %v341
      %v343 = vpop.f32.mrb[0].mxu0
      %v344 = vpop.f32.mrb[0].mxu0
      %v345 = vadd.f32 0.0, %v344
      %v346 = vpop.f32.mrb[0].mxu0
      %347 = vmatprep.mubr.bf16.mxu0 0
      %348 = vmatmul.mubr.bf16.gmra.mrb[0].mxu0 %v245
      %v349 = vpop.f32.mrb[0].mxu0
      %v350 = vadd.f32 0.0, %v349
      %v351 = vpop.f32.mrb[0].mxu0
      %v352 = vpop.f32.mrb[0].mxu0
      %v353 = vadd.f32 0.0, %v352
      %v354 = vpop.f32.mrb[0].mxu0
      %355 = vmatprep.mubr.bf16.mxu0 0
      %356 = vmatmul.mubr.bf16.gmra.mrb[0].mxu0 %v246
      %v357 = vpop.f32.mrb[0].mxu0
      %v358 = vadd.f32 0.0, %v357
      %v359 = vpop.f32.mrb[0].mxu0
      %v360 = vpop.f32.mrb[0].mxu0
      %v361 = vadd.f32 0.0, %v360
      %v362 = vpop.f32.mrb[0].mxu0
      %363 = vdwg.mxu0
      %v372 = vunpack.c.l.b16 %v177
      %v373 = vunpack.c.l.b16 %v178
      %v374 = vunpack.c.l.b16 %v179
      %v375 = vunpack.c.l.b16 %v180
      %v376 = vunpack.c.l.b16 %v181
      %v377 = vunpack.c.l.b16 %v182
      %v378 = vunpack.c.l.b16 %v183
      %v379 = vunpack.c.l.b16 %v184
      %v380 = vpack.c.b16 %v373, %v372
      %v381 = vpack.c.b16 %v375, %v374
      %v382 = vpack.c.b16 %v377, %v376
      %v383 = vpack.c.b16 %v379, %v378
      %v404 = vunpack.c.l.b16 %v185
      %v405 = vunpack.c.l.b16 %v186
      %v406 = vunpack.c.l.b16 %v187
      %v407 = vunpack.c.l.b16 %v188
      %v408 = vunpack.c.l.b16 %v189
      %v409 = vunpack.c.l.b16 %v190
      %v410 = vunpack.c.l.b16 %v191
      %v411 = vunpack.c.l.b16 %v192
      %v412 = vunpack.c.l.b16 %v193
      %v413 = vunpack.c.l.b16 %v194
      %v414 = vunpack.c.l.b16 %v195
      %v415 = vunpack.c.l.b16 %v196
      %v416 = vunpack.c.l.b16 %v197
      %v417 = vunpack.c.l.b16 %v198
      %v418 = vunpack.c.l.b16 %v199
      %v419 = vunpack.c.l.b16 %v200
      %v420 = vpack.c.b16 %v405, %v404
      %v421 = vpack.c.b16 %v407, %v406
      %v422 = vpack.c.b16 %v409, %v408
      %v423 = vpack.c.b16 %v411, %v410
      %v424 = vpack.c.b16 %v413, %v412
      %v425 = vpack.c.b16 %v415, %v414
      %v426 = vpack.c.b16 %v417, %v416
      %v427 = vpack.c.b16 %v419, %v418
      %436 = vmatprep.subr.bf16.mxu0 0
      %437 = vmatpush1.bf16.msra.mxu0 %v420
      %438 = vmatprep.subr.bf16.mxu0 0
      %439 = vmatpush1.bf16.msra.mxu0 %v421
      %440 = vmatprep.subr.bf16.mxu0 0
      %441 = vmatpush1.bf16.msra.mxu0 %v422
      %442 = vmatprep.subr.bf16.mxu0 0
      %443 = vmatpush1.bf16.msra.mxu0 %v423
      %444 = vmatprep.subr.bf16.mxu0 0
      %445 = vmatpush1.bf16.msra.mxu0 %v424
      %446 = vmatprep.subr.bf16.mxu0 0
      %447 = vmatpush1.bf16.msra.mxu0 %v425
      %448 = vmatprep.subr.bf16.mxu0 0
      %449 = vmatpush1.bf16.msra.mxu0 %v426
      %450 = vmatprep.subr.bf16.mxu0 0
      %451 = vmatpush1.bf16.msra.mxu0 %v427
      %452 = vmatprep.subr.bf16.mxu0 0
      %453 = vmatpush1.bf16.msra.mxu0 0
      %454 = vmatprep.subr.bf16.mxu0 0
      %455 = vmatpush1.bf16.msra.mxu0 0
      %456 = vmatprep.subr.bf16.mxu0 0
      %457 = vmatpush1.bf16.msra.mxu0 0
      %458 = vmatprep.subr.bf16.mxu0 0
      %459 = vmatpush1.bf16.msra.mxu0 0
      %460 = vmatprep.subr.bf16.mxu0 0
      %461 = vmatpush1.bf16.msra.mxu0 0
      %462 = vmatprep.subr.bf16.mxu0 0
      %463 = vmatpush1.bf16.msra.mxu0 0
      %464 = vmatprep.subr.bf16.mxu0 0
      %465 = vmatpush1.bf16.msra.mxu0 0
      %466 = vmatprep.subr.bf16.mxu0 0
      %467 = vmatpush1.bf16.msra.mxu0 0
      %468 = vmatprep.mubr.bf16.mxu0 0
      %469 = vmatmul.mubr.bf16.gmra.mrb[0].mxu0 %v380
      %v470 = vpop.f32.mrb[0].mxu0
      %v471 = vadd.f32 %v334, %v470
      %v472 = vpop.f32.mrb[0].mxu0
      %v473 = vpop.f32.mrb[0].mxu0
      %v474 = vadd.f32 %v337, %v473
      %v475 = vpop.f32.mrb[0].mxu0
      %476 = vmatprep.mubr.bf16.mxu0 0
      %477 = vmatmul.mubr.bf16.gmra.mrb[0].mxu0 %v381
      %v478 = vpop.f32.mrb[0].mxu0
      %v479 = vadd.f32 %v342, %v478
      %v480 = vpop.f32.mrb[0].mxu0
      %v481 = vpop.f32.mrb[0].mxu0
      %v482 = vadd.f32 %v345, %v481
      %v483 = vpop.f32.mrb[0].mxu0
      %484 = vmatprep.mubr.bf16.mxu0 0
      %485 = vmatmul.mubr.bf16.gmra.mrb[0].mxu0 %v382
      %v486 = vpop.f32.mrb[0].mxu0
      %v487 = vadd.f32 %v350, %v486
      %v488 = vpop.f32.mrb[0].mxu0
      %v489 = vpop.f32.mrb[0].mxu0
      %v490 = vadd.f32 %v353, %v489
      %v491 = vpop.f32.mrb[0].mxu0
      %492 = vmatprep.mubr.bf16.mxu0 0
      %493 = vmatmul.mubr.bf16.gmra.mrb[0].mxu0 %v383
      %v494 = vpop.f32.mrb[0].mxu0
      %v495 = vadd.f32 %v358, %v494
      %v496 = vpop.f32.mrb[0].mxu0
      %v497 = vpop.f32.mrb[0].mxu0
      %v498 = vadd.f32 %v361, %v497
      %v499 = vpop.f32.mrb[0].mxu0
      %500 = vdwg.mxu0
      %v501 = vld [vmem:[%s169] sm:$0xf]
      %v502 = vld [vmem:[%s169 + $0x4] sm:$0x1]
      %v503 = vld [vmem:[%s169 + $0x8] sm:$0xf]
      %v504 = vld [vmem:[%s169 + $0xc] sm:$0x1]
      %v505 = vld [vmem:[%s169 + $0x10] sm:$0xf]
      %v506 = vld [vmem:[%s169 + $0x14] sm:$0x1]
      %v507 = vld [vmem:[%s169 + $0x18] sm:$0xf]
      %v508 = vld [vmem:[%s169 + $0x1c] sm:$0x1]
      %v509 = vld [vmem:[%s169 + $0x20] sm:$0xf]
      %v510 = vld [vmem:[%s169 + $0x24] sm:$0x1]
      %v511 = vld [vmem:[%s169 + $0x28] sm:$0xf]
      %v512 = vld [vmem:[%s169 + $0x2c] sm:$0x1]
      %v513 = vld [vmem:[%s169 + $0x30] sm:$0xf]
      %v514 = vld [vmem:[%s169 + $0x34] sm:$0x1]
      %v515 = vld [vmem:[%s169 + $0x38] sm:$0xf]
      %v516 = vld [vmem:[%s169 + $0x3c] sm:$0x1]
      %vm517 = vsmask.f32 3328
      %vm518 = vsmask.f32 7440
      %vm519 = vmor %vm517, %vm518
      %v521 = vshrl.u32 %v501, 16
      %v523 = vrot.slane %v521, 4
      %v524 = vshll.u32 %v501, 16
      %v526 = vrot.slane %v524, 5
      %v527 = vor.u32 %v523, %v526
      %v528 = vrot.slane %v527, 4
      %v530 = vshll.u32 %v502, 16
      %v532 = vrot.slane %v530, 5
      %v533 = vsel %vm519, %v528, %v532
      %v535 = vshrl.u32 %v503, 16
      %v537 = vrot.slane %v535, 4
      %v538 = vshll.u32 %v503, 16
      %v540 = vrot.slane %v538, 5
      %v541 = vor.u32 %v537, %v540
      %v542 = vrot.slane %v541, 4
      %v544 = vshll.u32 %v504, 16
      %v546 = vrot.slane %v544, 5
      %v547 = vsel %vm519, %v542, %v546
      %v549 = vshrl.u32 %v505, 16
      %v551 = vrot.slane %v549, 4
      %v552 = vshll.u32 %v505, 16
      %v554 = vrot.slane %v552, 5
      %v555 = vor.u32 %v551, %v554
      %v556 = vrot.slane %v555, 4
      %v558 = vshll.u32 %v506, 16
      %v560 = vrot.slane %v558, 5
      %v561 = vsel %vm519, %v556, %v560
      %v563 = vshrl.u32 %v507, 16
      %v565 = vrot.slane %v563, 4
      %v566 = vshll.u32 %v507, 16
      %v568 = vrot.slane %v566, 5
      %v569 = vor.u32 %v565, %v568
      %v570 = vrot.slane %v569, 4
      %v572 = vshll.u32 %v508, 16
      %v574 = vrot.slane %v572, 5
      %v575 = vsel %vm519, %v570, %v574
      %v577 = vshrl.u32 %v509, 16
      %v579 = vrot.slane %v577, 4
      %v580 = vshll.u32 %v509, 16
      %v582 = vrot.slane %v580, 5
      %v583 = vor.u32 %v579, %v582
      %v584 = vrot.slane %v583, 4
      %v586 = vshll.u32 %v510, 16
      %v588 = vrot.slane %v586, 5
      %v589 = vsel %vm519, %v584, %v588
      %v591 = vshrl.u32 %v511, 16
      %v593 = vrot.slane %v591, 4
      %v594 = vshll.u32 %v511, 16
      %v596 = vrot.slane %v594, 5
      %v597 = vor.u32 %v593, %v596
      %v598 = vrot.slane %v597, 4
      %v600 = vshll.u32 %v512, 16
      %v602 = vrot.slane %v600, 5
      %v603 = vsel %vm519, %v598, %v602
      %v605 = vshrl.u32 %v513, 16
      %v607 = vrot.slane %v605, 4
      %v608 = vshll.u32 %v513, 16
      %v610 = vrot.slane %v608, 5
      %v611 = vor.u32 %v607, %v610
      %v612 = vrot.slane %v611, 4
      %v614 = vshll.u32 %v514, 16
      %v616 = vrot.slane %v614, 5
      %v617 = vsel %vm519, %v612, %v616
      %v619 = vshrl.u32 %v515, 16
      %v621 = vrot.slane %v619, 4
      %v622 = vshll.u32 %v515, 16
      %v624 = vrot.slane %v622, 5
      %v625 = vor.u32 %v621, %v624
      %v626 = vrot.slane %v625, 4
      %v628 = vshll.u32 %v516, 16
      %v630 = vrot.slane %v628, 5
      %v631 = vsel %vm519, %v626, %v630
      %s632 = scalar_lea.vmem %s1, 128
      %v633 = vld [vmem:[%s632] sm:$0xf]
      %v634 = vld [vmem:[%s632 + $0x4] sm:$0xf]
      %v635 = vld [vmem:[%s632 + $0x8] sm:$0xf]
      %v636 = vld [vmem:[%s632 + $0xc] sm:$0xf]
      %v637 = vld [vmem:[%s632 + $0x10] sm:$0xf]
      %v638 = vld [vmem:[%s632 + $0x14] sm:$0xf]
      %v639 = vld [vmem:[%s632 + $0x18] sm:$0xf]
      %v640 = vld [vmem:[%s632 + $0x1c] sm:$0xf]
      %v641 = vld [vmem:[%s632 + $0x20] sm:$0xf]
      %v642 = vld [vmem:[%s632 + $0x24] sm:$0xf]
      %v643 = vld [vmem:[%s632 + $0x28] sm:$0xf]
      %v644 = vld [vmem:[%s632 + $0x2c] sm:$0xf]
      %v645 = vld [vmem:[%s632 + $0x30] sm:$0xf]
      %v646 = vld [vmem:[%s632 + $0x34] sm:$0xf]
      %v647 = vld [vmem:[%s632 + $0x38] sm:$0xf]
      %v648 = vld [vmem:[%s632 + $0x3c] sm:$0xf]
      %v649 = vunpack.c.l.b16 %v533
      %v650 = vunpack.c.l.b16 %v547
      %v651 = vunpack.c.l.b16 %v561
      %v652 = vunpack.c.l.b16 %v575
      %v653 = vunpack.c.l.b16 %v589
      %v654 = vunpack.c.l.b16 %v603
      %v655 = vunpack.c.l.b16 %v617
      %v656 = vunpack.c.l.b16 %v631
      %v657 = vpack.c.b16 %v650, %v649
      %v658 = vpack.c.b16 %v652, %v651
      %v659 = vpack.c.b16 %v654, %v653
      %v660 = vpack.c.b16 %v656, %v655
      %v681 = vunpack.c.l.b16 %v633
      %v682 = vunpack.c.l.b16 %v634
      %v683 = vunpack.c.l.b16 %v635
      %v684 = vunpack.c.l.b16 %v636
      %v685 = vunpack.c.l.b16 %v637
      %v686 = vunpack.c.l.b16 %v638
      %v687 = vunpack.c.l.b16 %v639
      %v688 = vunpack.c.l.b16 %v640
      %v689 = vunpack.c.l.b16 %v641
      %v690 = vunpack.c.l.b16 %v642
      %v691 = vunpack.c.l.b16 %v643
      %v692 = vunpack.c.l.b16 %v644
      %v693 = vunpack.c.l.b16 %v645
      %v694 = vunpack.c.l.b16 %v646
      %v695 = vunpack.c.l.b16 %v647
      %v696 = vunpack.c.l.b16 %v648
      %v697 = vpack.c.b16 %v682, %v681
      %v698 = vpack.c.b16 %v684, %v683
      %v699 = vpack.c.b16 %v686, %v685
      %v700 = vpack.c.b16 %v688, %v687
      %v701 = vpack.c.b16 %v690, %v689
      %v702 = vpack.c.b16 %v692, %v691
      %v703 = vpack.c.b16 %v694, %v693
      %v704 = vpack.c.b16 %v696, %v695
      %713 = vmatprep.subr.bf16.mxu0 0
      %714 = vmatpush1.bf16.msra.mxu0 %v697
      %715 = vmatprep.subr.bf16.mxu0 0
      %716 = vmatpush1.bf16.msra.mxu0 %v698
      %717 = vmatprep.subr.bf16.mxu0 0
      %718 = vmatpush1.bf16.msra.mxu0 %v699
      %719 = vmatprep.subr.bf16.mxu0 0
      %720 = vmatpush1.bf16.msra.mxu0 %v700
      %721 = vmatprep.subr.bf16.mxu0 0
      %722 = vmatpush1.bf16.msra.mxu0 %v701
      %723 = vmatprep.subr.bf16.mxu0 0
      %724 = vmatpush1.bf16.msra.mxu0 %v702
      %725 = vmatprep.subr.bf16.mxu0 0
      %726 = vmatpush1.bf16.msra.mxu0 %v703
      %727 = vmatprep.subr.bf16.mxu0 0
      %728 = vmatpush1.bf16.msra.mxu0 %v704
      %729 = vmatprep.subr.bf16.mxu0 0
      %730 = vmatpush1.bf16.msra.mxu0 0
      %731 = vmatprep.subr.bf16.mxu0 0
      %732 = vmatpush1.bf16.msra.mxu0 0
      %733 = vmatprep.subr.bf16.mxu0 0
      %734 = vmatpush1.bf16.msra.mxu0 0
      %735 = vmatprep.subr.bf16.mxu0 0
      %736 = vmatpush1.bf16.msra.mxu0 0
      %737 = vmatprep.subr.bf16.mxu0 0
      %738 = vmatpush1.bf16.msra.mxu0 0
      %739 = vmatprep.subr.bf16.mxu0 0
      %740 = vmatpush1.bf16.msra.mxu0 0
      %741 = vmatprep.subr.bf16.mxu0 0
      %742 = vmatpush1.bf16.msra.mxu0 0
      %743 = vmatprep.subr.bf16.mxu0 0
      %744 = vmatpush1.bf16.msra.mxu0 0
      %745 = vmatprep.mubr.bf16.mxu0 0
      %746 = vmatmul.mubr.bf16.gmra.mrb[0].mxu0 %v657
      %v747 = vpop.f32.mrb[0].mxu0
      %v748 = vadd.f32 0.0, %v747
      %v749 = vpop.f32.mrb[0].mxu0
      %v750 = vpop.f32.mrb[0].mxu0
      %v751 = vadd.f32 0.0, %v750
      %v752 = vpop.f32.mrb[0].mxu0
      %753 = vmatprep.mubr.bf16.mxu0 0
      %754 = vmatmul.mubr.bf16.gmra.mrb[0].mxu0 %v658
      %v755 = vpop.f32.mrb[0].mxu0
      %v756 = vadd.f32 0.0, %v755
      %v757 = vpop.f32.mrb[0].mxu0
      %v758 = vpop.f32.mrb[0].mxu0
      %v759 = vadd.f32 0.0, %v758
      %v760 = vpop.f32.mrb[0].mxu0
      %761 = vmatprep.mubr.bf16.mxu0 0
      %762 = vmatmul.mubr.bf16.gmra.mrb[0].mxu0 %v659
      %v763 = vpop.f32.mrb[0].mxu0
      %v764 = vadd.f32 0.0, %v763
      %v765 = vpop.f32.mrb[0].mxu0
      %v766 = vpop.f32.mrb[0].mxu0
      %v767 = vadd.f32 0.0, %v766
      %v768 = vpop.f32.mrb[0].mxu0
      %769 = vmatprep.mubr.bf16.mxu0 0
      %770 = vmatmul.mubr.bf16.gmra.mrb[0].mxu0 %v660
      %v771 = vpop.f32.mrb[0].mxu0
      %v772 = vadd.f32 0.0, %v771
      %v773 = vpop.f32.mrb[0].mxu0
      %v774 = vpop.f32.mrb[0].mxu0
      %v775 = vadd.f32 0.0, %v774
      %v776 = vpop.f32.mrb[0].mxu0
      %777 = vdwg.mxu0
      %v778 = vadd.f32 %v471, %v748
      %v779 = vadd.f32 %v474, %v751
      %v780 = vadd.f32 %v479, %v756
      %v781 = vadd.f32 %v482, %v759
      %v782 = vadd.f32 %v487, %v764
      %v783 = vadd.f32 %v490, %v767
      %v784 = vadd.f32 %v495, %v772
      %v785 = vadd.f32 %v498, %v775
      %s786 = scalar_lea.vmem %s169, 144
      %v787 = vld [vmem:[%s786] sm:$0xf]
      %v788 = vld [vmem:[%s786 + $0x8] sm:$0xf]
      %v789 = vld [vmem:[%s786 + $0x10] sm:$0xf]
      %v790 = vld [vmem:[%s786 + $0x18] sm:$0xf]
      %v791 = vld [vmem:[%s786 + $0x20] sm:$0xf]
      %v792 = vld [vmem:[%s786 + $0x28] sm:$0xf]
      %v793 = vld [vmem:[%s786 + $0x30] sm:$0xf]
      %v794 = vld [vmem:[%s786 + $0x38] sm:$0xf]
      %s795 = scalar_lea.vmem %s1, 192
      %v796 = vld [vmem:[%s795] sm:$0xf]
      %v797 = vld [vmem:[%s795 + $0x4] sm:$0xf]
      %v798 = vld [vmem:[%s795 + $0x8] sm:$0xf]
      %v799 = vld [vmem:[%s795 + $0xc] sm:$0xf]
      %v800 = vld [vmem:[%s795 + $0x10] sm:$0xf]
      %v801 = vld [vmem:[%s795 + $0x14] sm:$0xf]
      %v802 = vld [vmem:[%s795 + $0x18] sm:$0xf]
      %v803 = vld [vmem:[%s795 + $0x1c] sm:$0xf]
      %v804 = vld [vmem:[%s795 + $0x20] sm:$0xf]
      %v805 = vld [vmem:[%s795 + $0x24] sm:$0xf]
      %v806 = vld [vmem:[%s795 + $0x28] sm:$0xf]
      %v807 = vld [vmem:[%s795 + $0x2c] sm:$0xf]
      %v808 = vld [vmem:[%s795 + $0x30] sm:$0xf]
      %v809 = vld [vmem:[%s795 + $0x34] sm:$0xf]
      %v810 = vld [vmem:[%s795 + $0x38] sm:$0xf]
      %v811 = vld [vmem:[%s795 + $0x3c] sm:$0xf]
      %v820 = vunpack.c.l.b16 %v787
      %v821 = vunpack.c.l.b16 %v788
      %v822 = vunpack.c.l.b16 %v789
      %v823 = vunpack.c.l.b16 %v790
      %v824 = vunpack.c.l.b16 %v791
      %v825 = vunpack.c.l.b16 %v792
      %v826 = vunpack.c.l.b16 %v793
      %v827 = vunpack.c.l.b16 %v794
      %v828 = vpack.c.b16 %v821, %v820
      %v829 = vpack.c.b16 %v823, %v822
      %v830 = vpack.c.b16 %v825, %v824
      %v831 = vpack.c.b16 %v827, %v826
      %v852 = vunpack.c.l.b16 %v796
      %v853 = vunpack.c.l.b16 %v797
      %v854 = vunpack.c.l.b16 %v798
      %v855 = vunpack.c.l.b16 %v799
      %v856 = vunpack.c.l.b16 %v800
      %v857 = vunpack.c.l.b16 %v801
      %v858 = vunpack.c.l.b16 %v802
      %v859 = vunpack.c.l.b16 %v803
      %v860 = vunpack.c.l.b16 %v804
      %v861 = vunpack.c.l.b16 %v805
      %v862 = vunpack.c.l.b16 %v806
      %v863 = vunpack.c.l.b16 %v807
      %v864 = vunpack.c.l.b16 %v808
      %v865 = vunpack.c.l.b16 %v809
      %v866 = vunpack.c.l.b16 %v810
      %v867 = vunpack.c.l.b16 %v811
      %v868 = vpack.c.b16 %v853, %v852
      %v869 = vpack.c.b16 %v855, %v854
      %v870 = vpack.c.b16 %v857, %v856
      %v871 = vpack.c.b16 %v859, %v858
      %v872 = vpack.c.b16 %v861, %v860
      %v873 = vpack.c.b16 %v863, %v862
      %v874 = vpack.c.b16 %v865, %v864
      %v875 = vpack.c.b16 %v867, %v866
      %884 = vmatprep.subr.bf16.mxu0 0
      %885 = vmatpush1.bf16.msra.mxu0 %v868
      %886 = vmatprep.subr.bf16.mxu0 0
      %887 = vmatpush1.bf16.msra.mxu0 %v869
      %888 = vmatprep.subr.bf16.mxu0 0
      %889 = vmatpush1.bf16.msra.mxu0 %v870
      %890 = vmatprep.subr.bf16.mxu0 0
      %891 = vmatpush1.bf16.msra.mxu0 %v871
      %892 = vmatprep.subr.bf16.mxu0 0
      %893 = vmatpush1.bf16.msra.mxu0 %v872
      %894 = vmatprep.subr.bf16.mxu0 0
      %895 = vmatpush1.bf16.msra.mxu0 %v873
      %896 = vmatprep.subr.bf16.mxu0 0
      %897 = vmatpush1.bf16.msra.mxu0 %v874
      %898 = vmatprep.subr.bf16.mxu0 0
      %899 = vmatpush1.bf16.msra.mxu0 %v875
      %900 = vmatprep.subr.bf16.mxu0 0
      %901 = vmatpush1.bf16.msra.mxu0 0
      %902 = vmatprep.subr.bf16.mxu0 0
      %903 = vmatpush1.bf16.msra.mxu0 0
      %904 = vmatprep.subr.bf16.mxu0 0
      %905 = vmatpush1.bf16.msra.mxu0 0
      %906 = vmatprep.subr.bf16.mxu0 0
      %907 = vmatpush1.bf16.msra.mxu0 0
      %908 = vmatprep.subr.bf16.mxu0 0
      %909 = vmatpush1.bf16.msra.mxu0 0
      %910 = vmatprep.subr.bf16.mxu0 0
      %911 = vmatpush1.bf16.msra.mxu0 0
      %912 = vmatprep.subr.bf16.mxu0 0
      %913 = vmatpush1.bf16.msra.mxu0 0
      %914 = vmatprep.subr.bf16.mxu0 0
      %915 = vmatpush1.bf16.msra.mxu0 0
      %916 = vmatprep.mubr.bf16.mxu0 0
      %917 = vmatmul.mubr.bf16.gmra.mrb[0].mxu0 %v828
      %v918 = vpop.f32.mrb[0].mxu0
      %v919 = vadd.f32 0.0, %v918
      %v920 = vpop.f32.mrb[0].mxu0
      %v921 = vpop.f32.mrb[0].mxu0
      %v922 = vadd.f32 0.0, %v921
      %v923 = vpop.f32.mrb[0].mxu0
      %924 = vmatprep.mubr.bf16.mxu0 0
      %925 = vmatmul.mubr.bf16.gmra.mrb[0].mxu0 %v829
      %v926 = vpop.f32.mrb[0].mxu0
      %v927 = vadd.f32 0.0, %v926
      %v928 = vpop.f32.mrb[0].mxu0
      %v929 = vpop.f32.mrb[0].mxu0
      %v930 = vadd.f32 0.0, %v929
      %v931 = vpop.f32.mrb[0].mxu0
      %932 = vmatprep.mubr.bf16.mxu0 0
      %933 = vmatmul.mubr.bf16.gmra.mrb[0].mxu0 %v830
      %v934 = vpop.f32.mrb[0].mxu0
      %v935 = vadd.f32 0.0, %v934
      %v936 = vpop.f32.mrb[0].mxu0
      %v937 = vpop.f32.mrb[0].mxu0
      %v938 = vadd.f32 0.0, %v937
      %v939 = vpop.f32.mrb[0].mxu0
      %940 = vmatprep.mubr.bf16.mxu0 0
      %941 = vmatmul.mubr.bf16.gmra.mrb[0].mxu0 %v831
      %v942 = vpop.f32.mrb[0].mxu0
      %v943 = vadd.f32 0.0, %v942
      %v944 = vpop.f32.mrb[0].mxu0
      %v945 = vpop.f32.mrb[0].mxu0
      %v946 = vadd.f32 0.0, %v945
      %v947 = vpop.f32.mrb[0].mxu0
      %948 = vdwg.mxu0
      %v949 = vadd.f32 %v778, %v919
      %v950 = vadd.f32 %v779, %v922
      %v951 = vadd.f32 %v780, %v927
      %v952 = vadd.f32 %v781, %v930
      %v953 = vadd.f32 %v782, %v935
      %v954 = vadd.f32 %v783, %v938
      %v955 = vadd.f32 %v784, %v943
      %v956 = vadd.f32 %v785, %v946
      %s957 = scalar_lea.vmem %s169, 216
      %v958 = vld [vmem:[%s957] sm:$0xf]
      %v959 = vld [vmem:[%s957 + $0x8] sm:$0xf]
      %v960 = vld [vmem:[%s957 + $0x10] sm:$0xf]
      %v961 = vld [vmem:[%s957 + $0x18] sm:$0xf]
      %v962 = vld [vmem:[%s957 + $0x20] sm:$0xf]
      %v963 = vld [vmem:[%s957 + $0x28] sm:$0xf]
      %v964 = vld [vmem:[%s957 + $0x30] sm:$0xf]
      %v965 = vld [vmem:[%s957 + $0x38] sm:$0xf]
      %s966 = scalar_lea.vmem %s1, 256
      %v967 = vld [vmem:[%s966] sm:$0xf]
      %v968 = vld [vmem:[%s966 + $0x4] sm:$0xf]
      %v969 = vld [vmem:[%s966 + $0x8] sm:$0xf]
      %v970 = vld [vmem:[%s966 + $0xc] sm:$0xf]
      %v971 = vld [vmem:[%s966 + $0x10] sm:$0xf]
      %v972 = vld [vmem:[%s966 + $0x14] sm:$0xf]
      %v973 = vld [vmem:[%s966 + $0x18] sm:$0xf]
      %v974 = vld [vmem:[%s966 + $0x1c] sm:$0xf]
      %v975 = vld [vmem:[%s966 + $0x20] sm:$0xf]
      %v976 = vld [vmem:[%s966 + $0x24] sm:$0xf]
      %v977 = vld [vmem:[%s966 + $0x28] sm:$0xf]
      %v978 = vld [vmem:[%s966 + $0x2c] sm:$0xf]
      %v979 = vld [vmem:[%s966 + $0x30] sm:$0xf]
      %v980 = vld [vmem:[%s966 + $0x34] sm:$0xf]
      %v981 = vld [vmem:[%s966 + $0x38] sm:$0xf]
      %v982 = vld [vmem:[%s966 + $0x3c] sm:$0xf]
      %v991 = vunpack.c.l.b16 %v958
      %v992 = vunpack.c.l.b16 %v959
      %v993 = vunpack.c.l.b16 %v960
      %v994 = vunpack.c.l.b16 %v961
      %v995 = vunpack.c.l.b16 %v962
      %v996 = vunpack.c.l.b16 %v963
      %v997 = vunpack.c.l.b16 %v964
      %v998 = vunpack.c.l.b16 %v965
      %v999 = vpack.c.b16 %v992, %v991
      %v1000 = vpack.c.b16 %v994, %v993
      %v1001 = vpack.c.b16 %v996, %v995
      %v1002 = vpack.c.b16 %v998, %v997
      %v1023 = vunpack.c.l.b16 %v967
      %v1024 = vunpack.c.l.b16 %v968
      %v1025 = vunpack.c.l.b16 %v969
      %v1026 = vunpack.c.l.b16 %v970
      %v1027 = vunpack.c.l.b16 %v971
      %v1028 = vunpack.c.l.b16 %v972
      %v1029 = vunpack.c.l.b16 %v973
      %v1030 = vunpack.c.l.b16 %v974
      %v1031 = vunpack.c.l.b16 %v975
      %v1032 = vunpack.c.l.b16 %v976
      %v1033 = vunpack.c.l.b16 %v977
      %v1034 = vunpack.c.l.b16 %v978
      %v1035 = vunpack.c.l.b16 %v979
      %v1036 = vunpack.c.l.b16 %v980
      %v1037 = vunpack.c.l.b16 %v981
      %v1038 = vunpack.c.l.b16 %v982
      %v1039 = vpack.c.b16 %v1024, %v1023
      %v1040 = vpack.c.b16 %v1026, %v1025
      %v1041 = vpack.c.b16 %v1028, %v1027
      %v1042 = vpack.c.b16 %v1030, %v1029
      %v1043 = vpack.c.b16 %v1032, %v1031
      %v1044 = vpack.c.b16 %v1034, %v1033
      %v1045 = vpack.c.b16 %v1036, %v1035
      %v1046 = vpack.c.b16 %v1038, %v1037
      %1055 = vmatprep.subr.bf16.mxu0 0
      %1056 = vmatpush1.bf16.msra.mxu0 %v1039
      %1057 = vmatprep.subr.bf16.mxu0 0
      %1058 = vmatpush1.bf16.msra.mxu0 %v1040
      %1059 = vmatprep.subr.bf16.mxu0 0
      %1060 = vmatpush1.bf16.msra.mxu0 %v1041
      %1061 = vmatprep.subr.bf16.mxu0 0
      %1062 = vmatpush1.bf16.msra.mxu0 %v1042
      %1063 = vmatprep.subr.bf16.mxu0 0
      %1064 = vmatpush1.bf16.msra.mxu0 %v1043
      %1065 = vmatprep.subr.bf16.mxu0 0
      %1066 = vmatpush1.bf16.msra.mxu0 %v1044
      %1067 = vmatprep.subr.bf16.mxu0 0
      %1068 = vmatpush1.bf16.msra.mxu0 %v1045
      %1069 = vmatprep.subr.bf16.mxu0 0
      %1070 = vmatpush1.bf16.msra.mxu0 %v1046
      %1071 = vmatprep.subr.bf16.mxu0 0
      %1072 = vmatpush1.bf16.msra.mxu0 0
      %1073 = vmatprep.subr.bf16.mxu0 0
      %1074 = vmatpush1.bf16.msra.mxu0 0
      %1075 = vmatprep.subr.bf16.mxu0 0
      %1076 = vmatpush1.bf16.msra.mxu0 0
      %1077 = vmatprep.subr.bf16.mxu0 0
      %1078 = vmatpush1.bf16.msra.mxu0 0
      %1079 = vmatprep.subr.bf16.mxu0 0
      %1080 = vmatpush1.bf16.msra.mxu0 0
      %1081 = vmatprep.subr.bf16.mxu0 0
      %1082 = vmatpush1.bf16.msra.mxu0 0
      %1083 = vmatprep.subr.bf16.mxu0 0
      %1084 = vmatpush1.bf16.msra.mxu0 0
      %1085 = vmatprep.subr.bf16.mxu0 0
      %1086 = vmatpush1.bf16.msra.mxu0 0
      %1087 = vmatprep.mubr.bf16.mxu0 0
      %1088 = vmatmul.mubr.bf16.gmra.mrb[0].mxu0 %v999
      %v1089 = vpop.f32.mrb[0].mxu0
      %v1090 = vadd.f32 0.0, %v1089
      %v1091 = vpop.f32.mrb[0].mxu0
      %v1092 = vpop.f32.mrb[0].mxu0
      %v1093 = vadd.f32 0.0, %v1092
      %v1094 = vpop.f32.mrb[0].mxu0
      %1095 = vmatprep.mubr.bf16.mxu0 0
      %1096 = vmatmul.mubr.bf16.gmra.mrb[0].mxu0 %v1000
      %v1097 = vpop.f32.mrb[0].mxu0
      %v1098 = vadd.f32 0.0, %v1097
      %v1099 = vpop.f32.mrb[0].mxu0
      %v1100 = vpop.f32.mrb[0].mxu0
      %v1101 = vadd.f32 0.0, %v1100
      %v1102 = vpop.f32.mrb[0].mxu0
      %1103 = vmatprep.mubr.bf16.mxu0 0
      %1104 = vmatmul.mubr.bf16.gmra.mrb[0].mxu0 %v1001
      %v1105 = vpop.f32.mrb[0].mxu0
      %v1106 = vadd.f32 0.0, %v1105
      %v1107 = vpop.f32.mrb[0].mxu0
      %v1108 = vpop.f32.mrb[0].mxu0
      %v1109 = vadd.f32 0.0, %v1108
      %v1110 = vpop.f32.mrb[0].mxu0
      %1111 = vmatprep.mubr.bf16.mxu0 0
      %1112 = vmatmul.mubr.bf16.gmra.mrb[0].mxu0 %v1002
      %v1113 = vpop.f32.mrb[0].mxu0
      %v1114 = vadd.f32 0.0, %v1113
      %v1115 = vpop.f32.mrb[0].mxu0
      %v1116 = vpop.f32.mrb[0].mxu0
      %v1117 = vadd.f32 0.0, %v1116
      %v1118 = vpop.f32.mrb[0].mxu0
      %1119 = vdwg.mxu0
      %v1120 = vadd.f32 %v949, %v1090
      %v1121 = vadd.f32 %v950, %v1093
      %v1122 = vadd.f32 %v951, %v1098
      %v1123 = vadd.f32 %v952, %v1101
      %v1124 = vadd.f32 %v953, %v1106
      %v1125 = vadd.f32 %v954, %v1109
      %v1126 = vadd.f32 %v955, %v1114
      %v1127 = vadd.f32 %v956, %v1117
      %v1128 = vld [vmem:[%s786] sm:$0xf]
      %v1129 = vld [vmem:[%s786 + $0x4] sm:$0x1]
      %v1130 = vld [vmem:[%s786 + $0x8] sm:$0xf]
      %v1131 = vld [vmem:[%s786 + $0xc] sm:$0x1]
      %v1132 = vld [vmem:[%s786 + $0x10] sm:$0xf]
      %v1133 = vld [vmem:[%s786 + $0x14] sm:$0x1]
      %v1134 = vld [vmem:[%s786 + $0x18] sm:$0xf]
      %v1135 = vld [vmem:[%s786 + $0x1c] sm:$0x1]
      %v1136 = vld [vmem:[%s786 + $0x20] sm:$0xf]
      %v1137 = vld [vmem:[%s786 + $0x24] sm:$0x1]
      %v1138 = vld [vmem:[%s786 + $0x28] sm:$0xf]
      %v1139 = vld [vmem:[%s786 + $0x2c] sm:$0x1]
      %v1140 = vld [vmem:[%s786 + $0x30] sm:$0xf]
      %v1141 = vld [vmem:[%s786 + $0x34] sm:$0x1]
      %v1142 = vld [vmem:[%s786 + $0x38] sm:$0xf]
      %v1143 = vld [vmem:[%s786 + $0x3c] sm:$0x1]
      %v1145 = vshrl.u32 %v1128, 16
      %v1147 = vrot.slane %v1145, 4
      %v1148 = vshll.u32 %v1128, 16
      %v1150 = vrot.slane %v1148, 5
      %v1151 = vor.u32 %v1147, %v1150
      %v1152 = vrot.slane %v1151, 4
      %v1154 = vshll.u32 %v1129, 16
      %v1156 = vrot.slane %v1154, 5
      %v1157 = vsel %vm519, %v1152, %v1156
      %v1159 = vshrl.u32 %v1130, 16
      %v1161 = vrot.slane %v1159, 4
      %v1162 = vshll.u32 %v1130, 16
      %v1164 = vrot.slane %v1162, 5
      %v1165 = vor.u32 %v1161, %v1164
      %v1166 = vrot.slane %v1165, 4
      %v1168 = vshll.u32 %v1131, 16
      %v1170 = vrot.slane %v1168, 5
      %v1171 = vsel %vm519, %v1166, %v1170
      %v1173 = vshrl.u32 %v1132, 16
      %v1175 = vrot.slane %v1173, 4
      %v1176 = vshll.u32 %v1132, 16
      %v1178 = vrot.slane %v1176, 5
      %v1179 = vor.u32 %v1175, %v1178
      %v1180 = vrot.slane %v1179, 4
      %v1182 = vshll.u32 %v1133, 16
      %v1184 = vrot.slane %v1182, 5
      %v1185 = vsel %vm519, %v1180, %v1184
      %v1187 = vshrl.u32 %v1134, 16
      %v1189 = vrot.slane %v1187, 4
      %v1190 = vshll.u32 %v1134, 16
      %v1192 = vrot.slane %v1190, 5
      %v1193 = vor.u32 %v1189, %v1192
      %v1194 = vrot.slane %v1193, 4
      %v1196 = vshll.u32 %v1135, 16
      %v1198 = vrot.slane %v1196, 5
      %v1199 = vsel %vm519, %v1194, %v1198
      %v1201 = vshrl.u32 %v1136, 16
      %v1203 = vrot.slane %v1201, 4
      %v1204 = vshll.u32 %v1136, 16
      %v1206 = vrot.slane %v1204, 5
      %v1207 = vor.u32 %v1203, %v1206
      %v1208 = vrot.slane %v1207, 4
      %v1210 = vshll.u32 %v1137, 16
      %v1212 = vrot.slane %v1210, 5
      %v1213 = vsel %vm519, %v1208, %v1212
      %v1215 = vshrl.u32 %v1138, 16
      %v1217 = vrot.slane %v1215, 4
      %v1218 = vshll.u32 %v1138, 16
      %v1220 = vrot.slane %v1218, 5
      %v1221 = vor.u32 %v1217, %v1220
      %v1222 = vrot.slane %v1221, 4
      %v1224 = vshll.u32 %v1139, 16
      %v1226 = vrot.slane %v1224, 5
      %v1227 = vsel %vm519, %v1222, %v1226
      %v1229 = vshrl.u32 %v1140, 16
      %v1231 = vrot.slane %v1229, 4
      %v1232 = vshll.u32 %v1140, 16
      %v1234 = vrot.slane %v1232, 5
      %v1235 = vor.u32 %v1231, %v1234
      %v1236 = vrot.slane %v1235, 4
      %v1238 = vshll.u32 %v1141, 16
      %v1240 = vrot.slane %v1238, 5
      %v1241 = vsel %vm519, %v1236, %v1240
      %v1243 = vshrl.u32 %v1142, 16
      %v1245 = vrot.slane %v1243, 4
      %v1246 = vshll.u32 %v1142, 16
      %v1248 = vrot.slane %v1246, 5
      %v1249 = vor.u32 %v1245, %v1248
      %v1250 = vrot.slane %v1249, 4
      %v1252 = vshll.u32 %v1143, 16
      %v1254 = vrot.slane %v1252, 5
      %v1255 = vsel %vm519, %v1250, %v1254
      %s1256 = scalar_lea.vmem %s1, 320
      %v1257 = vld [vmem:[%s1256] sm:$0xf]
      %v1258 = vld [vmem:[%s1256 + $0x4] sm:$0xf]
      %v1259 = vld [vmem:[%s1256 + $0x8] sm:$0xf]
      %v1260 = vld [vmem:[%s1256 + $0xc] sm:$0xf]
      %v1261 = vld [vmem:[%s1256 + $0x10] sm:$0xf]
      %v1262 = vld [vmem:[%s1256 + $0x14] sm:$0xf]
      %v1263 = vld [vmem:[%s1256 + $0x18] sm:$0xf]
      %v1264 = vld [vmem:[%s1256 + $0x1c] sm:$0xf]
      %v1265 = vld [vmem:[%s1256 + $0x20] sm:$0xf]
      %v1266 = vld [vmem:[%s1256 + $0x24] sm:$0xf]
      %v1267 = vld [vmem:[%s1256 + $0x28] sm:$0xf]
      %v1268 = vld [vmem:[%s1256 + $0x2c] sm:$0xf]
      %v1269 = vld [vmem:[%s1256 + $0x30] sm:$0xf]
      %v1270 = vld [vmem:[%s1256 + $0x34] sm:$0xf]
      %v1271 = vld [vmem:[%s1256 + $0x38] sm:$0xf]
      %v1272 = vld [vmem:[%s1256 + $0x3c] sm:$0xf]
      %v1273 = vunpack.c.l.b16 %v1157
      %v1274 = vunpack.c.l.b16 %v1171
      %v1275 = vunpack.c.l.b16 %v1185
      %v1276 = vunpack.c.l.b16 %v1199
      %v1277 = vunpack.c.l.b16 %v1213
      %v1278 = vunpack.c.l.b16 %v1227
      %v1279 = vunpack.c.l.b16 %v1241
      %v1280 = vunpack.c.l.b16 %v1255
      %v1281 = vpack.c.b16 %v1274, %v1273
      %v1282 = vpack.c.b16 %v1276, %v1275
      %v1283 = vpack.c.b16 %v1278, %v1277
      %v1284 = vpack.c.b16 %v1280, %v1279
      %v1305 = vunpack.c.l.b16 %v1257
      %v1306 = vunpack.c.l.b16 %v1258
      %v1307 = vunpack.c.l.b16 %v1259
      %v1308 = vunpack.c.l.b16 %v1260
      %v1309 = vunpack.c.l.b16 %v1261
      %v1310 = vunpack.c.l.b16 %v1262
      %v1311 = vunpack.c.l.b16 %v1263
      %v1312 = vunpack.c.l.b16 %v1264
      %v1313 = vunpack.c.l.b16 %v1265
      %v1314 = vunpack.c.l.b16 %v1266
      %v1315 = vunpack.c.l.b16 %v1267
      %v1316 = vunpack.c.l.b16 %v1268
      %v1317 = vunpack.c.l.b16 %v1269
      %v1318 = vunpack.c.l.b16 %v1270
      %v1319 = vunpack.c.l.b16 %v1271
      %v1320 = vunpack.c.l.b16 %v1272
      %v1321 = vpack.c.b16 %v1306, %v1305
      %v1322 = vpack.c.b16 %v1308, %v1307
      %v1323 = vpack.c.b16 %v1310, %v1309
      %v1324 = vpack.c.b16 %v1312, %v1311
      %v1325 = vpack.c.b16 %v1314, %v1313
      %v1326 = vpack.c.b16 %v1316, %v1315
      %v1327 = vpack.c.b16 %v1318, %v1317
      %v1328 = vpack.c.b16 %v1320, %v1319
      %1337 = vmatprep.subr.bf16.mxu0 0
      %1338 = vmatpush1.bf16.msra.mxu0 %v1321
      %1339 = vmatprep.subr.bf16.mxu0 0
      %1340 = vmatpush1.bf16.msra.mxu0 %v1322
      %1341 = vmatprep.subr.bf16.mxu0 0
      %1342 = vmatpush1.bf16.msra.mxu0 %v1323
      %1343 = vmatprep.subr.bf16.mxu0 0
      %1344 = vmatpush1.bf16.msra.mxu0 %v1324
      %1345 = vmatprep.subr.bf16.mxu0 0
      %1346 = vmatpush1.bf16.msra.mxu0 %v1325
      %1347 = vmatprep.subr.bf16.mxu0 0
      %1348 = vmatpush1.bf16.msra.mxu0 %v1326
      %1349 = vmatprep.subr.bf16.mxu0 0
      %1350 = vmatpush1.bf16.msra.mxu0 %v1327
      %1351 = vmatprep.subr.bf16.mxu0 0
      %1352 = vmatpush1.bf16.msra.mxu0 %v1328
      %1353 = vmatprep.subr.bf16.mxu0 0
      %1354 = vmatpush1.bf16.msra.mxu0 0
      %1355 = vmatprep.subr.bf16.mxu0 0
      %1356 = vmatpush1.bf16.msra.mxu0 0
      %1357 = vmatprep.subr.bf16.mxu0 0
      %1358 = vmatpush1.bf16.msra.mxu0 0
      %1359 = vmatprep.subr.bf16.mxu0 0
      %1360 = vmatpush1.bf16.msra.mxu0 0
      %1361 = vmatprep.subr.bf16.mxu0 0
      %1362 = vmatpush1.bf16.msra.mxu0 0
      %1363 = vmatprep.subr.bf16.mxu0 0
      %1364 = vmatpush1.bf16.msra.mxu0 0
      %1365 = vmatprep.subr.bf16.mxu0 0
      %1366 = vmatpush1.bf16.msra.mxu0 0
      %1367 = vmatprep.subr.bf16.mxu0 0
      %1368 = vmatpush1.bf16.msra.mxu0 0
      %1369 = vmatprep.mubr.bf16.mxu0 0
      %1370 = vmatmul.mubr.bf16.gmra.mrb[0].mxu0 %v1281
      %v1371 = vpop.f32.mrb[0].mxu0
      %v1372 = vadd.f32 0.0, %v1371
      %v1373 = vpop.f32.mrb[0].mxu0
      %v1374 = vpop.f32.mrb[0].mxu0
      %v1375 = vadd.f32 0.0, %v1374
      %v1376 = vpop.f32.mrb[0].mxu0
      %1377 = vmatprep.mubr.bf16.mxu0 0
      %1378 = vmatmul.mubr.bf16.gmra.mrb[0].mxu0 %v1282
      %v1379 = vpop.f32.mrb[0].mxu0
      %v1380 = vadd.f32 0.0, %v1379
      %v1381 = vpop.f32.mrb[0].mxu0
      %v1382 = vpop.f32.mrb[0].mxu0
      %v1383 = vadd.f32 0.0, %v1382
      %v1384 = vpop.f32.mrb[0].mxu0
      %1385 = vmatprep.mubr.bf16.mxu0 0
      %1386 = vmatmul.mubr.bf16.gmra.mrb[0].mxu0 %v1283
      %v1387 = vpop.f32.mrb[0].mxu0
      %v1388 = vadd.f32 0.0, %v1387
      %v1389 = vpop.f32.mrb[0].mxu0
      %v1390 = vpop.f32.mrb[0].mxu0
      %v1391 = vadd.f32 0.0, %v1390
      %v1392 = vpop.f32.mrb[0].mxu0
      %1393 = vmatprep.mubr.bf16.mxu0 0
      %1394 = vmatmul.mubr.bf16.gmra.mrb[0].mxu0 %v1284
      %v1395 = vpop.f32.mrb[0].mxu0
      %v1396 = vadd.f32 0.0, %v1395
      %v1397 = vpop.f32.mrb[0].mxu0
      %v1398 = vpop.f32.mrb[0].mxu0
      %v1399 = vadd.f32 0.0, %v1398
      %v1400 = vpop.f32.mrb[0].mxu0
      %1401 = vdwg.mxu0
      %v1402 = vadd.f32 %v1120, %v1372
      %v1403 = vadd.f32 %v1121, %v1375
      %v1404 = vadd.f32 %v1122, %v1380
      %v1405 = vadd.f32 %v1123, %v1383
      %v1406 = vadd.f32 %v1124, %v1388
      %v1407 = vadd.f32 %v1125, %v1391
      %v1408 = vadd.f32 %v1126, %v1396
      %v1409 = vadd.f32 %v1127, %v1399
      %s1410 = scalar_lea.vmem %s169, 8
      %v1411 = vld [vmem:[%s1410] sm:$0xf]
      %v1412 = vld [vmem:[%s1410 + $0x8] sm:$0xf]
      %v1413 = vld [vmem:[%s1410 + $0x10] sm:$0xf]
      %v1414 = vld [vmem:[%s1410 + $0x18] sm:$0xf]
      %v1415 = vld [vmem:[%s1410 + $0x20] sm:$0xf]
      %v1416 = vld [vmem:[%s1410 + $0x28] sm:$0xf]
      %v1417 = vld [vmem:[%s1410 + $0x30] sm:$0xf]
      %v1418 = vld [vmem:[%s1410 + $0x38] sm:$0xf]
      %s1419 = scalar_lea.vmem %s1, 384
      %v1420 = vld [vmem:[%s1419] sm:$0xf]
      %v1421 = vld [vmem:[%s1419 + $0x4] sm:$0xf]
      %v1422 = vld [vmem:[%s1419 + $0x8] sm:$0xf]
      %v1423 = vld [vmem:[%s1419 + $0xc] sm:$0xf]
      %v1424 = vld [vmem:[%s1419 + $0x10] sm:$0xf]
      %v1425 = vld [vmem:[%s1419 + $0x14] sm:$0xf]
      %v1426 = vld [vmem:[%s1419 + $0x18] sm:$0xf]
      %v1427 = vld [vmem:[%s1419 + $0x1c] sm:$0xf]
      %v1428 = vld [vmem:[%s1419 + $0x20] sm:$0xf]
      %v1429 = vld [vmem:[%s1419 + $0x24] sm:$0xf]
      %v1430 = vld [vmem:[%s1419 + $0x28] sm:$0xf]
      %v1431 = vld [vmem:[%s1419 + $0x2c] sm:$0xf]
      %v1432 = vld [vmem:[%s1419 + $0x30] sm:$0xf]
      %v1433 = vld [vmem:[%s1419 + $0x34] sm:$0xf]
      %v1434 = vld [vmem:[%s1419 + $0x38] sm:$0xf]
      %v1435 = vld [vmem:[%s1419 + $0x3c] sm:$0xf]
      %v1444 = vunpack.c.l.b16 %v1411
      %v1445 = vunpack.c.l.b16 %v1412
      %v1446 = vunpack.c.l.b16 %v1413
      %v1447 = vunpack.c.l.b16 %v1414
      %v1448 = vunpack.c.l.b16 %v1415
      %v1449 = vunpack.c.l.b16 %v1416
      %v1450 = vunpack.c.l.b16 %v1417
      %v1451 = vunpack.c.l.b16 %v1418
      %v1452 = vpack.c.b16 %v1445, %v1444
      %v1453 = vpack.c.b16 %v1447, %v1446
      %v1454 = vpack.c.b16 %v1449, %v1448
      %v1455 = vpack.c.b16 %v1451, %v1450
      %v1476 = vunpack.c.l.b16 %v1420
      %v1477 = vunpack.c.l.b16 %v1421
      %v1478 = vunpack.c.l.b16 %v1422
      %v1479 = vunpack.c.l.b16 %v1423
      %v1480 = vunpack.c.l.b16 %v1424
      %v1481 = vunpack.c.l.b16 %v1425
      %v1482 = vunpack.c.l.b16 %v1426
      %v1483 = vunpack.c.l.b16 %v1427
      %v1484 = vunpack.c.l.b16 %v1428
      %v1485 = vunpack.c.l.b16 %v1429
      %v1486 = vunpack.c.l.b16 %v1430
      %v1487 = vunpack.c.l.b16 %v1431
      %v1488 = vunpack.c.l.b16 %v1432
      %v1489 = vunpack.c.l.b16 %v1433
      %v1490 = vunpack.c.l.b16 %v1434
      %v1491 = vunpack.c.l.b16 %v1435
      %v1492 = vpack.c.b16 %v1477, %v1476
      %v1493 = vpack.c.b16 %v1479, %v1478
      %v1494 = vpack.c.b16 %v1481, %v1480
      %v1495 = vpack.c.b16 %v1483, %v1482
      %v1496 = vpack.c.b16 %v1485, %v1484
      %v1497 = vpack.c.b16 %v1487, %v1486
      %v1498 = vpack.c.b16 %v1489, %v1488
      %v1499 = vpack.c.b16 %v1491, %v1490
      %1508 = vmatprep.subr.bf16.mxu0 0
      %1509 = vmatpush1.bf16.msra.mxu0 %v1492
      %1510 = vmatprep.subr.bf16.mxu0 0
      %1511 = vmatpush1.bf16.msra.mxu0 %v1493
      %1512 = vmatprep.subr.bf16.mxu0 0
      %1513 = vmatpush1.bf16.msra.mxu0 %v1494
      %1514 = vmatprep.subr.bf16.mxu0 0
      %1515 = vmatpush1.bf16.msra.mxu0 %v1495
      %1516 = vmatprep.subr.bf16.mxu0 0
      %1517 = vmatpush1.bf16.msra.mxu0 %v1496
      %1518 = vmatprep.subr.bf16.mxu0 0
      %1519 = vmatpush1.bf16.msra.mxu0 %v1497
      %1520 = vmatprep.subr.bf16.mxu0 0
      %1521 = vmatpush1.bf16.msra.mxu0 %v1498
      %1522 = vmatprep.subr.bf16.mxu0 0
      %1523 = vmatpush1.bf16.msra.mxu0 %v1499
      %1524 = vmatprep.subr.bf16.mxu0 0
      %1525 = vmatpush1.bf16.msra.mxu0 0
      %1526 = vmatprep.subr.bf16.mxu0 0
      %1527 = vmatpush1.bf16.msra.mxu0 0
      %1528 = vmatprep.subr.bf16.mxu0 0
      %1529 = vmatpush1.bf16.msra.mxu0 0
      %1530 = vmatprep.subr.bf16.mxu0 0
      %1531 = vmatpush1.bf16.msra.mxu0 0
      %1532 = vmatprep.subr.bf16.mxu0 0
      %1533 = vmatpush1.bf16.msra.mxu0 0
      %1534 = vmatprep.subr.bf16.mxu0 0
      %1535 = vmatpush1.bf16.msra.mxu0 0
      %1536 = vmatprep.subr.bf16.mxu0 0
      %1537 = vmatpush1.bf16.msra.mxu0 0
      %1538 = vmatprep.subr.bf16.mxu0 0
      %1539 = vmatpush1.bf16.msra.mxu0 0
      %1540 = vmatprep.mubr.bf16.mxu0 0
      %1541 = vmatmul.mubr.bf16.gmra.mrb[0].mxu0 %v1452
      %v1542 = vpop.f32.mrb[0].mxu0
      %v1543 = vadd.f32 0.0, %v1542
      %v1544 = vpop.f32.mrb[0].mxu0
      %v1545 = vpop.f32.mrb[0].mxu0
      %v1546 = vadd.f32 0.0, %v1545
      %v1547 = vpop.f32.mrb[0].mxu0
      %1548 = vmatprep.mubr.bf16.mxu0 0
      %1549 = vmatmul.mubr.bf16.gmra.mrb[0].mxu0 %v1453
      %v1550 = vpop.f32.mrb[0].mxu0
      %v1551 = vadd.f32 0.0, %v1550
      %v1552 = vpop.f32.mrb[0].mxu0
      %v1553 = vpop.f32.mrb[0].mxu0
      %v1554 = vadd.f32 0.0, %v1553
      %v1555 = vpop.f32.mrb[0].mxu0
      %1556 = vmatprep.mubr.bf16.mxu0 0
      %1557 = vmatmul.mubr.bf16.gmra.mrb[0].mxu0 %v1454
      %v1558 = vpop.f32.mrb[0].mxu0
      %v1559 = vadd.f32 0.0, %v1558
      %v1560 = vpop.f32.mrb[0].mxu0
      %v1561 = vpop.f32.mrb[0].mxu0
      %v1562 = vadd.f32 0.0, %v1561
      %v1563 = vpop.f32.mrb[0].mxu0
      %1564 = vmatprep.mubr.bf16.mxu0 0
      %1565 = vmatmul.mubr.bf16.gmra.mrb[0].mxu0 %v1455
      %v1566 = vpop.f32.mrb[0].mxu0
      %v1567 = vadd.f32 0.0, %v1566
      %v1568 = vpop.f32.mrb[0].mxu0
      %v1569 = vpop.f32.mrb[0].mxu0
      %v1570 = vadd.f32 0.0, %v1569
      %v1571 = vpop.f32.mrb[0].mxu0
      %1572 = vdwg.mxu0
      %v1573 = vadd.f32 %v1402, %v1543
      %v1574 = vadd.f32 %v1403, %v1546
      %v1575 = vadd.f32 %v1404, %v1551
      %v1576 = vadd.f32 %v1405, %v1554
      %v1577 = vadd.f32 %v1406, %v1559
      %v1578 = vadd.f32 %v1407, %v1562
      %v1579 = vadd.f32 %v1408, %v1567
      %v1580 = vadd.f32 %v1409, %v1570
      %s1581 = scalar_lea.vmem %s169, 80
      %v1582 = vld [vmem:[%s1581] sm:$0xf]
      %v1583 = vld [vmem:[%s1581 + $0x8] sm:$0xf]
      %v1584 = vld [vmem:[%s1581 + $0x10] sm:$0xf]
      %v1585 = vld [vmem:[%s1581 + $0x18] sm:$0xf]
      %v1586 = vld [vmem:[%s1581 + $0x20] sm:$0xf]
      %v1587 = vld [vmem:[%s1581 + $0x28] sm:$0xf]
      %v1588 = vld [vmem:[%s1581 + $0x30] sm:$0xf]
      %v1589 = vld [vmem:[%s1581 + $0x38] sm:$0xf]
      %s1590 = scalar_lea.vmem %s1, 448
      %v1591 = vld [vmem:[%s1590] sm:$0xf]
      %v1592 = vld [vmem:[%s1590 + $0x4] sm:$0xf]
      %v1593 = vld [vmem:[%s1590 + $0x8] sm:$0xf]
      %v1594 = vld [vmem:[%s1590 + $0xc] sm:$0xf]
      %v1595 = vld [vmem:[%s1590 + $0x10] sm:$0xf]
      %v1596 = vld [vmem:[%s1590 + $0x14] sm:$0xf]
      %v1597 = vld [vmem:[%s1590 + $0x18] sm:$0xf]
      %v1598 = vld [vmem:[%s1590 + $0x1c] sm:$0xf]
      %v1599 = vld [vmem:[%s1590 + $0x20] sm:$0xf]
      %v1600 = vld [vmem:[%s1590 + $0x24] sm:$0xf]
      %v1601 = vld [vmem:[%s1590 + $0x28] sm:$0xf]
      %v1602 = vld [vmem:[%s1590 + $0x2c] sm:$0xf]
      %v1603 = vld [vmem:[%s1590 + $0x30] sm:$0xf]
      %v1604 = vld [vmem:[%s1590 + $0x34] sm:$0xf]
      %v1605 = vld [vmem:[%s1590 + $0x38] sm:$0xf]
      %v1606 = vld [vmem:[%s1590 + $0x3c] sm:$0xf]
      %v1615 = vunpack.c.l.b16 %v1582
      %v1616 = vunpack.c.l.b16 %v1583
      %v1617 = vunpack.c.l.b16 %v1584
      %v1618 = vunpack.c.l.b16 %v1585
      %v1619 = vunpack.c.l.b16 %v1586
      %v1620 = vunpack.c.l.b16 %v1587
      %v1621 = vunpack.c.l.b16 %v1588
      %v1622 = vunpack.c.l.b16 %v1589
      %v1623 = vpack.c.b16 %v1616, %v1615
      %v1624 = vpack.c.b16 %v1618, %v1617
      %v1625 = vpack.c.b16 %v1620, %v1619
      %v1626 = vpack.c.b16 %v1622, %v1621
      %v1647 = vunpack.c.l.b16 %v1591
      %v1648 = vunpack.c.l.b16 %v1592
      %v1649 = vunpack.c.l.b16 %v1593
      %v1650 = vunpack.c.l.b16 %v1594
      %v1651 = vunpack.c.l.b16 %v1595
      %v1652 = vunpack.c.l.b16 %v1596
      %v1653 = vunpack.c.l.b16 %v1597
      %v1654 = vunpack.c.l.b16 %v1598
      %v1655 = vunpack.c.l.b16 %v1599
      %v1656 = vunpack.c.l.b16 %v1600
      %v1657 = vunpack.c.l.b16 %v1601
      %v1658 = vunpack.c.l.b16 %v1602
      %v1659 = vunpack.c.l.b16 %v1603
      %v1660 = vunpack.c.l.b16 %v1604
      %v1661 = vunpack.c.l.b16 %v1605
      %v1662 = vunpack.c.l.b16 %v1606
      %v1663 = vpack.c.b16 %v1648, %v1647
      %v1664 = vpack.c.b16 %v1650, %v1649
      %v1665 = vpack.c.b16 %v1652, %v1651
      %v1666 = vpack.c.b16 %v1654, %v1653
      %v1667 = vpack.c.b16 %v1656, %v1655
      %v1668 = vpack.c.b16 %v1658, %v1657
      %v1669 = vpack.c.b16 %v1660, %v1659
      %v1670 = vpack.c.b16 %v1662, %v1661
      %1679 = vmatprep.subr.bf16.mxu0 0
      %1680 = vmatpush1.bf16.msra.mxu0 %v1663
      %1681 = vmatprep.subr.bf16.mxu0 0
      %1682 = vmatpush1.bf16.msra.mxu0 %v1664
      %1683 = vmatprep.subr.bf16.mxu0 0
      %1684 = vmatpush1.bf16.msra.mxu0 %v1665
      %1685 = vmatprep.subr.bf16.mxu0 0
      %1686 = vmatpush1.bf16.msra.mxu0 %v1666
      %1687 = vmatprep.subr.bf16.mxu0 0
      %1688 = vmatpush1.bf16.msra.mxu0 %v1667
      %1689 = vmatprep.subr.bf16.mxu0 0
      %1690 = vmatpush1.bf16.msra.mxu0 %v1668
      %1691 = vmatprep.subr.bf16.mxu0 0
      %1692 = vmatpush1.bf16.msra.mxu0 %v1669
      %1693 = vmatprep.subr.bf16.mxu0 0
      %1694 = vmatpush1.bf16.msra.mxu0 %v1670
      %1695 = vmatprep.subr.bf16.mxu0 0
      %1696 = vmatpush1.bf16.msra.mxu0 0
      %1697 = vmatprep.subr.bf16.mxu0 0
      %1698 = vmatpush1.bf16.msra.mxu0 0
      %1699 = vmatprep.subr.bf16.mxu0 0
      %1700 = vmatpush1.bf16.msra.mxu0 0
      %1701 = vmatprep.subr.bf16.mxu0 0
      %1702 = vmatpush1.bf16.msra.mxu0 0
      %1703 = vmatprep.subr.bf16.mxu0 0
      %1704 = vmatpush1.bf16.msra.mxu0 0
      %1705 = vmatprep.subr.bf16.mxu0 0
      %1706 = vmatpush1.bf16.msra.mxu0 0
      %1707 = vmatprep.subr.bf16.mxu0 0
      %1708 = vmatpush1.bf16.msra.mxu0 0
      %1709 = vmatprep.subr.bf16.mxu0 0
      %1710 = vmatpush1.bf16.msra.mxu0 0
      %1711 = vmatprep.mubr.bf16.mxu0 0
      %1712 = vmatmul.mubr.bf16.gmra.mrb[0].mxu0 %v1623
      %v1713 = vpop.f32.mrb[0].mxu0
      %v1714 = vadd.f32 0.0, %v1713
      %v1715 = vpop.f32.mrb[0].mxu0
      %v1716 = vpop.f32.mrb[0].mxu0
      %v1717 = vadd.f32 0.0, %v1716
      %v1718 = vpop.f32.mrb[0].mxu0
      %1719 = vmatprep.mubr.bf16.mxu0 0
      %1720 = vmatmul.mubr.bf16.gmra.mrb[0].mxu0 %v1624
      %v1721 = vpop.f32.mrb[0].mxu0
      %v1722 = vadd.f32 0.0, %v1721
      %v1723 = vpop.f32.mrb[0].mxu0
      %v1724 = vpop.f32.mrb[0].mxu0
      %v1725 = vadd.f32 0.0, %v1724
      %v1726 = vpop.f32.mrb[0].mxu0
      %1727 = vmatprep.mubr.bf16.mxu0 0
      %1728 = vmatmul.mubr.bf16.gmra.mrb[0].mxu0 %v1625
      %v1729 = vpop.f32.mrb[0].mxu0
      %v1730 = vadd.f32 0.0, %v1729
      %v1731 = vpop.f32.mrb[0].mxu0
      %v1732 = vpop.f32.mrb[0].mxu0
      %v1733 = vadd.f32 0.0, %v1732
      %v1734 = vpop.f32.mrb[0].mxu0
      %1735 = vmatprep.mubr.bf16.mxu0 0
      %1736 = vmatmul.mubr.bf16.gmra.mrb[0].mxu0 %v1626
      %v1737 = vpop.f32.mrb[0].mxu0
      %v1738 = vadd.f32 0.0, %v1737
      %v1739 = vpop.f32.mrb[0].mxu0
      %v1740 = vpop.f32.mrb[0].mxu0
      %v1741 = vadd.f32 0.0, %v1740
      %v1742 = vpop.f32.mrb[0].mxu0
      %1743 = vdwg.mxu0
      %v1744 = vadd.f32 %v1573, %v1714
      %v1745 = vadd.f32 %v1574, %v1717
      %v1746 = vadd.f32 %v1575, %v1722
      %v1747 = vadd.f32 %v1576, %v1725
      %v1748 = vadd.f32 %v1577, %v1730
      %v1749 = vadd.f32 %v1578, %v1733
      %v1750 = vadd.f32 %v1579, %v1738
      %v1751 = vadd.f32 %v1580, %v1741
      %v1752 = vld [vmem:[%s1410] sm:$0xf]
      %v1753 = vld [vmem:[%s1410 + $0x4] sm:$0x1]
      %v1754 = vld [vmem:[%s1410 + $0x8] sm:$0xf]
      %v1755 = vld [vmem:[%s1410 + $0xc] sm:$0x1]
      %v1756 = vld [vmem:[%s1410 + $0x10] sm:$0xf]
      %v1757 = vld [vmem:[%s1410 + $0x14] sm:$0x1]
      %v1758 = vld [vmem:[%s1410 + $0x18] sm:$0xf]
      %v1759 = vld [vmem:[%s1410 + $0x1c] sm:$0x1]
      %v1760 = vld [vmem:[%s1410 + $0x20] sm:$0xf]
      %v1761 = vld [vmem:[%s1410 + $0x24] sm:$0x1]
      %v1762 = vld [vmem:[%s1410 + $0x28] sm:$0xf]
      %v1763 = vld [vmem:[%s1410 + $0x2c] sm:$0x1]
      %v1764 = vld [vmem:[%s1410 + $0x30] sm:$0xf]
      %v1765 = vld [vmem:[%s1410 + $0x34] sm:$0x1]
      %v1766 = vld [vmem:[%s1410 + $0x38] sm:$0xf]
      %v1767 = vld [vmem:[%s1410 + $0x3c] sm:$0x1]
      %v1769 = vshrl.u32 %v1752, 16
      %v1771 = vrot.slane %v1769, 4
      %v1772 = vshll.u32 %v1752, 16
      %v1774 = vrot.slane %v1772, 5
      %v1775 = vor.u32 %v1771, %v1774
      %v1776 = vrot.slane %v1775, 4
      %v1778 = vshll.u32 %v1753, 16
      %v1780 = vrot.slane %v1778, 5
      %v1781 = vsel %vm519, %v1776, %v1780
      %v1783 = vshrl.u32 %v1754, 16
      %v1785 = vrot.slane %v1783, 4
      %v1786 = vshll.u32 %v1754, 16
      %v1788 = vrot.slane %v1786, 5
      %v1789 = vor.u32 %v1785, %v1788
      %v1790 = vrot.slane %v1789, 4
      %v1792 = vshll.u32 %v1755, 16
      %v1794 = vrot.slane %v1792, 5
      %v1795 = vsel %vm519, %v1790, %v1794
      %v1797 = vshrl.u32 %v1756, 16
      %v1799 = vrot.slane %v1797, 4
      %v1800 = vshll.u32 %v1756, 16
      %v1802 = vrot.slane %v1800, 5
      %v1803 = vor.u32 %v1799, %v1802
      %v1804 = vrot.slane %v1803, 4
      %v1806 = vshll.u32 %v1757, 16
      %v1808 = vrot.slane %v1806, 5
      %v1809 = vsel %vm519, %v1804, %v1808
      %v1811 = vshrl.u32 %v1758, 16
      %v1813 = vrot.slane %v1811, 4
      %v1814 = vshll.u32 %v1758, 16
      %v1816 = vrot.slane %v1814, 5
      %v1817 = vor.u32 %v1813, %v1816
      %v1818 = vrot.slane %v1817, 4
      %v1820 = vshll.u32 %v1759, 16
      %v1822 = vrot.slane %v1820, 5
      %v1823 = vsel %vm519, %v1818, %v1822
      %v1825 = vshrl.u32 %v1760, 16
      %v1827 = vrot.slane %v1825, 4
      %v1828 = vshll.u32 %v1760, 16
      %v1830 = vrot.slane %v1828, 5
      %v1831 = vor.u32 %v1827, %v1830
      %v1832 = vrot.slane %v1831, 4
      %v1834 = vshll.u32 %v1761, 16
      %v1836 = vrot.slane %v1834, 5
      %v1837 = vsel %vm519, %v1832, %v1836
      %v1839 = vshrl.u32 %v1762, 16
      %v1841 = vrot.slane %v1839, 4
      %v1842 = vshll.u32 %v1762, 16
      %v1844 = vrot.slane %v1842, 5
      %v1845 = vor.u32 %v1841, %v1844
      %v1846 = vrot.slane %v1845, 4
      %v1848 = vshll.u32 %v1763, 16
      %v1850 = vrot.slane %v1848, 5
      %v1851 = vsel %vm519, %v1846, %v1850
      %v1853 = vshrl.u32 %v1764, 16
      %v1855 = vrot.slane %v1853, 4
      %v1856 = vshll.u32 %v1764, 16
      %v1858 = vrot.slane %v1856, 5
      %v1859 = vor.u32 %v1855, %v1858
      %v1860 = vrot.slane %v1859, 4
      %v1862 = vshll.u32 %v1765, 16
      %v1864 = vrot.slane %v1862, 5
      %v1865 = vsel %vm519, %v1860, %v1864
      %v1867 = vshrl.u32 %v1766, 16
      %v1869 = vrot.slane %v1867, 4
      %v1870 = vshll.u32 %v1766, 16
      %v1872 = vrot.slane %v1870, 5
      %v1873 = vor.u32 %v1869, %v1872
      %v1874 = vrot.slane %v1873, 4
      %v1876 = vshll.u32 %v1767, 16
      %v1878 = vrot.slane %v1876, 5
      %v1879 = vsel %vm519, %v1874, %v1878
      %s1880 = scalar_lea.vmem %s1, 512
      %v1881 = vld [vmem:[%s1880] sm:$0xf]
      %v1882 = vld [vmem:[%s1880 + $0x4] sm:$0xf]
      %v1883 = vld [vmem:[%s1880 + $0x8] sm:$0xf]
      %v1884 = vld [vmem:[%s1880 + $0xc] sm:$0xf]
      %v1885 = vld [vmem:[%s1880 + $0x10] sm:$0xf]
      %v1886 = vld [vmem:[%s1880 + $0x14] sm:$0xf]
      %v1887 = vld [vmem:[%s1880 + $0x18] sm:$0xf]
      %v1888 = vld [vmem:[%s1880 + $0x1c] sm:$0xf]
      %v1889 = vld [vmem:[%s1880 + $0x20] sm:$0xf]
      %v1890 = vld [vmem:[%s1880 + $0x24] sm:$0xf]
      %v1891 = vld [vmem:[%s1880 + $0x28] sm:$0xf]
      %v1892 = vld [vmem:[%s1880 + $0x2c] sm:$0xf]
      %v1893 = vld [vmem:[%s1880 + $0x30] sm:$0xf]
      %v1894 = vld [vmem:[%s1880 + $0x34] sm:$0xf]
      %v1895 = vld [vmem:[%s1880 + $0x38] sm:$0xf]
      %v1896 = vld [vmem:[%s1880 + $0x3c] sm:$0xf]
      %v1897 = vunpack.c.l.b16 %v1781
      %v1898 = vunpack.c.l.b16 %v1795
      %v1899 = vunpack.c.l.b16 %v1809
      %v1900 = vunpack.c.l.b16 %v1823
      %v1901 = vunpack.c.l.b16 %v1837
      %v1902 = vunpack.c.l.b16 %v1851
      %v1903 = vunpack.c.l.b16 %v1865
      %v1904 = vunpack.c.l.b16 %v1879
      %v1905 = vpack.c.b16 %v1898, %v1897
      %v1906 = vpack.c.b16 %v1900, %v1899
      %v1907 = vpack.c.b16 %v1902, %v1901
      %v1908 = vpack.c.b16 %v1904, %v1903
      %v1929 = vunpack.c.l.b16 %v1881
      %v1930 = vunpack.c.l.b16 %v1882
      %v1931 = vunpack.c.l.b16 %v1883
      %v1932 = vunpack.c.l.b16 %v1884
      %v1933 = vunpack.c.l.b16 %v1885
      %v1934 = vunpack.c.l.b16 %v1886
      %v1935 = vunpack.c.l.b16 %v1887
      %v1936 = vunpack.c.l.b16 %v1888
      %v1937 = vunpack.c.l.b16 %v1889
      %v1938 = vunpack.c.l.b16 %v1890
      %v1939 = vunpack.c.l.b16 %v1891
      %v1940 = vunpack.c.l.b16 %v1892
      %v1941 = vunpack.c.l.b16 %v1893
      %v1942 = vunpack.c.l.b16 %v1894
      %v1943 = vunpack.c.l.b16 %v1895
      %v1944 = vunpack.c.l.b16 %v1896
      %v1945 = vpack.c.b16 %v1930, %v1929
      %v1946 = vpack.c.b16 %v1932, %v1931
      %v1947 = vpack.c.b16 %v1934, %v1933
      %v1948 = vpack.c.b16 %v1936, %v1935
      %v1949 = vpack.c.b16 %v1938, %v1937
      %v1950 = vpack.c.b16 %v1940, %v1939
      %v1951 = vpack.c.b16 %v1942, %v1941
      %v1952 = vpack.c.b16 %v1944, %v1943
      %1961 = vmatprep.subr.bf16.mxu0 0
      %1962 = vmatpush1.bf16.msra.mxu0 %v1945
      %1963 = vmatprep.subr.bf16.mxu0 0
      %1964 = vmatpush1.bf16.msra.mxu0 %v1946
      %1965 = vmatprep.subr.bf16.mxu0 0
      %1966 = vmatpush1.bf16.msra.mxu0 %v1947
      %1967 = vmatprep.subr.bf16.mxu0 0
      %1968 = vmatpush1.bf16.msra.mxu0 %v1948
      %1969 = vmatprep.subr.bf16.mxu0 0
      %1970 = vmatpush1.bf16.msra.mxu0 %v1949
      %1971 = vmatprep.subr.bf16.mxu0 0
      %1972 = vmatpush1.bf16.msra.mxu0 %v1950
      %1973 = vmatprep.subr.bf16.mxu0 0
      %1974 = vmatpush1.bf16.msra.mxu0 %v1951
      %1975 = vmatprep.subr.bf16.mxu0 0
      %1976 = vmatpush1.bf16.msra.mxu0 %v1952
      %1977 = vmatprep.subr.bf16.mxu0 0
      %1978 = vmatpush1.bf16.msra.mxu0 0
      %1979 = vmatprep.subr.bf16.mxu0 0
      %1980 = vmatpush1.bf16.msra.mxu0 0
      %1981 = vmatprep.subr.bf16.mxu0 0
      %1982 = vmatpush1.bf16.msra.mxu0 0
      %1983 = vmatprep.subr.bf16.mxu0 0
      %1984 = vmatpush1.bf16.msra.mxu0 0
      %1985 = vmatprep.subr.bf16.mxu0 0
      %1986 = vmatpush1.bf16.msra.mxu0 0
      %1987 = vmatprep.subr.bf16.mxu0 0
      %1988 = vmatpush1.bf16.msra.mxu0 0
      %1989 = vmatprep.subr.bf16.mxu0 0
      %1990 = vmatpush1.bf16.msra.mxu0 0
      %1991 = vmatprep.subr.bf16.mxu0 0
      %1992 = vmatpush1.bf16.msra.mxu0 0
      %1993 = vmatprep.mubr.bf16.mxu0 0
      %1994 = vmatmul.mubr.bf16.gmra.mrb[0].mxu0 %v1905
      %v1995 = vpop.f32.mrb[0].mxu0
      %v1996 = vadd.f32 0.0, %v1995
      %v1997 = vpop.f32.mrb[0].mxu0
      %v1998 = vpop.f32.mrb[0].mxu0
      %v1999 = vadd.f32 0.0, %v1998
      %v2000 = vpop.f32.mrb[0].mxu0
      %2001 = vmatprep.mubr.bf16.mxu0 0
      %2002 = vmatmul.mubr.bf16.gmra.mrb[0].mxu0 %v1906
      %v2003 = vpop.f32.mrb[0].mxu0
      %v2004 = vadd.f32 0.0, %v2003
      %v2005 = vpop.f32.mrb[0].mxu0
      %v2006 = vpop.f32.mrb[0].mxu0
      %v2007 = vadd.f32 0.0, %v2006
      %v2008 = vpop.f32.mrb[0].mxu0
      %2009 = vmatprep.mubr.bf16.mxu0 0
      %2010 = vmatmul.mubr.bf16.gmra.mrb[0].mxu0 %v1907
      %v2011 = vpop.f32.mrb[0].mxu0
      %v2012 = vadd.f32 0.0, %v2011
      %v2013 = vpop.f32.mrb[0].mxu0
      %v2014 = vpop.f32.mrb[0].mxu0
      %v2015 = vadd.f32 0.0, %v2014
      %v2016 = vpop.f32.mrb[0].mxu0
      %2017 = vmatprep.mubr.bf16.mxu0 0
      %2018 = vmatmul.mubr.bf16.gmra.mrb[0].mxu0 %v1908
      %v2019 = vpop.f32.mrb[0].mxu0
      %v2020 = vadd.f32 0.0, %v2019
      %v2021 = vpop.f32.mrb[0].mxu0
      %v2022 = vpop.f32.mrb[0].mxu0
      %v2023 = vadd.f32 0.0, %v2022
      %v2024 = vpop.f32.mrb[0].mxu0
      %2025 = vdwg.mxu0
      %v2026 = vadd.f32 %v1744, %v1996
      %v2027 = vadd.f32 %v1745, %v1999
      %v2028 = vadd.f32 %v1746, %v2004
      %v2029 = vadd.f32 %v1747, %v2007
      %v2030 = vadd.f32 %v1748, %v2012
      %v2031 = vadd.f32 %v1749, %v2015
      %v2032 = vadd.f32 %v1750, %v2020
      %v2033 = vadd.f32 %v1751, %v2023
      %v2034 = vld [vmem:[%s2] sm:$0x1]
      %v2036 = vlaneseq
      %v2037 = vshrl.u32 %v2036, 7
      %v2038 = vsub.s32 0, %v2037
      %v2039 = vrot.slane %v2034, %v2038
      %v2041 = vadd.f32 %v2026, %v2039
      %v2042 = vadd.f32 %v2027, %v2039
      %v2043 = vadd.f32 %v2028, %v2039
      %v2044 = vadd.f32 %v2029, %v2039
      %v2045 = vadd.f32 %v2030, %v2039
      %v2046 = vadd.f32 %v2031, %v2039
      %v2047 = vadd.f32 %v2032, %v2039
      %v2048 = vadd.f32 %v2033, %v2039
      %v2049 = vmax.f32 %v2041, 0.0
      %v2050 = vmax.f32 %v2042, 0.0
      %v2051 = vmax.f32 %v2043, 0.0
      %v2052 = vmax.f32 %v2044, 0.0
      %v2053 = vmax.f32 %v2045, 0.0
      %v2054 = vmax.f32 %v2046, 0.0
      %v2055 = vmax.f32 %v2047, 0.0
      %v2056 = vmax.f32 %v2048, 0.0
      %2057 = vst [vmem:[%s175] sm:$0xf] 0
      %2058 = vst [vmem:[%s175 + $0x4] sm:$0x1] 0
      %2059 = vst [vmem:[%s175 + $0x8] sm:$0xf] 0
      %2060 = vst [vmem:[%s175 + $0xc] sm:$0x1] 0
      %2061 = vst [vmem:[%s175 + $0x10] sm:$0xf] 0
      %2062 = vst [vmem:[%s175 + $0x14] sm:$0x1] 0
      %2063 = vst [vmem:[%s175 + $0x18] sm:$0xf] 0
      %2064 = vst [vmem:[%s175 + $0x1c] sm:$0x1] 0
      %2065 = vst [vmem:[%s175 + $0x20] sm:$0xf] 0
      %2066 = vst [vmem:[%s175 + $0x24] sm:$0x1] 0
      %2067 = vst [vmem:[%s175 + $0x28] sm:$0xf] 0
      %2068 = vst [vmem:[%s175 + $0x2c] sm:$0x1] 0
      %2069 = vst [vmem:[%s175 + $0x30] sm:$0xf] 0
      %2070 = vst [vmem:[%s175 + $0x34] sm:$0x1] 0
      %2071 = vst [vmem:[%s175 + $0x38] sm:$0xf] 0
      %2072 = vst [vmem:[%s175 + $0x3c] sm:$0x1] 0
      %2073 = vst [vmem:[%s175 + $0x40] sm:$0xf] 0
      %2074 = vst [vmem:[%s175 + $0x44] sm:$0x1] 0
      %2075 = vst [vmem:[%s175 + $0x48] sm:$0xf] 0
      %2076 = vst [vmem:[%s175 + $0x4c] sm:$0x1] 0
      %v2077 = vpack.c.bf16 %v2050, %v2049
      %v2078 = vpack.c.bf16 %v2052, %v2051
      %v2079 = vpack.c.bf16 %v2054, %v2053
      %v2080 = vpack.c.bf16 %v2056, %v2055
      %v2085 = vunpack.c.l.b16 %v2077
      %v2086 = vunpack.c.h.b16 %v2077
      %v2087 = vunpack.c.l.b16 %v2078
      %v2088 = vunpack.c.h.b16 %v2078
      %v2089 = vunpack.c.l.b16 %v2079
      %v2090 = vunpack.c.h.b16 %v2079
      %v2091 = vunpack.c.l.b16 %v2080
      %v2092 = vunpack.c.h.b16 %v2080
      %v2093 = vpack.c.b16 %v2085, %v2085
      %v2094 = vpack.c.b16 %v2086, %v2086
      %v2095 = vpack.c.b16 %v2087, %v2087
      %v2096 = vpack.c.b16 %v2088, %v2088
      %v2097 = vpack.c.b16 %v2089, %v2089
      %v2098 = vpack.c.b16 %v2090, %v2090
      %v2099 = vpack.c.b16 %v2091, %v2091
      %v2100 = vpack.c.b16 %v2092, %v2092
      %v2102 = vshrl.u32 %v2093, 16
      %v2104 = vrot.slane %v2102, 7
      %v2105 = vshll.u32 %v2093, 16
      %v2107 = vor.u32 %v2104, %v2105
      %v2108 = vrot.slane %v2104, 4
      %v2110 = vshrl.u32 %v2094, 16
      %v2112 = vrot.slane %v2110, 7
      %v2113 = vshll.u32 %v2094, 16
      %v2115 = vor.u32 %v2112, %v2113
      %v2116 = vrot.slane %v2112, 4
      %v2118 = vshrl.u32 %v2095, 16
      %v2120 = vrot.slane %v2118, 7
      %v2121 = vshll.u32 %v2095, 16
      %v2123 = vor.u32 %v2120, %v2121
      %v2124 = vrot.slane %v2120, 4
      %v2126 = vshrl.u32 %v2096, 16
      %v2128 = vrot.slane %v2126, 7
      %v2129 = vshll.u32 %v2096, 16
      %v2131 = vor.u32 %v2128, %v2129
      %v2132 = vrot.slane %v2128, 4
      %v2134 = vshrl.u32 %v2097, 16
      %v2136 = vrot.slane %v2134, 7
      %v2137 = vshll.u32 %v2097, 16
      %v2139 = vor.u32 %v2136, %v2137
      %v2140 = vrot.slane %v2136, 4
      %v2142 = vshrl.u32 %v2098, 16
      %v2144 = vrot.slane %v2142, 7
      %v2145 = vshll.u32 %v2098, 16
      %v2147 = vor.u32 %v2144, %v2145
      %v2148 = vrot.slane %v2144, 4
      %v2150 = vshrl.u32 %v2099, 16
      %v2152 = vrot.slane %v2150, 7
      %v2153 = vshll.u32 %v2099, 16
      %v2155 = vor.u32 %v2152, %v2153
      %v2156 = vrot.slane %v2152, 4
      %v2158 = vshrl.u32 %v2100, 16
      %v2160 = vrot.slane %v2158, 7
      %v2161 = vshll.u32 %v2100, 16
      %v2163 = vor.u32 %v2160, %v2161
      %v2164 = vrot.slane %v2160, 4
      %s2181 = scalar_lea.vmem %s175, 8
      %vm2182 = vcmask 1043456
      %vm2183 = vsmask.f32 7938
      %vm2184 = vmand %vm2182, %vm2183
      %v2185 = vld [vmem:[%s2181] sm:$0xf]
      %v2186 = vsel %vm2184, %v2107, %v2185
      %2187 = vst [vmem:[%s2181] sm:$0xf] %v2186
      %vm2188 = vcmask 1040384
      %vm2189 = vsmask.f32 256
      %vm2190 = vmand %vm2188, %vm2189
      %v2191 = vld [vmem:[%s2181 + $0x4] sm:$0x1]
      %v2192 = vsel %vm2190, %v2108, %v2191
      %2193 = vst [vmem:[%s2181 + $0x4] sm:$0x1] %v2192
      %v2194 = vld [vmem:[%s2181 + $0x8] sm:$0xf]
      %v2195 = vsel %vm2184, %v2115, %v2194
      %2196 = vst [vmem:[%s2181 + $0x8] sm:$0xf] %v2195
      %v2197 = vld [vmem:[%s2181 + $0xc] sm:$0x1]
      %v2198 = vsel %vm2190, %v2116, %v2197
      %2199 = vst [vmem:[%s2181 + $0xc] sm:$0x1] %v2198
      %v2200 = vld [vmem:[%s2181 + $0x10] sm:$0xf]
      %v2201 = vsel %vm2184, %v2123, %v2200
      %2202 = vst [vmem:[%s2181 + $0x10] sm:$0xf] %v2201
      %v2203 = vld [vmem:[%s2181 + $0x14] sm:$0x1]
      %v2204 = vsel %vm2190, %v2124, %v2203
      %2205 = vst [vmem:[%s2181 + $0x14] sm:$0x1] %v2204
      %v2206 = vld [vmem:[%s2181 + $0x18] sm:$0xf]
      %v2207 = vsel %vm2184, %v2131, %v2206
      %2208 = vst [vmem:[%s2181 + $0x18] sm:$0xf] %v2207
      %v2209 = vld [vmem:[%s2181 + $0x1c] sm:$0x1]
      %v2210 = vsel %vm2190, %v2132, %v2209
      %2211 = vst [vmem:[%s2181 + $0x1c] sm:$0x1] %v2210
      %v2212 = vld [vmem:[%s2181 + $0x20] sm:$0xf]
      %v2213 = vsel %vm2184, %v2139, %v2212
      %2214 = vst [vmem:[%s2181 + $0x20] sm:$0xf] %v2213
      %v2215 = vld [vmem:[%s2181 + $0x24] sm:$0x1]
      %v2216 = vsel %vm2190, %v2140, %v2215
      %2217 = vst [vmem:[%s2181 + $0x24] sm:$0x1] %v2216
      %v2218 = vld [vmem:[%s2181 + $0x28] sm:$0xf]
      %v2219 = vsel %vm2184, %v2147, %v2218
      %2220 = vst [vmem:[%s2181 + $0x28] sm:$0xf] %v2219
      %v2221 = vld [vmem:[%s2181 + $0x2c] sm:$0x1]
      %v2222 = vsel %vm2190, %v2148, %v2221
      %2223 = vst [vmem:[%s2181 + $0x2c] sm:$0x1] %v2222
      %v2224 = vld [vmem:[%s2181 + $0x30] sm:$0xf]
      %v2225 = vsel %vm2184, %v2155, %v2224
      %2226 = vst [vmem:[%s2181 + $0x30] sm:$0xf] %v2225
      %v2227 = vld [vmem:[%s2181 + $0x34] sm:$0x1]
      %v2228 = vsel %vm2190, %v2156, %v2227
      %2229 = vst [vmem:[%s2181 + $0x34] sm:$0x1] %v2228
      %v2230 = vld [vmem:[%s2181 + $0x38] sm:$0xf]
      %v2231 = vsel %vm2184, %v2163, %v2230
      %2232 = vst [vmem:[%s2181 + $0x38] sm:$0xf] %v2231
      %v2233 = vld [vmem:[%s2181 + $0x3c] sm:$0x1]
      %v2234 = vsel %vm2190, %v2164, %v2233
      %2235 = vst [vmem:[%s2181 + $0x3c] sm:$0x1] %v2234
      %p2236 = scmp.lt.s32.totalorder %s14, 1
      %s2237 = scalar_select %p2236, %s14, 1
      %s2238 = smul.addr %s2237, 20
      %s2239 = smul.addr %s2238, 4
      %s2240 = scalar_lea.vmem %s3, %s2239
      // Predicated region
      $region33: #{basic_block_forward.2} parent=31 // pred_check
        %p2241 = pneg %p100
      $region34: #{basic_block_forward.2} parent=31 // pred_check_branch
        %2243 = sbr.rel (%p2241) target = $region36
      $region35: #{basic_block_forward.2} parent=31 // pred_region
        _
      $region36: #{basic_block_forward.2} parent=31 // pred_fallthru
        _
    $region32: #{basic_block_forward.2} parent=5 // pred_fallthru
      _
    %p2244 = scmp.le.s32.totalorder 2, %s9
    // Predicated region
    $region37: #{basic_block_forward.2} parent=5 // pred_check
      %p2245 = pneg %p2244
    $region38: #{basic_block_forward.2} parent=5 // pred_check_branch
      %2247 = sbr.rel (%p2245) target = $region40
    $region39: #{basic_block_forward.2} parent=5 // pred_region
      %s2248 = ssub.s32 %s9, 2
      // Predicated region
      $region41: #{basic_block_forward.2} parent=39 // pred_check
        %p2249 = pneg %p106
      $region42: #{basic_block_forward.2} parent=39 // pred_check_branch
        %2251 = sbr.rel (%p2249) target = $region44
      $region43: #{basic_block_forward.2} parent=39 // pred_region
        %p2252 = scmp.lt.s32.totalorder %s15, 1
        %s2253 = scalar_select %p2252, %s15, 1
        %s2254 = smul.addr %s2253, 20
        %s2255 = smul.addr %s2254, 4
        %s2256 = scalar_lea.vmem %s3, %s2255
      $region44: #{basic_block_forward.2} parent=39 // pred_fallthru
        _
    $region40: #{basic_block_forward.2} parent=5 // pred_fallthru
      _
  $region6: #{basic_block_forward.2} parent=0 // loop_footer
    %s13 = sadd.s32 1, %s9
  $region7: #{basic_block_forward.2} parent=0 // loop_footer_branch
    %8 = sbr.rel target = $region3
  $region8: #{basic_block_forward.2} parent=0 // loop_exit
    _

// kernel: basic_block_forward.3
$region0: #{basic_block_forward.3}
  #allocation0 [shape = 'u32[]', space=smem, size = 0x4, offset = 0x4, fixed_abs, tag = 'smem constant byte address 0x4 - core index']
  #allocation1 [shape = 'u32[144,128]{1,0:T(1,128)}', space=vmem, size = 0x12000, scoped, tag = 'internal scratch']
  %s0 = inlined_call_operand.vmem [shape: bf16[2,10,10,128], index: 0, kind: input, shape index: {}]
  %s1 = inlined_call_operand.vmem [shape: bf16[9,128,128], index: 1, kind: input, shape index: {}]
  %s2 = inlined_call_operand.vmem [shape: f32[1,128], index: 2, kind: input, shape index: {}]
  %s3 = inlined_call_operand.vmem [shape: bf16[8,9,9,128], index: 3, kind: input, shape index: {}]
  %s4 = inlined_call_operand.vmem [shape: bf16[1,128,128], index: 4, kind: input, shape index: {}]
  %s5 = inlined_call_operand.vmem [shape: f32[1,128], index: 5, kind: input, shape index: {}]
  %s6 = inlined_call_operand.vmem [shape: bf16[2,64,128], index: 6, kind: output, shape index: {}]
  %s7 = sld [smem:[#allocation0]]
  $region57: #{basic_block_forward.3} parent=0
    _
  %s9 = ssub.s32 1, %s7
  %s10 = scalar_select 0, %s9, %s7
  loop: start=0, step=1, limit=4
  $region2: #{basic_block_forward.3} parent=0 // loop_pre_header
    _
  $region3: #{basic_block_forward.3} parent=0 // loop_header
    %s12 = sphi 0, %s16
    %p13 = scmp.ge.s32.totalorder %s12, 4
    %s22 = sphi 0, %s24
    %s25 = sphi 0, %s22
    %s26 = sphi 0, %s25
    %s42 = sphi 0, %s26
    %s46 = sphi 0, %s46
    %s48 = sphi 0, %s46
    %s49 = sphi 0, %s48
    %s63 = sphi 0, %s49
    %s67 = sphi 0, %s67
    %s69 = sphi 0, %s67
    %s70 = sphi 0, %s69
    %s84 = sphi 0, %s70
    %s94 = sphi 0, %s96
    %s97 = sphi 0, %s94
    %s98 = sphi 0, %s97
    %s114 = sphi 0, %s98
    %s118 = sphi 0, %s118
    %s120 = sphi 0, %s118
    %s121 = sphi 0, %s120
    %s135 = sphi 0, %s121
    %s139 = sphi 0, %s139
    %s141 = sphi 0, %s139
    %s142 = sphi 0, %s141
    %s156 = sphi 0, %s142
    %s162 = sphi 0, %s164
    %s165 = sphi 0, %s162
    %s166 = sphi 0, %s165
    %s182 = sphi 0, %s166
  $region4: #{basic_block_forward.3} parent=0 // loop_header_branch
    %15 = sbr.rel (%p13) target = $region8
  $region5: #{basic_block_forward.3} parent=0 // loop_body
    %s17 = ssub.s32 %s12, 1
    %s18 = ssub.s32 %s12, 2
    %s19 = sadd.s32 %s12, 1
    %s20 = ssub.s32 %s12, %s19
    %p21 = scmp.eq.s32.totalorder %s20, 0
    %s23 = sadd.s32 %s22, 1
    %s24 = scalar_select %p21, %s22, %s23
    %p27 = pneg %p21
    %p28 = scmp.eq.s32.totalorder %s12, 1
    %p29 = por %p27, %p28
    %p30 = scmp.ne.s32.totalorder %s22, %s25
    %p31 = scmp.eq.s32.totalorder %s12, 0
    %p32 = por %p30, %p31
    %p33 = scmp.ne.s32.totalorder %s22, %s25
    %p34 = scmp.eq.s32.totalorder %s17, 1
    %p35 = por %p33, %p34
    %p36 = scmp.ne.s32.totalorder %s25, %s26
    %p37 = scmp.eq.s32.totalorder %s17, 0
    %p38 = por %p36, %p37
    %p39 = scmp.ne.s32.totalorder %s25, %s26
    %p40 = scmp.eq.s32.totalorder %s18, 1
    %p41 = por %p39, %p40
    %p43 = scmp.ne.s32.totalorder %s26, %s42
    %p44 = scmp.eq.s32.totalorder %s18, 0
    %p45 = por %p43, %p44
    %s47 = sadd.s32 %s46, 1
    %p50 = scmp.eq.s32.totalorder %s12, 1
    %p51 = scmp.ne.s32.totalorder %s46, %s48
    %p52 = scmp.eq.s32.totalorder %s12, 0
    %p53 = por %p51, %p52
    %p54 = scmp.ne.s32.totalorder %s46, %s48
    %p55 = scmp.eq.s32.totalorder %s17, 1
    %p56 = por %p54, %p55
    %p57 = scmp.ne.s32.totalorder %s48, %s49
    %p58 = scmp.eq.s32.totalorder %s17, 0
    %p59 = por %p57, %p58
    %p60 = scmp.ne.s32.totalorder %s48, %s49
    %p61 = scmp.eq.s32.totalorder %s18, 1
    %p62 = por %p60, %p61
    %p64 = scmp.ne.s32.totalorder %s49, %s63
    %p65 = scmp.eq.s32.totalorder %s18, 0
    %p66 = por %p64, %p65
    %s68 = sadd.s32 %s67, 1
    %p71 = scmp.eq.s32.totalorder %s12, 1
    %p72 = scmp.ne.s32.totalorder %s67, %s69
    %p73 = scmp.eq.s32.totalorder %s12, 0
    %p74 = por %p72, %p73
    %p75 = scmp.ne.s32.totalorder %s67, %s69
    %p76 = scmp.eq.s32.totalorder %s17, 1
    %p77 = por %p75, %p76
    %p78 = scmp.ne.s32.totalorder %s69, %s70
    %p79 = scmp.eq.s32.totalorder %s17, 0
    %p80 = por %p78, %p79
    %p81 = scmp.ne.s32.totalorder %s69, %s70
    %p82 = scmp.eq.s32.totalorder %s18, 1
    %p83 = por %p81, %p82
    %p85 = scmp.ne.s32.totalorder %s70, %s84
    %p86 = scmp.eq.s32.totalorder %s18, 0
    %p87 = por %p85, %p86
    %s88 = smul.u32 %s12, 4
    %s89 = sadd.s32 %s88, 3
    %s90 = smul.u32 %s19, 4
    %s91 = sadd.s32 %s90, 3
    %s92 = ssub.s32 %s89, %s91
    %p93 = scmp.eq.s32.totalorder %s92, 0
    %s95 = sadd.s32 %s94, 1
    %s96 = scalar_select %p93, %s94, %s95
    %p99 = pneg %p93
    %p100 = scmp.eq.s32.totalorder %s12, 1
    %p101 = por %p99, %p100
    %p102 = scmp.ne.s32.totalorder %s94, %s97
    %p103 = scmp.eq.s32.totalorder %s12, 0
    %p104 = por %p102, %p103
    %p105 = scmp.ne.s32.totalorder %s94, %s97
    %p106 = scmp.eq.s32.totalorder %s17, 1
    %p107 = por %p105, %p106
    %p108 = scmp.ne.s32.totalorder %s97, %s98
    %p109 = scmp.eq.s32.totalorder %s17, 0
    %p110 = por %p108, %p109
    %p111 = scmp.ne.s32.totalorder %s97, %s98
    %p112 = scmp.eq.s32.totalorder %s18, 1
    %p113 = por %p111, %p112
    %p115 = scmp.ne.s32.totalorder %s98, %s114
    %p116 = scmp.eq.s32.totalorder %s18, 0
    %p117 = por %p115, %p116
    %s119 = sadd.s32 %s118, 1
    %p122 = scmp.eq.s32.totalorder %s12, 1
    %p123 = scmp.ne.s32.totalorder %s118, %s120
    %p124 = scmp.eq.s32.totalorder %s12, 0
    %p125 = por %p123, %p124
    %p126 = scmp.ne.s32.totalorder %s118, %s120
    %p127 = scmp.eq.s32.totalorder %s17, 1
    %p128 = por %p126, %p127
    %p129 = scmp.ne.s32.totalorder %s120, %s121
    %p130 = scmp.eq.s32.totalorder %s17, 0
    %p131 = por %p129, %p130
    %p132 = scmp.ne.s32.totalorder %s120, %s121
    %p133 = scmp.eq.s32.totalorder %s18, 1
    %p134 = por %p132, %p133
    %p136 = scmp.ne.s32.totalorder %s121, %s135
    %p137 = scmp.eq.s32.totalorder %s18, 0
    %p138 = por %p136, %p137
    %s140 = sadd.s32 %s139, 1
    %p143 = scmp.eq.s32.totalorder %s12, 1
    %p144 = scmp.ne.s32.totalorder %s139, %s141
    %p145 = scmp.eq.s32.totalorder %s12, 0
    %p146 = por %p144, %p145
    %p147 = scmp.ne.s32.totalorder %s139, %s141
    %p148 = scmp.eq.s32.totalorder %s17, 1
    %p149 = por %p147, %p148
    %p150 = scmp.ne.s32.totalorder %s141, %s142
    %p151 = scmp.eq.s32.totalorder %s17, 0
    %p152 = por %p150, %p151
    %p153 = scmp.ne.s32.totalorder %s141, %s142
    %p154 = scmp.eq.s32.totalorder %s18, 1
    %p155 = por %p153, %p154
    %p157 = scmp.ne.s32.totalorder %s142, %s156
    %p158 = scmp.eq.s32.totalorder %s18, 0
    %p159 = por %p157, %p158
    %s160 = ssub.s32 %s12, %s19
    %p161 = scmp.eq.s32.totalorder %s160, 0
    %s163 = sadd.s32 %s162, 1
    %s164 = scalar_select %p161, %s162, %s163
    %p167 = pneg %p161
    %p168 = scmp.eq.s32.totalorder %s12, 1
    %p169 = por %p167, %p168
    %p170 = scmp.ne.s32.totalorder %s162, %s165
    %p171 = scmp.eq.s32.totalorder %s12, 0
    %p172 = por %p170, %p171
    %p173 = scmp.ne.s32.totalorder %s162, %s165
    %p174 = scmp.eq.s32.totalorder %s17, 1
    %p175 = por %p173, %p174
    %p176 = scmp.ne.s32.totalorder %s165, %s166
    %p177 = scmp.eq.s32.totalorder %s17, 0
    %p178 = por %p176, %p177
    %p179 = scmp.ne.s32.totalorder %s165, %s166
    %p180 = scmp.eq.s32.totalorder %s18, 1
    %p181 = por %p179, %p180
    %p183 = scmp.ne.s32.totalorder %s166, %s182
    %p184 = scmp.eq.s32.totalorder %s18, 0
    %p185 = por %p183, %p184
    %p186 = scmp.le.s32.totalorder 1, %s12
    %p187 = scmp.lt.s32.totalorder %s12, 3
    %p188 = pnand %p186, %p187
    %p189 = pneg %p188
    // Predicated region
    $region9: #{basic_block_forward.3} parent=5 // pred_check
      _
    $region10: #{basic_block_forward.3} parent=5 // pred_check_branch
      %191 = sbr.rel (%p188) target = $region12
    $region11: #{basic_block_forward.3} parent=5 // pred_region
      %s192 = ssub.s32 %s12, 1
      // Predicated region
      $region13: #{basic_block_forward.3} parent=11 // pred_check
        %p193 = pneg %p59
      $region14: #{basic_block_forward.3} parent=11 // pred_check_branch
        %195 = sbr.rel (%p193) target = $region16
      $region15: #{basic_block_forward.3} parent=11 // pred_region
        _
      $region16: #{basic_block_forward.3} parent=11 // pred_fallthru
        _
      // Predicated region
      $region17: #{basic_block_forward.3} parent=11 // pred_check
        %p196 = pneg %p80
      $region18: #{basic_block_forward.3} parent=11 // pred_check_branch
        %198 = sbr.rel (%p196) target = $region20
      $region19: #{basic_block_forward.3} parent=11 // pred_region
        _
      $region20: #{basic_block_forward.3} parent=11 // pred_fallthru
        _
      // Predicated region
      $region21: #{basic_block_forward.3} parent=11 // pred_check
        %p199 = pneg %p131
      $region22: #{basic_block_forward.3} parent=11 // pred_check_branch
        %201 = sbr.rel (%p199) target = $region24
      $region23: #{basic_block_forward.3} parent=11 // pred_region
        _
      $region24: #{basic_block_forward.3} parent=11 // pred_fallthru
        _
      // Predicated region
      $region25: #{basic_block_forward.3} parent=11 // pred_check
        %p202 = pneg %p152
      $region26: #{basic_block_forward.3} parent=11 // pred_check_branch
        %204 = sbr.rel (%p202) target = $region28
      $region27: #{basic_block_forward.3} parent=11 // pred_region
        _
      $region28: #{basic_block_forward.3} parent=11 // pred_fallthru
        _
    $region12: #{basic_block_forward.3} parent=5 // pred_fallthru
      _
    %p205 = scmp.lt.s32.totalorder %s12, 2
    // Predicated region
    $region29: #{basic_block_forward.3} parent=5 // pred_check
      %p206 = pneg %p205
    $region30: #{basic_block_forward.3} parent=5 // pred_check_branch
      %208 = sbr.rel (%p206) target = $region32
    $region31: #{basic_block_forward.3} parent=5 // pred_region
      // Predicated region
      $region33: #{basic_block_forward.3} parent=31 // pred_check
        %p209 = pneg %p32
      $region34: #{basic_block_forward.3} parent=31 // pred_check_branch
        %211 = sbr.rel (%p209) target = $region36
      $region35: #{basic_block_forward.3} parent=31 // pred_region
        %p212 = scmp.lt.s32.totalorder %s12, 1
        %s213 = scalar_select %p212, %s12, 1
        %s214 = smul.addr %s213, 20
        %s215 = smul.addr %s214, 4
        %s216 = scalar_lea.vmem %s0, %s215
      $region36: #{basic_block_forward.3} parent=31 // pred_fallthru
        _
      // Predicated region
      $region37: #{basic_block_forward.3} parent=31 // pred_check
        %p217 = pneg %p104
      $region38: #{basic_block_forward.3} parent=31 // pred_check_branch
        %219 = sbr.rel (%p217) target = $region40
      $region39: #{basic_block_forward.3} parent=31 // pred_region
        %s220 = smul.u32 %s12, 4
        %s221 = sadd.s32 %s220, 3
        %p222 = scmp.lt.s32.totalorder %s221, 7
        %s223 = scalar_select %p222, %s221, 7
        %s224 = smul.addr %s223, 18
        %s225 = smul.addr %s224, 4
        %s226 = scalar_lea.vmem %s3, %s225
        %s227 = smul.u32 %s12, 4
        %s228 = sadd.s32 %s227, 3
      $region40: #{basic_block_forward.3} parent=31 // pred_fallthru
        _
    $region32: #{basic_block_forward.3} parent=5 // pred_fallthru
      _
    %p229 = scmp.le.s32.totalorder 1, %s12
    %p230 = scmp.lt.s32.totalorder %s12, 3
    %p231 = pnand %p229, %p230
    %p232 = pneg %p231
    // Predicated region
    $region41: #{basic_block_forward.3} parent=5 // pred_check
      _
    $region42: #{basic_block_forward.3} parent=5 // pred_check_branch
      %234 = sbr.rel (%p231) target = $region44
    $region43: #{basic_block_forward.3} parent=5 // pred_region
      %s235 = ssub.s32 %s12, 1
      %p236 = scmp.lt.s32.totalorder %s17, 1
      %s237 = scalar_select %p236, %s17, 1
      %s238 = smul.addr %s237, 20
      %s239 = smul.addr %s238, 4
      %s240 = scalar_lea.vmem %s0, %s239
      %p241 = pneg %p38
      %p242 = pneg %p35
      %p243 = pneg %p59
      %p244 = pneg %p56
      %p245 = pneg %p80
      %p246 = pneg %p77
      %s247 = smul.u32 %s17, 4
      %s248 = sadd.s32 %s247, 3
      %p249 = scmp.lt.s32.totalorder %s248, 7
      %s250 = scalar_select %p249, %s248, 7
      %s251 = smul.addr %s250, 18
      %s252 = smul.addr %s251, 4
      %s253 = scalar_lea.vmem %s3, %s252
      %p254 = pneg %p110
      %p255 = pneg %p107
      %p256 = pneg %p131
      %p257 = pneg %p128
      %p258 = pneg %p152
      %p259 = pneg %p149
      %p260 = pneg %p178
      %p261 = pneg %p175
      %p262 = scmp.lt.s32.totalorder %s17, 1
      %s263 = scalar_select %p262, %s17, 1
      %s264 = smul.addr %s263, 8
      %s265 = smul.addr %s264, 4
      %s266 = scalar_lea.vmem %s6, %s265
      %p267 = scmp.lt.s32.totalorder %s17, 1
      %s268 = scalar_select %p267, %s17, 1
      %s269 = smul.addr %s268, 20
      %s270 = smul.addr %s269, 4
      %s271 = scalar_lea.vmem %s0, %s270
      %s272 = smul.u32 %s17, 4
      %s273 = sadd.s32 %s272, 3
      %p274 = scmp.lt.s32.totalorder %s273, 7
      %s275 = scalar_select %p274, %s273, 7
      %s276 = smul.addr %s275, 18
      %s277 = smul.addr %s276, 4
      %s278 = scalar_lea.vmem %s3, %s277
      %s279 = smul.u32 %s17, 4
      %s280 = sadd.s32 %s279, 3
      %p281 = scmp.lt.s32.totalorder %s17, 1
      %s282 = scalar_select %p281, %s17, 1
      %s283 = smul.addr %s282, 8
      %s284 = smul.addr %s283, 4
      %s285 = scalar_lea.vmem %s6, %s284
      %v287 = vld [vmem:[%s271] sm:$0xf]
      %v288 = vld [vmem:[%s271 + $0x8] sm:$0xf]
      %v289 = vld [vmem:[%s271 + $0x10] sm:$0xf]
      %v290 = vld [vmem:[%s271 + $0x18] sm:$0xf]
      %v291 = vld [vmem:[%s271 + $0x20] sm:$0xf]
      %v292 = vld [vmem:[%s271 + $0x28] sm:$0xf]
      %v293 = vld [vmem:[%s271 + $0x30] sm:$0xf]
      %v294 = vld [vmem:[%s271 + $0x38] sm:$0xf]
      %v295 = vld [vmem:[%s1] sm:$0xf]
      %v296 = vld [vmem:[%s1 + $0x4] sm:$0xf]
      %v297 = vld [vmem:[%s1 + $0x8] sm:$0xf]
      %v298 = vld [vmem:[%s1 + $0xc] sm:$0xf]
      %v299 = vld [vmem:[%s1 + $0x10] sm:$0xf]
      %v300 = vld [vmem:[%s1 + $0x14] sm:$0xf]
      %v301 = vld [vmem:[%s1 + $0x18] sm:$0xf]
      %v302 = vld [vmem:[%s1 + $0x1c] sm:$0xf]
      %v303 = vld [vmem:[%s1 + $0x20] sm:$0xf]
      %v304 = vld [vmem:[%s1 + $0x24] sm:$0xf]
      %v305 = vld [vmem:[%s1 + $0x28] sm:$0xf]
      %v306 = vld [vmem:[%s1 + $0x2c] sm:$0xf]
      %v307 = vld [vmem:[%s1 + $0x30] sm:$0xf]
      %v308 = vld [vmem:[%s1 + $0x34] sm:$0xf]
      %v309 = vld [vmem:[%s1 + $0x38] sm:$0xf]
      %v310 = vld [vmem:[%s1 + $0x3c] sm:$0xf]
      %v311 = vld [vmem:[%s271 + $0x4] sm:$0x1]
      %v312 = vld [vmem:[%s271 + $0xc] sm:$0x1]
      %v313 = vld [vmem:[%s271 + $0x14] sm:$0x1]
      %v314 = vld [vmem:[%s271 + $0x1c] sm:$0x1]
      %v315 = vld [vmem:[%s271 + $0x24] sm:$0x1]
      %v316 = vld [vmem:[%s271 + $0x2c] sm:$0x1]
      %v317 = vld [vmem:[%s271 + $0x34] sm:$0x1]
      %v318 = vld [vmem:[%s271 + $0x3c] sm:$0x1]
      %vm319 = vsmask.f32 3328
      %vm320 = vsmask.f32 7440
      %vm321 = vmor %vm319, %vm320
      %v323 = vshrl.u32 %v287, 16
      %v325 = vrot.slane %v323, 4
      %v326 = vshll.u32 %v287, 16
      %v328 = vrot.slane %v326, 5
      %v329 = vor.u32 %v325, %v328
      %v330 = vrot.slane %v329, 4
      %v332 = vshll.u32 %v311, 16
      %v334 = vrot.slane %v332, 5
      %v335 = vsel %vm321, %v330, %v334
      %v337 = vshrl.u32 %v288, 16
      %v339 = vrot.slane %v337, 4
      %v340 = vshll.u32 %v288, 16
      %v342 = vrot.slane %v340, 5
      %v343 = vor.u32 %v339, %v342
      %v344 = vrot.slane %v343, 4
      %v346 = vshll.u32 %v312, 16
      %v348 = vrot.slane %v346, 5
      %v349 = vsel %vm321, %v344, %v348
      %v351 = vshrl.u32 %v289, 16
      %v353 = vrot.slane %v351, 4
      %v354 = vshll.u32 %v289, 16
      %v356 = vrot.slane %v354, 5
      %v357 = vor.u32 %v353, %v356
      %v358 = vrot.slane %v357, 4
      %v360 = vshll.u32 %v313, 16
      %v362 = vrot.slane %v360, 5
      %v363 = vsel %vm321, %v358, %v362
      %v365 = vshrl.u32 %v290, 16
      %v367 = vrot.slane %v365, 4
      %v368 = vshll.u32 %v290, 16
      %v370 = vrot.slane %v368, 5
      %v371 = vor.u32 %v367, %v370
      %v372 = vrot.slane %v371, 4
      %v374 = vshll.u32 %v314, 16
      %v376 = vrot.slane %v374, 5
      %v377 = vsel %vm321, %v372, %v376
      %v379 = vshrl.u32 %v291, 16
      %v381 = vrot.slane %v379, 4
      %v382 = vshll.u32 %v291, 16
      %v384 = vrot.slane %v382, 5
      %v385 = vor.u32 %v381, %v384
      %v386 = vrot.slane %v385, 4
      %v388 = vshll.u32 %v315, 16
      %v390 = vrot.slane %v388, 5
      %v391 = vsel %vm321, %v386, %v390
      %v393 = vshrl.u32 %v292, 16
      %v395 = vrot.slane %v393, 4
      %v396 = vshll.u32 %v292, 16
      %v398 = vrot.slane %v396, 5
      %v399 = vor.u32 %v395, %v398
      %v400 = vrot.slane %v399, 4
      %v402 = vshll.u32 %v316, 16
      %v404 = vrot.slane %v402, 5
      %v405 = vsel %vm321, %v400, %v404
      %v407 = vshrl.u32 %v293, 16
      %v409 = vrot.slane %v407, 4
      %v410 = vshll.u32 %v293, 16
      %v412 = vrot.slane %v410, 5
      %v413 = vor.u32 %v409, %v412
      %v414 = vrot.slane %v413, 4
      %v416 = vshll.u32 %v317, 16
      %v418 = vrot.slane %v416, 5
      %v419 = vsel %vm321, %v414, %v418
      %v421 = vshrl.u32 %v294, 16
      %v423 = vrot.slane %v421, 4
      %v424 = vshll.u32 %v294, 16
      %v426 = vrot.slane %v424, 5
      %v427 = vor.u32 %v423, %v426
      %v428 = vrot.slane %v427, 4
      %v430 = vshll.u32 %v318, 16
      %v432 = vrot.slane %v430, 5
      %v433 = vsel %vm321, %v428, %v432
      %s434 = scalar_lea.vmem %s1, 64
      %v435 = vld [vmem:[%s434] sm:$0xf]
      %v436 = vld [vmem:[%s434 + $0x4] sm:$0xf]
      %v437 = vld [vmem:[%s434 + $0x8] sm:$0xf]
      %v438 = vld [vmem:[%s434 + $0xc] sm:$0xf]
      %v439 = vld [vmem:[%s434 + $0x10] sm:$0xf]
      %v440 = vld [vmem:[%s434 + $0x14] sm:$0xf]
      %v441 = vld [vmem:[%s434 + $0x18] sm:$0xf]
      %v442 = vld [vmem:[%s434 + $0x1c] sm:$0xf]
      %v443 = vld [vmem:[%s434 + $0x20] sm:$0xf]
      %v444 = vld [vmem:[%s434 + $0x24] sm:$0xf]
      %v445 = vld [vmem:[%s434 + $0x28] sm:$0xf]
      %v446 = vld [vmem:[%s434 + $0x2c] sm:$0xf]
      %v447 = vld [vmem:[%s434 + $0x30] sm:$0xf]
      %v448 = vld [vmem:[%s434 + $0x34] sm:$0xf]
      %v449 = vld [vmem:[%s434 + $0x38] sm:$0xf]
      %v450 = vld [vmem:[%s434 + $0x3c] sm:$0xf]
      %v451 = vunpack.c.l.b16 %v335
      %v452 = vunpack.c.l.b16 %v349
      %v453 = vunpack.c.l.b16 %v363
      %v454 = vunpack.c.l.b16 %v377
      %v455 = vunpack.c.l.b16 %v391
      %v456 = vunpack.c.l.b16 %v405
      %v457 = vunpack.c.l.b16 %v419
      %v458 = vunpack.c.l.b16 %v433
      %v459 = vpack.c.b16 %v452, %v451
      %v460 = vpack.c.b16 %v454, %v453
      %v461 = vpack.c.b16 %v456, %v455
      %v462 = vpack.c.b16 %v458, %v457
      %v483 = vunpack.c.l.b16 %v435
      %v484 = vunpack.c.l.b16 %v436
      %v485 = vunpack.c.l.b16 %v437
      %v486 = vunpack.c.l.b16 %v438
      %v487 = vunpack.c.l.b16 %v439
      %v488 = vunpack.c.l.b16 %v440
      %v489 = vunpack.c.l.b16 %v441
      %v490 = vunpack.c.l.b16 %v442
      %v491 = vunpack.c.l.b16 %v443
      %v492 = vunpack.c.l.b16 %v444
      %v493 = vunpack.c.l.b16 %v445
      %v494 = vunpack.c.l.b16 %v446
      %v495 = vunpack.c.l.b16 %v447
      %v496 = vunpack.c.l.b16 %v448
      %v497 = vunpack.c.l.b16 %v449
      %v498 = vunpack.c.l.b16 %v450
      %v499 = vpack.c.b16 %v484, %v483
      %v500 = vpack.c.b16 %v486, %v485
      %v501 = vpack.c.b16 %v488, %v487
      %v502 = vpack.c.b16 %v490, %v489
      %v503 = vpack.c.b16 %v492, %v491
      %v504 = vpack.c.b16 %v494, %v493
      %v505 = vpack.c.b16 %v496, %v495
      %v506 = vpack.c.b16 %v498, %v497
      %515 = vmatprep.subr.bf16.mxu0 0
      %516 = vmatpush1.bf16.msra.mxu0 %v499
      %517 = vmatprep.subr.bf16.mxu0 0
      %518 = vmatpush1.bf16.msra.mxu0 %v500
      %519 = vmatprep.subr.bf16.mxu0 0
      %520 = vmatpush1.bf16.msra.mxu0 %v501
      %521 = vmatprep.subr.bf16.mxu0 0
      %522 = vmatpush1.bf16.msra.mxu0 %v502
      %523 = vmatprep.subr.bf16.mxu0 0
      %524 = vmatpush1.bf16.msra.mxu0 %v503
      %525 = vmatprep.subr.bf16.mxu0 0
      %526 = vmatpush1.bf16.msra.mxu0 %v504
      %527 = vmatprep.subr.bf16.mxu0 0
      %528 = vmatpush1.bf16.msra.mxu0 %v505
      %529 = vmatprep.subr.bf16.mxu0 0
      %530 = vmatpush1.bf16.msra.mxu0 %v506
      %531 = vmatprep.subr.bf16.mxu0 0
      %532 = vmatpush1.bf16.msra.mxu0 0
      %533 = vmatprep.subr.bf16.mxu0 0
      %534 = vmatpush1.bf16.msra.mxu0 0
      %535 = vmatprep.subr.bf16.mxu0 0
      %536 = vmatpush1.bf16.msra.mxu0 0
      %537 = vmatprep.subr.bf16.mxu0 0
      %538 = vmatpush1.bf16.msra.mxu0 0
      %539 = vmatprep.subr.bf16.mxu0 0
      %540 = vmatpush1.bf16.msra.mxu0 0
      %541 = vmatprep.subr.bf16.mxu0 0
      %542 = vmatpush1.bf16.msra.mxu0 0
      %543 = vmatprep.subr.bf16.mxu0 0
      %544 = vmatpush1.bf16.msra.mxu0 0
      %545 = vmatprep.subr.bf16.mxu0 0
      %546 = vmatpush1.bf16.msra.mxu0 0
      %547 = vmatprep.mubr.bf16.mxu0 0
      %548 = vmatmul.mubr.bf16.gmra.mrb[0].mxu0 %v459
      %v549 = vpop.f32.mrb[0].mxu0
      %v550 = vadd.f32 0.0, %v549
      %v551 = vpop.f32.mrb[0].mxu0
      %v552 = vpop.f32.mrb[0].mxu0
      %v553 = vadd.f32 0.0, %v552
      %v554 = vpop.f32.mrb[0].mxu0
      %555 = vmatprep.mubr.bf16.mxu0 0
      %556 = vmatmul.mubr.bf16.gmra.mrb[0].mxu0 %v460
      %v557 = vpop.f32.mrb[0].mxu0
      %v558 = vadd.f32 0.0, %v557
      %v559 = vpop.f32.mrb[0].mxu0
      %v560 = vpop.f32.mrb[0].mxu0
      %v561 = vadd.f32 0.0, %v560
      %v562 = vpop.f32.mrb[0].mxu0
      %563 = vmatprep.mubr.bf16.mxu0 0
      %564 = vmatmul.mubr.bf16.gmra.mrb[0].mxu0 %v461
      %v565 = vpop.f32.mrb[0].mxu0
      %v566 = vadd.f32 0.0, %v565
      %v567 = vpop.f32.mrb[0].mxu0
      %v568 = vpop.f32.mrb[0].mxu0
      %v569 = vadd.f32 0.0, %v568
      %v570 = vpop.f32.mrb[0].mxu0
      %571 = vmatprep.mubr.bf16.mxu0 0
      %572 = vmatmul.mubr.bf16.gmra.mrb[0].mxu0 %v462
      %v573 = vpop.f32.mrb[0].mxu0
      %v574 = vadd.f32 0.0, %v573
      %v575 = vpop.f32.mrb[0].mxu0
      %v576 = vpop.f32.mrb[0].mxu0
      %v577 = vadd.f32 0.0, %v576
      %v578 = vpop.f32.mrb[0].mxu0
      %579 = vdwg.mxu0
      %v588 = vunpack.c.l.b16 %v287
      %v589 = vunpack.c.l.b16 %v288
      %v590 = vunpack.c.l.b16 %v289
      %v591 = vunpack.c.l.b16 %v290
      %v592 = vunpack.c.l.b16 %v291
      %v593 = vunpack.c.l.b16 %v292
      %v594 = vunpack.c.l.b16 %v293
      %v595 = vunpack.c.l.b16 %v294
      %v596 = vpack.c.b16 %v589, %v588
      %v597 = vpack.c.b16 %v591, %v590
      %v598 = vpack.c.b16 %v593, %v592
      %v599 = vpack.c.b16 %v595, %v594
      %v620 = vunpack.c.l.b16 %v295
      %v621 = vunpack.c.l.b16 %v296
      %v622 = vunpack.c.l.b16 %v297
      %v623 = vunpack.c.l.b16 %v298
      %v624 = vunpack.c.l.b16 %v299
      %v625 = vunpack.c.l.b16 %v300
      %v626 = vunpack.c.l.b16 %v301
      %v627 = vunpack.c.l.b16 %v302
      %v628 = vunpack.c.l.b16 %v303
      %v629 = vunpack.c.l.b16 %v304
      %v630 = vunpack.c.l.b16 %v305
      %v631 = vunpack.c.l.b16 %v306
      %v632 = vunpack.c.l.b16 %v307
      %v633 = vunpack.c.l.b16 %v308
      %v634 = vunpack.c.l.b16 %v309
      %v635 = vunpack.c.l.b16 %v310
      %v636 = vpack.c.b16 %v621, %v620
      %v637 = vpack.c.b16 %v623, %v622
      %v638 = vpack.c.b16 %v625, %v624
      %v639 = vpack.c.b16 %v627, %v626
      %v640 = vpack.c.b16 %v629, %v628
      %v641 = vpack.c.b16 %v631, %v630
      %v642 = vpack.c.b16 %v633, %v632
      %v643 = vpack.c.b16 %v635, %v634
      %652 = vmatprep.subr.bf16.mxu0 0
      %653 = vmatpush1.bf16.msra.mxu0 %v636
      %654 = vmatprep.subr.bf16.mxu0 0
      %655 = vmatpush1.bf16.msra.mxu0 %v637
      %656 = vmatprep.subr.bf16.mxu0 0
      %657 = vmatpush1.bf16.msra.mxu0 %v638
      %658 = vmatprep.subr.bf16.mxu0 0
      %659 = vmatpush1.bf16.msra.mxu0 %v639
      %660 = vmatprep.subr.bf16.mxu0 0
      %661 = vmatpush1.bf16.msra.mxu0 %v640
      %662 = vmatprep.subr.bf16.mxu0 0
      %663 = vmatpush1.bf16.msra.mxu0 %v641
      %664 = vmatprep.subr.bf16.mxu0 0
      %665 = vmatpush1.bf16.msra.mxu0 %v642
      %666 = vmatprep.subr.bf16.mxu0 0
      %667 = vmatpush1.bf16.msra.mxu0 %v643
      %668 = vmatprep.subr.bf16.mxu0 0
      %669 = vmatpush1.bf16.msra.mxu0 0
      %670 = vmatprep.subr.bf16.mxu0 0
      %671 = vmatpush1.bf16.msra.mxu0 0
      %672 = vmatprep.subr.bf16.mxu0 0
      %673 = vmatpush1.bf16.msra.mxu0 0
      %674 = vmatprep.subr.bf16.mxu0 0
      %675 = vmatpush1.bf16.msra.mxu0 0
      %676 = vmatprep.subr.bf16.mxu0 0
      %677 = vmatpush1.bf16.msra.mxu0 0
      %678 = vmatprep.subr.bf16.mxu0 0
      %679 = vmatpush1.bf16.msra.mxu0 0
      %680 = vmatprep.subr.bf16.mxu0 0
      %681 = vmatpush1.bf16.msra.mxu0 0
      %682 = vmatprep.subr.bf16.mxu0 0
      %683 = vmatpush1.bf16.msra.mxu0 0
      %684 = vmatprep.mubr.bf16.mxu0 0
      %685 = vmatmul.mubr.bf16.gmra.mrb[0].mxu0 %v596
      %v686 = vpop.f32.mrb[0].mxu0
      %v687 = vadd.f32 %v550, %v686
      %v688 = vpop.f32.mrb[0].mxu0
      %v689 = vpop.f32.mrb[0].mxu0
      %v690 = vadd.f32 %v553, %v689
      %v691 = vpop.f32.mrb[0].mxu0
      %692 = vmatprep.mubr.bf16.mxu0 0
      %693 = vmatmul.mubr.bf16.gmra.mrb[0].mxu0 %v597
      %v694 = vpop.f32.mrb[0].mxu0
      %v695 = vadd.f32 %v558, %v694
      %v696 = vpop.f32.mrb[0].mxu0
      %v697 = vpop.f32.mrb[0].mxu0
      %v698 = vadd.f32 %v561, %v697
      %v699 = vpop.f32.mrb[0].mxu0
      %700 = vmatprep.mubr.bf16.mxu0 0
      %701 = vmatmul.mubr.bf16.gmra.mrb[0].mxu0 %v598
      %v702 = vpop.f32.mrb[0].mxu0
      %v703 = vadd.f32 %v566, %v702
      %v704 = vpop.f32.mrb[0].mxu0
      %v705 = vpop.f32.mrb[0].mxu0
      %v706 = vadd.f32 %v569, %v705
      %v707 = vpop.f32.mrb[0].mxu0
      %708 = vmatprep.mubr.bf16.mxu0 0
      %709 = vmatmul.mubr.bf16.gmra.mrb[0].mxu0 %v599
      %v710 = vpop.f32.mrb[0].mxu0
      %v711 = vadd.f32 %v574, %v710
      %v712 = vpop.f32.mrb[0].mxu0
      %v713 = vpop.f32.mrb[0].mxu0
      %v714 = vadd.f32 %v577, %v713
      %v715 = vpop.f32.mrb[0].mxu0
      %716 = vdwg.mxu0
      %v717 = vld [vmem:[%s271] sm:$0xe]
      %v718 = vld [vmem:[%s271 + $0x8] sm:$0xe]
      %v719 = vld [vmem:[%s271 + $0x10] sm:$0xe]
      %v720 = vld [vmem:[%s271 + $0x18] sm:$0xe]
      %v721 = vld [vmem:[%s271 + $0x20] sm:$0xe]
      %v722 = vld [vmem:[%s271 + $0x28] sm:$0xe]
      %v723 = vld [vmem:[%s271 + $0x30] sm:$0xe]
      %v724 = vld [vmem:[%s271 + $0x38] sm:$0xe]
      %vm741 = vcmask 1042432
      %vm742 = vcmask 1046532
      %vm743 = vmor %vm741, %vm742
      %v744 = vrot.slane %v717, 5
      %v745 = vrot.slane %v744, 4
      %v746 = vrot.slane %v311, 5
      %v747 = vsel %vm743, %v745, %v746
      %v748 = vrot.slane %v718, 5
      %v749 = vrot.slane %v748, 4
      %v750 = vrot.slane %v312, 5
      %v751 = vsel %vm743, %v749, %v750
      %v752 = vrot.slane %v719, 5
      %v753 = vrot.slane %v752, 4
      %v754 = vrot.slane %v313, 5
      %v755 = vsel %vm743, %v753, %v754
      %v756 = vrot.slane %v720, 5
      %v757 = vrot.slane %v756, 4
      %v758 = vrot.slane %v314, 5
      %v759 = vsel %vm743, %v757, %v758
      %v760 = vrot.slane %v721, 5
      %v761 = vrot.slane %v760, 4
      %v762 = vrot.slane %v315, 5
      %v763 = vsel %vm743, %v761, %v762
      %v764 = vrot.slane %v722, 5
      %v765 = vrot.slane %v764, 4
      %v766 = vrot.slane %v316, 5
      %v767 = vsel %vm743, %v765, %v766
      %v768 = vrot.slane %v723, 5
      %v769 = vrot.slane %v768, 4
      %v770 = vrot.slane %v317, 5
      %v771 = vsel %vm743, %v769, %v770
      %v772 = vrot.slane %v724, 5
      %v773 = vrot.slane %v772, 4
      %v774 = vrot.slane %v318, 5
      %v775 = vsel %vm743, %v773, %v774
      %s776 = scalar_lea.vmem %s1, 128
      %v777 = vld [vmem:[%s776] sm:$0xf]
      %v778 = vld [vmem:[%s776 + $0x4] sm:$0xf]
      %v779 = vld [vmem:[%s776 + $0x8] sm:$0xf]
      %v780 = vld [vmem:[%s776 + $0xc] sm:$0xf]
      %v781 = vld [vmem:[%s776 + $0x10] sm:$0xf]
      %v782 = vld [vmem:[%s776 + $0x14] sm:$0xf]
      %v783 = vld [vmem:[%s776 + $0x18] sm:$0xf]
      %v784 = vld [vmem:[%s776 + $0x1c] sm:$0xf]
      %v785 = vld [vmem:[%s776 + $0x20] sm:$0xf]
      %v786 = vld [vmem:[%s776 + $0x24] sm:$0xf]
      %v787 = vld [vmem:[%s776 + $0x28] sm:$0xf]
      %v788 = vld [vmem:[%s776 + $0x2c] sm:$0xf]
      %v789 = vld [vmem:[%s776 + $0x30] sm:$0xf]
      %v790 = vld [vmem:[%s776 + $0x34] sm:$0xf]
      %v791 = vld [vmem:[%s776 + $0x38] sm:$0xf]
      %v792 = vld [vmem:[%s776 + $0x3c] sm:$0xf]
      %v793 = vunpack.c.l.b16 %v747
      %v794 = vunpack.c.l.b16 %v751
      %v795 = vunpack.c.l.b16 %v755
      %v796 = vunpack.c.l.b16 %v759
      %v797 = vunpack.c.l.b16 %v763
      %v798 = vunpack.c.l.b16 %v767
      %v799 = vunpack.c.l.b16 %v771
      %v800 = vunpack.c.l.b16 %v775
      %v801 = vpack.c.b16 %v794, %v793
      %v802 = vpack.c.b16 %v796, %v795
      %v803 = vpack.c.b16 %v798, %v797
      %v804 = vpack.c.b16 %v800, %v799
      %v825 = vunpack.c.l.b16 %v777
      %v826 = vunpack.c.l.b16 %v778
      %v827 = vunpack.c.l.b16 %v779
      %v828 = vunpack.c.l.b16 %v780
      %v829 = vunpack.c.l.b16 %v781
      %v830 = vunpack.c.l.b16 %v782
      %v831 = vunpack.c.l.b16 %v783
      %v832 = vunpack.c.l.b16 %v784
      %v833 = vunpack.c.l.b16 %v785
      %v834 = vunpack.c.l.b16 %v786
      %v835 = vunpack.c.l.b16 %v787
      %v836 = vunpack.c.l.b16 %v788
      %v837 = vunpack.c.l.b16 %v789
      %v838 = vunpack.c.l.b16 %v790
      %v839 = vunpack.c.l.b16 %v791
      %v840 = vunpack.c.l.b16 %v792
      %v841 = vpack.c.b16 %v826, %v825
      %v842 = vpack.c.b16 %v828, %v827
      %v843 = vpack.c.b16 %v830, %v829
      %v844 = vpack.c.b16 %v832, %v831
      %v845 = vpack.c.b16 %v834, %v833
      %v846 = vpack.c.b16 %v836, %v835
      %v847 = vpack.c.b16 %v838, %v837
      %v848 = vpack.c.b16 %v840, %v839
      %857 = vmatprep.subr.bf16.mxu0 0
      %858 = vmatpush1.bf16.msra.mxu0 %v841
      %859 = vmatprep.subr.bf16.mxu0 0
      %860 = vmatpush1.bf16.msra.mxu0 %v842
      %861 = vmatprep.subr.bf16.mxu0 0
      %862 = vmatpush1.bf16.msra.mxu0 %v843
      %863 = vmatprep.subr.bf16.mxu0 0
      %864 = vmatpush1.bf16.msra.mxu0 %v844
      %865 = vmatprep.subr.bf16.mxu0 0
      %866 = vmatpush1.bf16.msra.mxu0 %v845
      %867 = vmatprep.subr.bf16.mxu0 0
      %868 = vmatpush1.bf16.msra.mxu0 %v846
      %869 = vmatprep.subr.bf16.mxu0 0
      %870 = vmatpush1.bf16.msra.mxu0 %v847
      %871 = vmatprep.subr.bf16.mxu0 0
      %872 = vmatpush1.bf16.msra.mxu0 %v848
      %873 = vmatprep.subr.bf16.mxu0 0
      %874 = vmatpush1.bf16.msra.mxu0 0
      %875 = vmatprep.subr.bf16.mxu0 0
      %876 = vmatpush1.bf16.msra.mxu0 0
      %877 = vmatprep.subr.bf16.mxu0 0
      %878 = vmatpush1.bf16.msra.mxu0 0
      %879 = vmatprep.subr.bf16.mxu0 0
      %880 = vmatpush1.bf16.msra.mxu0 0
      %881 = vmatprep.subr.bf16.mxu0 0
      %882 = vmatpush1.bf16.msra.mxu0 0
      %883 = vmatprep.subr.bf16.mxu0 0
      %884 = vmatpush1.bf16.msra.mxu0 0
      %885 = vmatprep.subr.bf16.mxu0 0
      %886 = vmatpush1.bf16.msra.mxu0 0
      %887 = vmatprep.subr.bf16.mxu0 0
      %888 = vmatpush1.bf16.msra.mxu0 0
      %889 = vmatprep.mubr.bf16.mxu0 0
      %890 = vmatmul.mubr.bf16.gmra.mrb[0].mxu0 %v801
      %v891 = vpop.f32.mrb[0].mxu0
      %v892 = vadd.f32 0.0, %v891
      %v893 = vpop.f32.mrb[0].mxu0
      %v894 = vpop.f32.mrb[0].mxu0
      %v895 = vadd.f32 0.0, %v894
      %v896 = vpop.f32.mrb[0].mxu0
      %897 = vmatprep.mubr.bf16.mxu0 0
      %898 = vmatmul.mubr.bf16.gmra.mrb[0].mxu0 %v802
      %v899 = vpop.f32.mrb[0].mxu0
      %v900 = vadd.f32 0.0, %v899
      %v901 = vpop.f32.mrb[0].mxu0
      %v902 = vpop.f32.mrb[0].mxu0
      %v903 = vadd.f32 0.0, %v902
      %v904 = vpop.f32.mrb[0].mxu0
      %905 = vmatprep.mubr.bf16.mxu0 0
      %906 = vmatmul.mubr.bf16.gmra.mrb[0].mxu0 %v803
      %v907 = vpop.f32.mrb[0].mxu0
      %v908 = vadd.f32 0.0, %v907
      %v909 = vpop.f32.mrb[0].mxu0
      %v910 = vpop.f32.mrb[0].mxu0
      %v911 = vadd.f32 0.0, %v910
      %v912 = vpop.f32.mrb[0].mxu0
      %913 = vmatprep.mubr.bf16.mxu0 0
      %914 = vmatmul.mubr.bf16.gmra.mrb[0].mxu0 %v804
      %v915 = vpop.f32.mrb[0].mxu0
      %v916 = vadd.f32 0.0, %v915
      %v917 = vpop.f32.mrb[0].mxu0
      %v918 = vpop.f32.mrb[0].mxu0
      %v919 = vadd.f32 0.0, %v918
      %v920 = vpop.f32.mrb[0].mxu0
      %921 = vdwg.mxu0
      %v922 = vadd.f32 %v687, %v892
      %v923 = vadd.f32 %v690, %v895
      %v924 = vadd.f32 %v695, %v900
      %v925 = vadd.f32 %v698, %v903
      %v926 = vadd.f32 %v703, %v908
      %v927 = vadd.f32 %v706, %v911
      %v928 = vadd.f32 %v711, %v916
      %v929 = vadd.f32 %v714, %v919
      %s930 = scalar_lea.vmem %s271, 8
      %v931 = vld [vmem:[%s930] sm:$0xf]
      %v932 = vld [vmem:[%s930 + $0x8] sm:$0xf]
      %v933 = vld [vmem:[%s930 + $0x10] sm:$0xf]
      %v934 = vld [vmem:[%s930 + $0x18] sm:$0xf]
      %v935 = vld [vmem:[%s930 + $0x20] sm:$0xf]
      %v936 = vld [vmem:[%s930 + $0x28] sm:$0xf]
      %v937 = vld [vmem:[%s930 + $0x30] sm:$0xf]
      %v938 = vld [vmem:[%s930 + $0x38] sm:$0xf]
      %s939 = scalar_lea.vmem %s1, 192
      %v940 = vld [vmem:[%s939] sm:$0xf]
      %v941 = vld [vmem:[%s939 + $0x4] sm:$0xf]
      %v942 = vld [vmem:[%s939 + $0x8] sm:$0xf]
      %v943 = vld [vmem:[%s939 + $0xc] sm:$0xf]
      %v944 = vld [vmem:[%s939 + $0x10] sm:$0xf]
      %v945 = vld [vmem:[%s939 + $0x14] sm:$0xf]
      %v946 = vld [vmem:[%s939 + $0x18] sm:$0xf]
      %v947 = vld [vmem:[%s939 + $0x1c] sm:$0xf]
      %v948 = vld [vmem:[%s939 + $0x20] sm:$0xf]
      %v949 = vld [vmem:[%s939 + $0x24] sm:$0xf]
      %v950 = vld [vmem:[%s939 + $0x28] sm:$0xf]
      %v951 = vld [vmem:[%s939 + $0x2c] sm:$0xf]
      %v952 = vld [vmem:[%s939 + $0x30] sm:$0xf]
      %v953 = vld [vmem:[%s939 + $0x34] sm:$0xf]
      %v954 = vld [vmem:[%s939 + $0x38] sm:$0xf]
      %v955 = vld [vmem:[%s939 + $0x3c] sm:$0xf]
      %v964 = vunpack.c.l.b16 %v931
      %v965 = vunpack.c.l.b16 %v932
      %v966 = vunpack.c.l.b16 %v933
      %v967 = vunpack.c.l.b16 %v934
      %v968 = vunpack.c.l.b16 %v935
      %v969 = vunpack.c.l.b16 %v936
      %v970 = vunpack.c.l.b16 %v937
      %v971 = vunpack.c.l.b16 %v938
      %v972 = vpack.c.b16 %v965, %v964
      %v973 = vpack.c.b16 %v967, %v966
      %v974 = vpack.c.b16 %v969, %v968
      %v975 = vpack.c.b16 %v971, %v970
      %v996 = vunpack.c.l.b16 %v940
      %v997 = vunpack.c.l.b16 %v941
      %v998 = vunpack.c.l.b16 %v942
      %v999 = vunpack.c.l.b16 %v943
      %v1000 = vunpack.c.l.b16 %v944
      %v1001 = vunpack.c.l.b16 %v945
      %v1002 = vunpack.c.l.b16 %v946
      %v1003 = vunpack.c.l.b16 %v947
      %v1004 = vunpack.c.l.b16 %v948
      %v1005 = vunpack.c.l.b16 %v949
      %v1006 = vunpack.c.l.b16 %v950
      %v1007 = vunpack.c.l.b16 %v951
      %v1008 = vunpack.c.l.b16 %v952
      %v1009 = vunpack.c.l.b16 %v953
      %v1010 = vunpack.c.l.b16 %v954
      %v1011 = vunpack.c.l.b16 %v955
      %v1012 = vpack.c.b16 %v997, %v996
      %v1013 = vpack.c.b16 %v999, %v998
      %v1014 = vpack.c.b16 %v1001, %v1000
      %v1015 = vpack.c.b16 %v1003, %v1002
      %v1016 = vpack.c.b16 %v1005, %v1004
      %v1017 = vpack.c.b16 %v1007, %v1006
      %v1018 = vpack.c.b16 %v1009, %v1008
      %v1019 = vpack.c.b16 %v1011, %v1010
      %1028 = vmatprep.subr.bf16.mxu0 0
      %1029 = vmatpush1.bf16.msra.mxu0 %v1012
      %1030 = vmatprep.subr.bf16.mxu0 0
      %1031 = vmatpush1.bf16.msra.mxu0 %v1013
      %1032 = vmatprep.subr.bf16.mxu0 0
      %1033 = vmatpush1.bf16.msra.mxu0 %v1014
      %1034 = vmatprep.subr.bf16.mxu0 0
      %1035 = vmatpush1.bf16.msra.mxu0 %v1015
      %1036 = vmatprep.subr.bf16.mxu0 0
      %1037 = vmatpush1.bf16.msra.mxu0 %v1016
      %1038 = vmatprep.subr.bf16.mxu0 0
      %1039 = vmatpush1.bf16.msra.mxu0 %v1017
      %1040 = vmatprep.subr.bf16.mxu0 0
      %1041 = vmatpush1.bf16.msra.mxu0 %v1018
      %1042 = vmatprep.subr.bf16.mxu0 0
      %1043 = vmatpush1.bf16.msra.mxu0 %v1019
      %1044 = vmatprep.subr.bf16.mxu0 0
      %1045 = vmatpush1.bf16.msra.mxu0 0
      %1046 = vmatprep.subr.bf16.mxu0 0
      %1047 = vmatpush1.bf16.msra.mxu0 0
      %1048 = vmatprep.subr.bf16.mxu0 0
      %1049 = vmatpush1.bf16.msra.mxu0 0
      %1050 = vmatprep.subr.bf16.mxu0 0
      %1051 = vmatpush1.bf16.msra.mxu0 0
      %1052 = vmatprep.subr.bf16.mxu0 0
      %1053 = vmatpush1.bf16.msra.mxu0 0
      %1054 = vmatprep.subr.bf16.mxu0 0
      %1055 = vmatpush1.bf16.msra.mxu0 0
      %1056 = vmatprep.subr.bf16.mxu0 0
      %1057 = vmatpush1.bf16.msra.mxu0 0
      %1058 = vmatprep.subr.bf16.mxu0 0
      %1059 = vmatpush1.bf16.msra.mxu0 0
      %1060 = vmatprep.mubr.bf16.mxu0 0
      %1061 = vmatmul.mubr.bf16.gmra.mrb[0].mxu0 %v972
      %v1062 = vpop.f32.mrb[0].mxu0
      %v1063 = vadd.f32 0.0, %v1062
      %v1064 = vpop.f32.mrb[0].mxu0
      %v1065 = vpop.f32.mrb[0].mxu0
      %v1066 = vadd.f32 0.0, %v1065
      %v1067 = vpop.f32.mrb[0].mxu0
      %1068 = vmatprep.mubr.bf16.mxu0 0
      %1069 = vmatmul.mubr.bf16.gmra.mrb[0].mxu0 %v973
      %v1070 = vpop.f32.mrb[0].mxu0
      %v1071 = vadd.f32 0.0, %v1070
      %v1072 = vpop.f32.mrb[0].mxu0
      %v1073 = vpop.f32.mrb[0].mxu0
      %v1074 = vadd.f32 0.0, %v1073
      %v1075 = vpop.f32.mrb[0].mxu0
      %1076 = vmatprep.mubr.bf16.mxu0 0
      %1077 = vmatmul.mubr.bf16.gmra.mrb[0].mxu0 %v974
      %v1078 = vpop.f32.mrb[0].mxu0
      %v1079 = vadd.f32 0.0, %v1078
      %v1080 = vpop.f32.mrb[0].mxu0
      %v1081 = vpop.f32.mrb[0].mxu0
      %v1082 = vadd.f32 0.0, %v1081
      %v1083 = vpop.f32.mrb[0].mxu0
      %1084 = vmatprep.mubr.bf16.mxu0 0
      %1085 = vmatmul.mubr.bf16.gmra.mrb[0].mxu0 %v975
      %v1086 = vpop.f32.mrb[0].mxu0
      %v1087 = vadd.f32 0.0, %v1086
      %v1088 = vpop.f32.mrb[0].mxu0
      %v1089 = vpop.f32.mrb[0].mxu0
      %v1090 = vadd.f32 0.0, %v1089
      %v1091 = vpop.f32.mrb[0].mxu0
      %1092 = vdwg.mxu0
      %v1093 = vadd.f32 %v922, %v1063
      %v1094 = vadd.f32 %v923, %v1066
      %v1095 = vadd.f32 %v924, %v1071
      %v1096 = vadd.f32 %v925, %v1074
      %v1097 = vadd.f32 %v926, %v1079
      %v1098 = vadd.f32 %v927, %v1082
      %v1099 = vadd.f32 %v928, %v1087
      %v1100 = vadd.f32 %v929, %v1090
      %v1101 = vld [vmem:[%s930] sm:$0xf]
      %v1102 = vld [vmem:[%s930 + $0x4] sm:$0x1]
      %v1103 = vld [vmem:[%s930 + $0x8] sm:$0xf]
      %v1104 = vld [vmem:[%s930 + $0xc] sm:$0x1]
      %v1105 = vld [vmem:[%s930 + $0x10] sm:$0xf]
      %v1106 = vld [vmem:[%s930 + $0x14] sm:$0x1]
      %v1107 = vld [vmem:[%s930 + $0x18] sm:$0xf]
      %v1108 = vld [vmem:[%s930 + $0x1c] sm:$0x1]
      %v1109 = vld [vmem:[%s930 + $0x20] sm:$0xf]
      %v1110 = vld [vmem:[%s930 + $0x24] sm:$0x1]
      %v1111 = vld [vmem:[%s930 + $0x28] sm:$0xf]
      %v1112 = vld [vmem:[%s930 + $0x2c] sm:$0x1]
      %v1113 = vld [vmem:[%s930 + $0x30] sm:$0xf]
      %v1114 = vld [vmem:[%s930 + $0x34] sm:$0x1]
      %v1115 = vld [vmem:[%s930 + $0x38] sm:$0xf]
      %v1116 = vld [vmem:[%s930 + $0x3c] sm:$0x1]
      %v1118 = vshrl.u32 %v1101, 16
      %v1120 = vrot.slane %v1118, 4
      %v1121 = vshll.u32 %v1101, 16
      %v1123 = vrot.slane %v1121, 5
      %v1124 = vor.u32 %v1120, %v1123
      %v1125 = vrot.slane %v1124, 4
      %v1127 = vshll.u32 %v1102, 16
      %v1129 = vrot.slane %v1127, 5
      %v1130 = vsel %vm321, %v1125, %v1129
      %v1132 = vshrl.u32 %v1103, 16
      %v1134 = vrot.slane %v1132, 4
      %v1135 = vshll.u32 %v1103, 16
      %v1137 = vrot.slane %v1135, 5
      %v1138 = vor.u32 %v1134, %v1137
      %v1139 = vrot.slane %v1138, 4
      %v1141 = vshll.u32 %v1104, 16
      %v1143 = vrot.slane %v1141, 5
      %v1144 = vsel %vm321, %v1139, %v1143
      %v1146 = vshrl.u32 %v1105, 16
      %v1148 = vrot.slane %v1146, 4
      %v1149 = vshll.u32 %v1105, 16
      %v1151 = vrot.slane %v1149, 5
      %v1152 = vor.u32 %v1148, %v1151
      %v1153 = vrot.slane %v1152, 4
      %v1155 = vshll.u32 %v1106, 16
      %v1157 = vrot.slane %v1155, 5
      %v1158 = vsel %vm321, %v1153, %v1157
      %v1160 = vshrl.u32 %v1107, 16
      %v1162 = vrot.slane %v1160, 4
      %v1163 = vshll.u32 %v1107, 16
      %v1165 = vrot.slane %v1163, 5
      %v1166 = vor.u32 %v1162, %v1165
      %v1167 = vrot.slane %v1166, 4
      %v1169 = vshll.u32 %v1108, 16
      %v1171 = vrot.slane %v1169, 5
      %v1172 = vsel %vm321, %v1167, %v1171
      %v1174 = vshrl.u32 %v1109, 16
      %v1176 = vrot.slane %v1174, 4
      %v1177 = vshll.u32 %v1109, 16
      %v1179 = vrot.slane %v1177, 5
      %v1180 = vor.u32 %v1176, %v1179
      %v1181 = vrot.slane %v1180, 4
      %v1183 = vshll.u32 %v1110, 16
      %v1185 = vrot.slane %v1183, 5
      %v1186 = vsel %vm321, %v1181, %v1185
      %v1188 = vshrl.u32 %v1111, 16
      %v1190 = vrot.slane %v1188, 4
      %v1191 = vshll.u32 %v1111, 16
      %v1193 = vrot.slane %v1191, 5
      %v1194 = vor.u32 %v1190, %v1193
      %v1195 = vrot.slane %v1194, 4
      %v1197 = vshll.u32 %v1112, 16
      %v1199 = vrot.slane %v1197, 5
      %v1200 = vsel %vm321, %v1195, %v1199
      %v1202 = vshrl.u32 %v1113, 16
      %v1204 = vrot.slane %v1202, 4
      %v1205 = vshll.u32 %v1113, 16
      %v1207 = vrot.slane %v1205, 5
      %v1208 = vor.u32 %v1204, %v1207
      %v1209 = vrot.slane %v1208, 4
      %v1211 = vshll.u32 %v1114, 16
      %v1213 = vrot.slane %v1211, 5
      %v1214 = vsel %vm321, %v1209, %v1213
      %v1216 = vshrl.u32 %v1115, 16
      %v1218 = vrot.slane %v1216, 4
      %v1219 = vshll.u32 %v1115, 16
      %v1221 = vrot.slane %v1219, 5
      %v1222 = vor.u32 %v1218, %v1221
      %v1223 = vrot.slane %v1222, 4
      %v1225 = vshll.u32 %v1116, 16
      %v1227 = vrot.slane %v1225, 5
      %v1228 = vsel %vm321, %v1223, %v1227
      %s1229 = scalar_lea.vmem %s1, 256
      %v1230 = vld [vmem:[%s1229] sm:$0xf]
      %v1231 = vld [vmem:[%s1229 + $0x4] sm:$0xf]
      %v1232 = vld [vmem:[%s1229 + $0x8] sm:$0xf]
      %v1233 = vld [vmem:[%s1229 + $0xc] sm:$0xf]
      %v1234 = vld [vmem:[%s1229 + $0x10] sm:$0xf]
      %v1235 = vld [vmem:[%s1229 + $0x14] sm:$0xf]
      %v1236 = vld [vmem:[%s1229 + $0x18] sm:$0xf]
      %v1237 = vld [vmem:[%s1229 + $0x1c] sm:$0xf]
      %v1238 = vld [vmem:[%s1229 + $0x20] sm:$0xf]
      %v1239 = vld [vmem:[%s1229 + $0x24] sm:$0xf]
      %v1240 = vld [vmem:[%s1229 + $0x28] sm:$0xf]
      %v1241 = vld [vmem:[%s1229 + $0x2c] sm:$0xf]
      %v1242 = vld [vmem:[%s1229 + $0x30] sm:$0xf]
      %v1243 = vld [vmem:[%s1229 + $0x34] sm:$0xf]
      %v1244 = vld [vmem:[%s1229 + $0x38] sm:$0xf]
      %v1245 = vld [vmem:[%s1229 + $0x3c] sm:$0xf]
      %v1246 = vunpack.c.l.b16 %v1130
      %v1247 = vunpack.c.l.b16 %v1144
      %v1248 = vunpack.c.l.b16 %v1158
      %v1249 = vunpack.c.l.b16 %v1172
      %v1250 = vunpack.c.l.b16 %v1186
      %v1251 = vunpack.c.l.b16 %v1200
      %v1252 = vunpack.c.l.b16 %v1214
      %v1253 = vunpack.c.l.b16 %v1228
      %v1254 = vpack.c.b16 %v1247, %v1246
      %v1255 = vpack.c.b16 %v1249, %v1248
      %v1256 = vpack.c.b16 %v1251, %v1250
      %v1257 = vpack.c.b16 %v1253, %v1252
      %v1278 = vunpack.c.l.b16 %v1230
      %v1279 = vunpack.c.l.b16 %v1231
      %v1280 = vunpack.c.l.b16 %v1232
      %v1281 = vunpack.c.l.b16 %v1233
      %v1282 = vunpack.c.l.b16 %v1234
      %v1283 = vunpack.c.l.b16 %v1235
      %v1284 = vunpack.c.l.b16 %v1236
      %v1285 = vunpack.c.l.b16 %v1237
      %v1286 = vunpack.c.l.b16 %v1238
      %v1287 = vunpack.c.l.b16 %v1239
      %v1288 = vunpack.c.l.b16 %v1240
      %v1289 = vunpack.c.l.b16 %v1241
      %v1290 = vunpack.c.l.b16 %v1242
      %v1291 = vunpack.c.l.b16 %v1243
      %v1292 = vunpack.c.l.b16 %v1244
      %v1293 = vunpack.c.l.b16 %v1245
      %v1294 = vpack.c.b16 %v1279, %v1278
      %v1295 = vpack.c.b16 %v1281, %v1280
      %v1296 = vpack.c.b16 %v1283, %v1282
      %v1297 = vpack.c.b16 %v1285, %v1284
      %v1298 = vpack.c.b16 %v1287, %v1286
      %v1299 = vpack.c.b16 %v1289, %v1288
      %v1300 = vpack.c.b16 %v1291, %v1290
      %v1301 = vpack.c.b16 %v1293, %v1292
      %1310 = vmatprep.subr.bf16.mxu0 0
      %1311 = vmatpush1.bf16.msra.mxu0 %v1294
      %1312 = vmatprep.subr.bf16.mxu0 0
      %1313 = vmatpush1.bf16.msra.mxu0 %v1295
      %1314 = vmatprep.subr.bf16.mxu0 0
      %1315 = vmatpush1.bf16.msra.mxu0 %v1296
      %1316 = vmatprep.subr.bf16.mxu0 0
      %1317 = vmatpush1.bf16.msra.mxu0 %v1297
      %1318 = vmatprep.subr.bf16.mxu0 0
      %1319 = vmatpush1.bf16.msra.mxu0 %v1298
      %1320 = vmatprep.subr.bf16.mxu0 0
      %1321 = vmatpush1.bf16.msra.mxu0 %v1299
      %1322 = vmatprep.subr.bf16.mxu0 0
      %1323 = vmatpush1.bf16.msra.mxu0 %v1300
      %1324 = vmatprep.subr.bf16.mxu0 0
      %1325 = vmatpush1.bf16.msra.mxu0 %v1301
      %1326 = vmatprep.subr.bf16.mxu0 0
      %1327 = vmatpush1.bf16.msra.mxu0 0
      %1328 = vmatprep.subr.bf16.mxu0 0
      %1329 = vmatpush1.bf16.msra.mxu0 0
      %1330 = vmatprep.subr.bf16.mxu0 0
      %1331 = vmatpush1.bf16.msra.mxu0 0
      %1332 = vmatprep.subr.bf16.mxu0 0
      %1333 = vmatpush1.bf16.msra.mxu0 0
      %1334 = vmatprep.subr.bf16.mxu0 0
      %1335 = vmatpush1.bf16.msra.mxu0 0
      %1336 = vmatprep.subr.bf16.mxu0 0
      %1337 = vmatpush1.bf16.msra.mxu0 0
      %1338 = vmatprep.subr.bf16.mxu0 0
      %1339 = vmatpush1.bf16.msra.mxu0 0
      %1340 = vmatprep.subr.bf16.mxu0 0
      %1341 = vmatpush1.bf16.msra.mxu0 0
      %1342 = vmatprep.mubr.bf16.mxu0 0
      %1343 = vmatmul.mubr.bf16.gmra.mrb[0].mxu0 %v1254
      %v1344 = vpop.f32.mrb[0].mxu0
      %v1345 = vadd.f32 0.0, %v1344
      %v1346 = vpop.f32.mrb[0].mxu0
      %v1347 = vpop.f32.mrb[0].mxu0
      %v1348 = vadd.f32 0.0, %v1347
      %v1349 = vpop.f32.mrb[0].mxu0
      %1350 = vmatprep.mubr.bf16.mxu0 0
      %1351 = vmatmul.mubr.bf16.gmra.mrb[0].mxu0 %v1255
      %v1352 = vpop.f32.mrb[0].mxu0
      %v1353 = vadd.f32 0.0, %v1352
      %v1354 = vpop.f32.mrb[0].mxu0
      %v1355 = vpop.f32.mrb[0].mxu0
      %v1356 = vadd.f32 0.0, %v1355
      %v1357 = vpop.f32.mrb[0].mxu0
      %1358 = vmatprep.mubr.bf16.mxu0 0
      %1359 = vmatmul.mubr.bf16.gmra.mrb[0].mxu0 %v1256
      %v1360 = vpop.f32.mrb[0].mxu0
      %v1361 = vadd.f32 0.0, %v1360
      %v1362 = vpop.f32.mrb[0].mxu0
      %v1363 = vpop.f32.mrb[0].mxu0
      %v1364 = vadd.f32 0.0, %v1363
      %v1365 = vpop.f32.mrb[0].mxu0
      %1366 = vmatprep.mubr.bf16.mxu0 0
      %1367 = vmatmul.mubr.bf16.gmra.mrb[0].mxu0 %v1257
      %v1368 = vpop.f32.mrb[0].mxu0
      %v1369 = vadd.f32 0.0, %v1368
      %v1370 = vpop.f32.mrb[0].mxu0
      %v1371 = vpop.f32.mrb[0].mxu0
      %v1372 = vadd.f32 0.0, %v1371
      %v1373 = vpop.f32.mrb[0].mxu0
      %1374 = vdwg.mxu0
      %v1375 = vadd.f32 %v1093, %v1345
      %v1376 = vadd.f32 %v1094, %v1348
      %v1377 = vadd.f32 %v1095, %v1353
      %v1378 = vadd.f32 %v1096, %v1356
      %v1379 = vadd.f32 %v1097, %v1361
      %v1380 = vadd.f32 %v1098, %v1364
      %v1381 = vadd.f32 %v1099, %v1369
      %v1382 = vadd.f32 %v1100, %v1372
      %v1383 = vld [vmem:[%s930] sm:$0xe]
      %v1384 = vld [vmem:[%s930 + $0x8] sm:$0xe]
      %v1385 = vld [vmem:[%s930 + $0x10] sm:$0xe]
      %v1386 = vld [vmem:[%s930 + $0x18] sm:$0xe]
      %v1387 = vld [vmem:[%s930 + $0x20] sm:$0xe]
      %v1388 = vld [vmem:[%s930 + $0x28] sm:$0xe]
      %v1389 = vld [vmem:[%s930 + $0x30] sm:$0xe]
      %v1390 = vld [vmem:[%s930 + $0x38] sm:$0xe]
      %v1407 = vrot.slane %v1383, 5
      %v1408 = vrot.slane %v1407, 4
      %v1409 = vrot.slane %v1102, 5
      %v1410 = vsel %vm743, %v1408, %v1409
      %v1411 = vrot.slane %v1384, 5
      %v1412 = vrot.slane %v1411, 4
      %v1413 = vrot.slane %v1104, 5
      %v1414 = vsel %vm743, %v1412, %v1413
      %v1415 = vrot.slane %v1385, 5
      %v1416 = vrot.slane %v1415, 4
      %v1417 = vrot.slane %v1106, 5
      %v1418 = vsel %vm743, %v1416, %v1417
      %v1419 = vrot.slane %v1386, 5
      %v1420 = vrot.slane %v1419, 4
      %v1421 = vrot.slane %v1108, 5
      %v1422 = vsel %vm743, %v1420, %v1421
      %v1423 = vrot.slane %v1387, 5
      %v1424 = vrot.slane %v1423, 4
      %v1425 = vrot.slane %v1110, 5
      %v1426 = vsel %vm743, %v1424, %v1425
      %v1427 = vrot.slane %v1388, 5
      %v1428 = vrot.slane %v1427, 4
      %v1429 = vrot.slane %v1112, 5
      %v1430 = vsel %vm743, %v1428, %v1429
      %v1431 = vrot.slane %v1389, 5
      %v1432 = vrot.slane %v1431, 4
      %v1433 = vrot.slane %v1114, 5
      %v1434 = vsel %vm743, %v1432, %v1433
      %v1435 = vrot.slane %v1390, 5
      %v1436 = vrot.slane %v1435, 4
      %v1437 = vrot.slane %v1116, 5
      %v1438 = vsel %vm743, %v1436, %v1437
      %s1439 = scalar_lea.vmem %s1, 320
      %v1440 = vld [vmem:[%s1439] sm:$0xf]
      %v1441 = vld [vmem:[%s1439 + $0x4] sm:$0xf]
      %v1442 = vld [vmem:[%s1439 + $0x8] sm:$0xf]
      %v1443 = vld [vmem:[%s1439 + $0xc] sm:$0xf]
      %v1444 = vld [vmem:[%s1439 + $0x10] sm:$0xf]
      %v1445 = vld [vmem:[%s1439 + $0x14] sm:$0xf]
      %v1446 = vld [vmem:[%s1439 + $0x18] sm:$0xf]
      %v1447 = vld [vmem:[%s1439 + $0x1c] sm:$0xf]
      %v1448 = vld [vmem:[%s1439 + $0x20] sm:$0xf]
      %v1449 = vld [vmem:[%s1439 + $0x24] sm:$0xf]
      %v1450 = vld [vmem:[%s1439 + $0x28] sm:$0xf]
      %v1451 = vld [vmem:[%s1439 + $0x2c] sm:$0xf]
      %v1452 = vld [vmem:[%s1439 + $0x30] sm:$0xf]
      %v1453 = vld [vmem:[%s1439 + $0x34] sm:$0xf]
      %v1454 = vld [vmem:[%s1439 + $0x38] sm:$0xf]
      %v1455 = vld [vmem:[%s1439 + $0x3c] sm:$0xf]
      %v1456 = vunpack.c.l.b16 %v1410
      %v1457 = vunpack.c.l.b16 %v1414
      %v1458 = vunpack.c.l.b16 %v1418
      %v1459 = vunpack.c.l.b16 %v1422
      %v1460 = vunpack.c.l.b16 %v1426
      %v1461 = vunpack.c.l.b16 %v1430
      %v1462 = vunpack.c.l.b16 %v1434
      %v1463 = vunpack.c.l.b16 %v1438
      %v1464 = vpack.c.b16 %v1457, %v1456
      %v1465 = vpack.c.b16 %v1459, %v1458
      %v1466 = vpack.c.b16 %v1461, %v1460
      %v1467 = vpack.c.b16 %v1463, %v1462
      %v1488 = vunpack.c.l.b16 %v1440
      %v1489 = vunpack.c.l.b16 %v1441
      %v1490 = vunpack.c.l.b16 %v1442
      %v1491 = vunpack.c.l.b16 %v1443
      %v1492 = vunpack.c.l.b16 %v1444
      %v1493 = vunpack.c.l.b16 %v1445
      %v1494 = vunpack.c.l.b16 %v1446
      %v1495 = vunpack.c.l.b16 %v1447
      %v1496 = vunpack.c.l.b16 %v1448
      %v1497 = vunpack.c.l.b16 %v1449
      %v1498 = vunpack.c.l.b16 %v1450
      %v1499 = vunpack.c.l.b16 %v1451
      %v1500 = vunpack.c.l.b16 %v1452
      %v1501 = vunpack.c.l.b16 %v1453
      %v1502 = vunpack.c.l.b16 %v1454
      %v1503 = vunpack.c.l.b16 %v1455
      %v1504 = vpack.c.b16 %v1489, %v1488
      %v1505 = vpack.c.b16 %v1491, %v1490
      %v1506 = vpack.c.b16 %v1493, %v1492
      %v1507 = vpack.c.b16 %v1495, %v1494
      %v1508 = vpack.c.b16 %v1497, %v1496
      %v1509 = vpack.c.b16 %v1499, %v1498
      %v1510 = vpack.c.b16 %v1501, %v1500
      %v1511 = vpack.c.b16 %v1503, %v1502
      %1520 = vmatprep.subr.bf16.mxu0 0
      %1521 = vmatpush1.bf16.msra.mxu0 %v1504
      %1522 = vmatprep.subr.bf16.mxu0 0
      %1523 = vmatpush1.bf16.msra.mxu0 %v1505
      %1524 = vmatprep.subr.bf16.mxu0 0
      %1525 = vmatpush1.bf16.msra.mxu0 %v1506
      %1526 = vmatprep.subr.bf16.mxu0 0
      %1527 = vmatpush1.bf16.msra.mxu0 %v1507
      %1528 = vmatprep.subr.bf16.mxu0 0
      %1529 = vmatpush1.bf16.msra.mxu0 %v1508
      %1530 = vmatprep.subr.bf16.mxu0 0
      %1531 = vmatpush1.bf16.msra.mxu0 %v1509
      %1532 = vmatprep.subr.bf16.mxu0 0
      %1533 = vmatpush1.bf16.msra.mxu0 %v1510
      %1534 = vmatprep.subr.bf16.mxu0 0
      %1535 = vmatpush1.bf16.msra.mxu0 %v1511
      %1536 = vmatprep.subr.bf16.mxu0 0
      %1537 = vmatpush1.bf16.msra.mxu0 0
      %1538 = vmatprep.subr.bf16.mxu0 0
      %1539 = vmatpush1.bf16.msra.mxu0 0
      %1540 = vmatprep.subr.bf16.mxu0 0
      %1541 = vmatpush1.bf16.msra.mxu0 0
      %1542 = vmatprep.subr.bf16.mxu0 0
      %1543 = vmatpush1.bf16.msra.mxu0 0
      %1544 = vmatprep.subr.bf16.mxu0 0
      %1545 = vmatpush1.bf16.msra.mxu0 0
      %1546 = vmatprep.subr.bf16.mxu0 0
      %1547 = vmatpush1.bf16.msra.mxu0 0
      %1548 = vmatprep.subr.bf16.mxu0 0
      %1549 = vmatpush1.bf16.msra.mxu0 0
      %1550 = vmatprep.subr.bf16.mxu0 0
      %1551 = vmatpush1.bf16.msra.mxu0 0
      %1552 = vmatprep.mubr.bf16.mxu0 0
      %1553 = vmatmul.mubr.bf16.gmra.mrb[0].mxu0 %v1464
      %v1554 = vpop.f32.mrb[0].mxu0
      %v1555 = vadd.f32 0.0, %v1554
      %v1556 = vpop.f32.mrb[0].mxu0
      %v1557 = vpop.f32.mrb[0].mxu0
      %v1558 = vadd.f32 0.0, %v1557
      %v1559 = vpop.f32.mrb[0].mxu0
      %1560 = vmatprep.mubr.bf16.mxu0 0
      %1561 = vmatmul.mubr.bf16.gmra.mrb[0].mxu0 %v1465
      %v1562 = vpop.f32.mrb[0].mxu0
      %v1563 = vadd.f32 0.0, %v1562
      %v1564 = vpop.f32.mrb[0].mxu0
      %v1565 = vpop.f32.mrb[0].mxu0
      %v1566 = vadd.f32 0.0, %v1565
      %v1567 = vpop.f32.mrb[0].mxu0
      %1568 = vmatprep.mubr.bf16.mxu0 0
      %1569 = vmatmul.mubr.bf16.gmra.mrb[0].mxu0 %v1466
      %v1570 = vpop.f32.mrb[0].mxu0
      %v1571 = vadd.f32 0.0, %v1570
      %v1572 = vpop.f32.mrb[0].mxu0
      %v1573 = vpop.f32.mrb[0].mxu0
      %v1574 = vadd.f32 0.0, %v1573
      %v1575 = vpop.f32.mrb[0].mxu0
      %1576 = vmatprep.mubr.bf16.mxu0 0
      %1577 = vmatmul.mubr.bf16.gmra.mrb[0].mxu0 %v1467
      %v1578 = vpop.f32.mrb[0].mxu0
      %v1579 = vadd.f32 0.0, %v1578
      %v1580 = vpop.f32.mrb[0].mxu0
      %v1581 = vpop.f32.mrb[0].mxu0
      %v1582 = vadd.f32 0.0, %v1581
      %v1583 = vpop.f32.mrb[0].mxu0
      %1584 = vdwg.mxu0
      %v1585 = vadd.f32 %v1375, %v1555
      %v1586 = vadd.f32 %v1376, %v1558
      %v1587 = vadd.f32 %v1377, %v1563
      %v1588 = vadd.f32 %v1378, %v1566
      %v1589 = vadd.f32 %v1379, %v1571
      %v1590 = vadd.f32 %v1380, %v1574
      %v1591 = vadd.f32 %v1381, %v1579
      %v1592 = vadd.f32 %v1382, %v1582
      %s1593 = scalar_lea.vmem %s271, 16
      %v1594 = vld [vmem:[%s1593] sm:$0xf]
      %v1595 = vld [vmem:[%s1593 + $0x8] sm:$0xf]
      %v1596 = vld [vmem:[%s1593 + $0x10] sm:$0xf]
      %v1597 = vld [vmem:[%s1593 + $0x18] sm:$0xf]
      %v1598 = vld [vmem:[%s1593 + $0x20] sm:$0xf]
      %v1599 = vld [vmem:[%s1593 + $0x28] sm:$0xf]
      %v1600 = vld [vmem:[%s1593 + $0x30] sm:$0xf]
      %v1601 = vld [vmem:[%s1593 + $0x38] sm:$0xf]
      %s1602 = scalar_lea.vmem %s1, 384
      %v1603 = vld [vmem:[%s1602] sm:$0xf]
      %v1604 = vld [vmem:[%s1602 + $0x4] sm:$0xf]
      %v1605 = vld [vmem:[%s1602 + $0x8] sm:$0xf]
      %v1606 = vld [vmem:[%s1602 + $0xc] sm:$0xf]
      %v1607 = vld [vmem:[%s1602 + $0x10] sm:$0xf]
      %v1608 = vld [vmem:[%s1602 + $0x14] sm:$0xf]
      %v1609 = vld [vmem:[%s1602 + $0x18] sm:$0xf]
      %v1610 = vld [vmem:[%s1602 + $0x1c] sm:$0xf]
      %v1611 = vld [vmem:[%s1602 + $0x20] sm:$0xf]
      %v1612 = vld [vmem:[%s1602 + $0x24] sm:$0xf]
      %v1613 = vld [vmem:[%s1602 + $0x28] sm:$0xf]
      %v1614 = vld [vmem:[%s1602 + $0x2c] sm:$0xf]
      %v1615 = vld [vmem:[%s1602 + $0x30] sm:$0xf]
      %v1616 = vld [vmem:[%s1602 + $0x34] sm:$0xf]
      %v1617 = vld [vmem:[%s1602 + $0x38] sm:$0xf]
      %v1618 = vld [vmem:[%s1602 + $0x3c] sm:$0xf]
      %v1627 = vunpack.c.l.b16 %v1594
      %v1628 = vunpack.c.l.b16 %v1595
      %v1629 = vunpack.c.l.b16 %v1596
      %v1630 = vunpack.c.l.b16 %v1597
      %v1631 = vunpack.c.l.b16 %v1598
      %v1632 = vunpack.c.l.b16 %v1599
      %v1633 = vunpack.c.l.b16 %v1600
      %v1634 = vunpack.c.l.b16 %v1601
      %v1635 = vpack.c.b16 %v1628, %v1627
      %v1636 = vpack.c.b16 %v1630, %v1629
      %v1637 = vpack.c.b16 %v1632, %v1631
      %v1638 = vpack.c.b16 %v1634, %v1633
      %v1659 = vunpack.c.l.b16 %v1603
      %v1660 = vunpack.c.l.b16 %v1604
      %v1661 = vunpack.c.l.b16 %v1605
      %v1662 = vunpack.c.l.b16 %v1606
      %v1663 = vunpack.c.l.b16 %v1607
      %v1664 = vunpack.c.l.b16 %v1608
      %v1665 = vunpack.c.l.b16 %v1609
      %v1666 = vunpack.c.l.b16 %v1610
      %v1667 = vunpack.c.l.b16 %v1611
      %v1668 = vunpack.c.l.b16 %v1612
      %v1669 = vunpack.c.l.b16 %v1613
      %v1670 = vunpack.c.l.b16 %v1614
      %v1671 = vunpack.c.l.b16 %v1615
      %v1672 = vunpack.c.l.b16 %v1616
      %v1673 = vunpack.c.l.b16 %v1617
      %v1674 = vunpack.c.l.b16 %v1618
      %v1675 = vpack.c.b16 %v1660, %v1659
      %v1676 = vpack.c.b16 %v1662, %v1661
      %v1677 = vpack.c.b16 %v1664, %v1663
      %v1678 = vpack.c.b16 %v1666, %v1665
      %v1679 = vpack.c.b16 %v1668, %v1667
      %v1680 = vpack.c.b16 %v1670, %v1669
      %v1681 = vpack.c.b16 %v1672, %v1671
      %v1682 = vpack.c.b16 %v1674, %v1673
      %1691 = vmatprep.subr.bf16.mxu0 0
      %1692 = vmatpush1.bf16.msra.mxu0 %v1675
      %1693 = vmatprep.subr.bf16.mxu0 0
      %1694 = vmatpush1.bf16.msra.mxu0 %v1676
      %1695 = vmatprep.subr.bf16.mxu0 0
      %1696 = vmatpush1.bf16.msra.mxu0 %v1677
      %1697 = vmatprep.subr.bf16.mxu0 0
      %1698 = vmatpush1.bf16.msra.mxu0 %v1678
      %1699 = vmatprep.subr.bf16.mxu0 0
      %1700 = vmatpush1.bf16.msra.mxu0 %v1679
      %1701 = vmatprep.subr.bf16.mxu0 0
      %1702 = vmatpush1.bf16.msra.mxu0 %v1680
      %1703 = vmatprep.subr.bf16.mxu0 0
      %1704 = vmatpush1.bf16.msra.mxu0 %v1681
      %1705 = vmatprep.subr.bf16.mxu0 0
      %1706 = vmatpush1.bf16.msra.mxu0 %v1682
      %1707 = vmatprep.subr.bf16.mxu0 0
      %1708 = vmatpush1.bf16.msra.mxu0 0
      %1709 = vmatprep.subr.bf16.mxu0 0
      %1710 = vmatpush1.bf16.msra.mxu0 0
      %1711 = vmatprep.subr.bf16.mxu0 0
      %1712 = vmatpush1.bf16.msra.mxu0 0
      %1713 = vmatprep.subr.bf16.mxu0 0
      %1714 = vmatpush1.bf16.msra.mxu0 0
      %1715 = vmatprep.subr.bf16.mxu0 0
      %1716 = vmatpush1.bf16.msra.mxu0 0
      %1717 = vmatprep.subr.bf16.mxu0 0
      %1718 = vmatpush1.bf16.msra.mxu0 0
      %1719 = vmatprep.subr.bf16.mxu0 0
      %1720 = vmatpush1.bf16.msra.mxu0 0
      %1721 = vmatprep.subr.bf16.mxu0 0
      %1722 = vmatpush1.bf16.msra.mxu0 0
      %1723 = vmatprep.mubr.bf16.mxu0 0
      %1724 = vmatmul.mubr.bf16.gmra.mrb[0].mxu0 %v1635
      %v1725 = vpop.f32.mrb[0].mxu0
      %v1726 = vadd.f32 0.0, %v1725
      %v1727 = vpop.f32.mrb[0].mxu0
      %v1728 = vpop.f32.mrb[0].mxu0
      %v1729 = vadd.f32 0.0, %v1728
      %v1730 = vpop.f32.mrb[0].mxu0
      %1731 = vmatprep.mubr.bf16.mxu0 0
      %1732 = vmatmul.mubr.bf16.gmra.mrb[0].mxu0 %v1636
      %v1733 = vpop.f32.mrb[0].mxu0
      %v1734 = vadd.f32 0.0, %v1733
      %v1735 = vpop.f32.mrb[0].mxu0
      %v1736 = vpop.f32.mrb[0].mxu0
      %v1737 = vadd.f32 0.0, %v1736
      %v1738 = vpop.f32.mrb[0].mxu0
      %1739 = vmatprep.mubr.bf16.mxu0 0
      %1740 = vmatmul.mubr.bf16.gmra.mrb[0].mxu0 %v1637
      %v1741 = vpop.f32.mrb[0].mxu0
      %v1742 = vadd.f32 0.0, %v1741
      %v1743 = vpop.f32.mrb[0].mxu0
      %v1744 = vpop.f32.mrb[0].mxu0
      %v1745 = vadd.f32 0.0, %v1744
      %v1746 = vpop.f32.mrb[0].mxu0
      %1747 = vmatprep.mubr.bf16.mxu0 0
      %1748 = vmatmul.mubr.bf16.gmra.mrb[0].mxu0 %v1638
      %v1749 = vpop.f32.mrb[0].mxu0
      %v1750 = vadd.f32 0.0, %v1749
      %v1751 = vpop.f32.mrb[0].mxu0
      %v1752 = vpop.f32.mrb[0].mxu0
      %v1753 = vadd.f32 0.0, %v1752
      %v1754 = vpop.f32.mrb[0].mxu0
      %1755 = vdwg.mxu0
      %v1756 = vadd.f32 %v1585, %v1726
      %v1757 = vadd.f32 %v1586, %v1729
      %v1758 = vadd.f32 %v1587, %v1734
      %v1759 = vadd.f32 %v1588, %v1737
      %v1760 = vadd.f32 %v1589, %v1742
      %v1761 = vadd.f32 %v1590, %v1745
      %v1762 = vadd.f32 %v1591, %v1750
      %v1763 = vadd.f32 %v1592, %v1753
      %v1764 = vld [vmem:[%s1593] sm:$0xf]
      %v1765 = vld [vmem:[%s1593 + $0x4] sm:$0x1]
      %v1766 = vld [vmem:[%s1593 + $0x8] sm:$0xf]
      %v1767 = vld [vmem:[%s1593 + $0xc] sm:$0x1]
      %v1768 = vld [vmem:[%s1593 + $0x10] sm:$0xf]
      %v1769 = vld [vmem:[%s1593 + $0x14] sm:$0x1]
      %v1770 = vld [vmem:[%s1593 + $0x18] sm:$0xf]
      %v1771 = vld [vmem:[%s1593 + $0x1c] sm:$0x1]
      %v1772 = vld [vmem:[%s1593 + $0x20] sm:$0xf]
      %v1773 = vld [vmem:[%s1593 + $0x24] sm:$0x1]
      %v1774 = vld [vmem:[%s1593 + $0x28] sm:$0xf]
      %v1775 = vld [vmem:[%s1593 + $0x2c] sm:$0x1]
      %v1776 = vld [vmem:[%s1593 + $0x30] sm:$0xf]
      %v1777 = vld [vmem:[%s1593 + $0x34] sm:$0x1]
      %v1778 = vld [vmem:[%s1593 + $0x38] sm:$0xf]
      %v1779 = vld [vmem:[%s1593 + $0x3c] sm:$0x1]
      %v1781 = vshrl.u32 %v1764, 16
      %v1783 = vrot.slane %v1781, 4
      %v1784 = vshll.u32 %v1764, 16
      %v1786 = vrot.slane %v1784, 5
      %v1787 = vor.u32 %v1783, %v1786
      %v1788 = vrot.slane %v1787, 4
      %v1790 = vshll.u32 %v1765, 16
      %v1792 = vrot.slane %v1790, 5
      %v1793 = vsel %vm321, %v1788, %v1792
      %v1795 = vshrl.u32 %v1766, 16
      %v1797 = vrot.slane %v1795, 4
      %v1798 = vshll.u32 %v1766, 16
      %v1800 = vrot.slane %v1798, 5
      %v1801 = vor.u32 %v1797, %v1800
      %v1802 = vrot.slane %v1801, 4
      %v1804 = vshll.u32 %v1767, 16
      %v1806 = vrot.slane %v1804, 5
      %v1807 = vsel %vm321, %v1802, %v1806
      %v1809 = vshrl.u32 %v1768, 16
      %v1811 = vrot.slane %v1809, 4
      %v1812 = vshll.u32 %v1768, 16
      %v1814 = vrot.slane %v1812, 5
      %v1815 = vor.u32 %v1811, %v1814
      %v1816 = vrot.slane %v1815, 4
      %v1818 = vshll.u32 %v1769, 16
      %v1820 = vrot.slane %v1818, 5
      %v1821 = vsel %vm321, %v1816, %v1820
      %v1823 = vshrl.u32 %v1770, 16
      %v1825 = vrot.slane %v1823, 4
      %v1826 = vshll.u32 %v1770, 16
      %v1828 = vrot.slane %v1826, 5
      %v1829 = vor.u32 %v1825, %v1828
      %v1830 = vrot.slane %v1829, 4
      %v1832 = vshll.u32 %v1771, 16
      %v1834 = vrot.slane %v1832, 5
      %v1835 = vsel %vm321, %v1830, %v1834
      %v1837 = vshrl.u32 %v1772, 16
      %v1839 = vrot.slane %v1837, 4
      %v1840 = vshll.u32 %v1772, 16
      %v1842 = vrot.slane %v1840, 5
      %v1843 = vor.u32 %v1839, %v1842
      %v1844 = vrot.slane %v1843, 4
      %v1846 = vshll.u32 %v1773, 16
      %v1848 = vrot.slane %v1846, 5
      %v1849 = vsel %vm321, %v1844, %v1848
      %v1851 = vshrl.u32 %v1774, 16
      %v1853 = vrot.slane %v1851, 4
      %v1854 = vshll.u32 %v1774, 16
      %v1856 = vrot.slane %v1854, 5
      %v1857 = vor.u32 %v1853, %v1856
      %v1858 = vrot.slane %v1857, 4
      %v1860 = vshll.u32 %v1775, 16
      %v1862 = vrot.slane %v1860, 5
      %v1863 = vsel %vm321, %v1858, %v1862
      %v1865 = vshrl.u32 %v1776, 16
      %v1867 = vrot.slane %v1865, 4
      %v1868 = vshll.u32 %v1776, 16
      %v1870 = vrot.slane %v1868, 5
      %v1871 = vor.u32 %v1867, %v1870
      %v1872 = vrot.slane %v1871, 4
      %v1874 = vshll.u32 %v1777, 16
      %v1876 = vrot.slane %v1874, 5
      %v1877 = vsel %vm321, %v1872, %v1876
      %v1879 = vshrl.u32 %v1778, 16
      %v1881 = vrot.slane %v1879, 4
      %v1882 = vshll.u32 %v1778, 16
      %v1884 = vrot.slane %v1882, 5
      %v1885 = vor.u32 %v1881, %v1884
      %v1886 = vrot.slane %v1885, 4
      %v1888 = vshll.u32 %v1779, 16
      %v1890 = vrot.slane %v1888, 5
      %v1891 = vsel %vm321, %v1886, %v1890
      %s1892 = scalar_lea.vmem %s1, 448
      %v1893 = vld [vmem:[%s1892] sm:$0xf]
      %v1894 = vld [vmem:[%s1892 + $0x4] sm:$0xf]
      %v1895 = vld [vmem:[%s1892 + $0x8] sm:$0xf]
      %v1896 = vld [vmem:[%s1892 + $0xc] sm:$0xf]
      %v1897 = vld [vmem:[%s1892 + $0x10] sm:$0xf]
      %v1898 = vld [vmem:[%s1892 + $0x14] sm:$0xf]
      %v1899 = vld [vmem:[%s1892 + $0x18] sm:$0xf]
      %v1900 = vld [vmem:[%s1892 + $0x1c] sm:$0xf]
      %v1901 = vld [vmem:[%s1892 + $0x20] sm:$0xf]
      %v1902 = vld [vmem:[%s1892 + $0x24] sm:$0xf]
      %v1903 = vld [vmem:[%s1892 + $0x28] sm:$0xf]
      %v1904 = vld [vmem:[%s1892 + $0x2c] sm:$0xf]
      %v1905 = vld [vmem:[%s1892 + $0x30] sm:$0xf]
      %v1906 = vld [vmem:[%s1892 + $0x34] sm:$0xf]
      %v1907 = vld [vmem:[%s1892 + $0x38] sm:$0xf]
      %v1908 = vld [vmem:[%s1892 + $0x3c] sm:$0xf]
      %v1909 = vunpack.c.l.b16 %v1793
      %v1910 = vunpack.c.l.b16 %v1807
      %v1911 = vunpack.c.l.b16 %v1821
      %v1912 = vunpack.c.l.b16 %v1835
      %v1913 = vunpack.c.l.b16 %v1849
      %v1914 = vunpack.c.l.b16 %v1863
      %v1915 = vunpack.c.l.b16 %v1877
      %v1916 = vunpack.c.l.b16 %v1891
      %v1917 = vpack.c.b16 %v1910, %v1909
      %v1918 = vpack.c.b16 %v1912, %v1911
      %v1919 = vpack.c.b16 %v1914, %v1913
      %v1920 = vpack.c.b16 %v1916, %v1915
      %v1941 = vunpack.c.l.b16 %v1893
      %v1942 = vunpack.c.l.b16 %v1894
      %v1943 = vunpack.c.l.b16 %v1895
      %v1944 = vunpack.c.l.b16 %v1896
      %v1945 = vunpack.c.l.b16 %v1897
      %v1946 = vunpack.c.l.b16 %v1898
      %v1947 = vunpack.c.l.b16 %v1899
      %v1948 = vunpack.c.l.b16 %v1900
      %v1949 = vunpack.c.l.b16 %v1901
      %v1950 = vunpack.c.l.b16 %v1902
      %v1951 = vunpack.c.l.b16 %v1903
      %v1952 = vunpack.c.l.b16 %v1904
      %v1953 = vunpack.c.l.b16 %v1905
      %v1954 = vunpack.c.l.b16 %v1906
      %v1955 = vunpack.c.l.b16 %v1907
      %v1956 = vunpack.c.l.b16 %v1908
      %v1957 = vpack.c.b16 %v1942, %v1941
      %v1958 = vpack.c.b16 %v1944, %v1943
      %v1959 = vpack.c.b16 %v1946, %v1945
      %v1960 = vpack.c.b16 %v1948, %v1947
      %v1961 = vpack.c.b16 %v1950, %v1949
      %v1962 = vpack.c.b16 %v1952, %v1951
      %v1963 = vpack.c.b16 %v1954, %v1953
      %v1964 = vpack.c.b16 %v1956, %v1955
      %1973 = vmatprep.subr.bf16.mxu0 0
      %1974 = vmatpush1.bf16.msra.mxu0 %v1957
      %1975 = vmatprep.subr.bf16.mxu0 0
      %1976 = vmatpush1.bf16.msra.mxu0 %v1958
      %1977 = vmatprep.subr.bf16.mxu0 0
      %1978 = vmatpush1.bf16.msra.mxu0 %v1959
      %1979 = vmatprep.subr.bf16.mxu0 0
      %1980 = vmatpush1.bf16.msra.mxu0 %v1960
      %1981 = vmatprep.subr.bf16.mxu0 0
      %1982 = vmatpush1.bf16.msra.mxu0 %v1961
      %1983 = vmatprep.subr.bf16.mxu0 0
      %1984 = vmatpush1.bf16.msra.mxu0 %v1962
      %1985 = vmatprep.subr.bf16.mxu0 0
      %1986 = vmatpush1.bf16.msra.mxu0 %v1963
      %1987 = vmatprep.subr.bf16.mxu0 0
      %1988 = vmatpush1.bf16.msra.mxu0 %v1964
      %1989 = vmatprep.subr.bf16.mxu0 0
      %1990 = vmatpush1.bf16.msra.mxu0 0
      %1991 = vmatprep.subr.bf16.mxu0 0
      %1992 = vmatpush1.bf16.msra.mxu0 0
      %1993 = vmatprep.subr.bf16.mxu0 0
      %1994 = vmatpush1.bf16.msra.mxu0 0
      %1995 = vmatprep.subr.bf16.mxu0 0
      %1996 = vmatpush1.bf16.msra.mxu0 0
      %1997 = vmatprep.subr.bf16.mxu0 0
      %1998 = vmatpush1.bf16.msra.mxu0 0
      %1999 = vmatprep.subr.bf16.mxu0 0
      %2000 = vmatpush1.bf16.msra.mxu0 0
      %2001 = vmatprep.subr.bf16.mxu0 0
      %2002 = vmatpush1.bf16.msra.mxu0 0
      %2003 = vmatprep.subr.bf16.mxu0 0
      %2004 = vmatpush1.bf16.msra.mxu0 0
      %2005 = vmatprep.mubr.bf16.mxu0 0
      %2006 = vmatmul.mubr.bf16.gmra.mrb[0].mxu0 %v1917
      %v2007 = vpop.f32.mrb[0].mxu0
      %v2008 = vadd.f32 0.0, %v2007
      %v2009 = vpop.f32.mrb[0].mxu0
      %v2010 = vpop.f32.mrb[0].mxu0
      %v2011 = vadd.f32 0.0, %v2010
      %v2012 = vpop.f32.mrb[0].mxu0
      %2013 = vmatprep.mubr.bf16.mxu0 0
      %2014 = vmatmul.mubr.bf16.gmra.mrb[0].mxu0 %v1918
      %v2015 = vpop.f32.mrb[0].mxu0
      %v2016 = vadd.f32 0.0, %v2015
      %v2017 = vpop.f32.mrb[0].mxu0
      %v2018 = vpop.f32.mrb[0].mxu0
      %v2019 = vadd.f32 0.0, %v2018
      %v2020 = vpop.f32.mrb[0].mxu0
      %2021 = vmatprep.mubr.bf16.mxu0 0
      %2022 = vmatmul.mubr.bf16.gmra.mrb[0].mxu0 %v1919
      %v2023 = vpop.f32.mrb[0].mxu0
      %v2024 = vadd.f32 0.0, %v2023
      %v2025 = vpop.f32.mrb[0].mxu0
      %v2026 = vpop.f32.mrb[0].mxu0
      %v2027 = vadd.f32 0.0, %v2026
      %v2028 = vpop.f32.mrb[0].mxu0
      %2029 = vmatprep.mubr.bf16.mxu0 0
      %2030 = vmatmul.mubr.bf16.gmra.mrb[0].mxu0 %v1920
      %v2031 = vpop.f32.mrb[0].mxu0
      %v2032 = vadd.f32 0.0, %v2031
      %v2033 = vpop.f32.mrb[0].mxu0
      %v2034 = vpop.f32.mrb[0].mxu0
      %v2035 = vadd.f32 0.0, %v2034
      %v2036 = vpop.f32.mrb[0].mxu0
      %2037 = vdwg.mxu0
      %v2038 = vadd.f32 %v1756, %v2008
      %v2039 = vadd.f32 %v1757, %v2011
      %v2040 = vadd.f32 %v1758, %v2016
      %v2041 = vadd.f32 %v1759, %v2019
      %v2042 = vadd.f32 %v1760, %v2024
      %v2043 = vadd.f32 %v1761, %v2027
      %v2044 = vadd.f32 %v1762, %v2032
      %v2045 = vadd.f32 %v1763, %v2035
      %v2046 = vld [vmem:[%s1593] sm:$0xe]
      %v2047 = vld [vmem:[%s1593 + $0x8] sm:$0xe]
      %v2048 = vld [vmem:[%s1593 + $0x10] sm:$0xe]
      %v2049 = vld [vmem:[%s1593 + $0x18] sm:$0xe]
      %v2050 = vld [vmem:[%s1593 + $0x20] sm:$0xe]
      %v2051 = vld [vmem:[%s1593 + $0x28] sm:$0xe]
      %v2052 = vld [vmem:[%s1593 + $0x30] sm:$0xe]
      %v2053 = vld [vmem:[%s1593 + $0x38] sm:$0xe]
      %v2070 = vrot.slane %v2046, 5
      %v2071 = vrot.slane %v2070, 4
      %v2072 = vrot.slane %v1765, 5
      %v2073 = vsel %vm743, %v2071, %v2072
      %v2074 = vrot.slane %v2047, 5
      %v2075 = vrot.slane %v2074, 4
      %v2076 = vrot.slane %v1767, 5
      %v2077 = vsel %vm743, %v2075, %v2076
      %v2078 = vrot.slane %v2048, 5
      %v2079 = vrot.slane %v2078, 4
      %v2080 = vrot.slane %v1769, 5
      %v2081 = vsel %vm743, %v2079, %v2080
      %v2082 = vrot.slane %v2049, 5
      %v2083 = vrot.slane %v2082, 4
      %v2084 = vrot.slane %v1771, 5
      %v2085 = vsel %vm743, %v2083, %v2084
      %v2086 = vrot.slane %v2050, 5
      %v2087 = vrot.slane %v2086, 4
      %v2088 = vrot.slane %v1773, 5
      %v2089 = vsel %vm743, %v2087, %v2088
      %v2090 = vrot.slane %v2051, 5
      %v2091 = vrot.slane %v2090, 4
      %v2092 = vrot.slane %v1775, 5
      %v2093 = vsel %vm743, %v2091, %v2092
      %v2094 = vrot.slane %v2052, 5
      %v2095 = vrot.slane %v2094, 4
      %v2096 = vrot.slane %v1777, 5
      %v2097 = vsel %vm743, %v2095, %v2096
      %v2098 = vrot.slane %v2053, 5
      %v2099 = vrot.slane %v2098, 4
      %v2100 = vrot.slane %v1779, 5
      %v2101 = vsel %vm743, %v2099, %v2100
      %s2102 = scalar_lea.vmem %s1, 512
      %v2103 = vld [vmem:[%s2102] sm:$0xf]
      %v2104 = vld [vmem:[%s2102 + $0x4] sm:$0xf]
      %v2105 = vld [vmem:[%s2102 + $0x8] sm:$0xf]
      %v2106 = vld [vmem:[%s2102 + $0xc] sm:$0xf]
      %v2107 = vld [vmem:[%s2102 + $0x10] sm:$0xf]
      %v2108 = vld [vmem:[%s2102 + $0x14] sm:$0xf]
      %v2109 = vld [vmem:[%s2102 + $0x18] sm:$0xf]
      %v2110 = vld [vmem:[%s2102 + $0x1c] sm:$0xf]
      %v2111 = vld [vmem:[%s2102 + $0x20] sm:$0xf]
      %v2112 = vld [vmem:[%s2102 + $0x24] sm:$0xf]
      %v2113 = vld [vmem:[%s2102 + $0x28] sm:$0xf]
      %v2114 = vld [vmem:[%s2102 + $0x2c] sm:$0xf]
      %v2115 = vld [vmem:[%s2102 + $0x30] sm:$0xf]
      %v2116 = vld [vmem:[%s2102 + $0x34] sm:$0xf]
      %v2117 = vld [vmem:[%s2102 + $0x38] sm:$0xf]
      %v2118 = vld [vmem:[%s2102 + $0x3c] sm:$0xf]
      %v2119 = vunpack.c.l.b16 %v2073
      %v2120 = vunpack.c.l.b16 %v2077
      %v2121 = vunpack.c.l.b16 %v2081
      %v2122 = vunpack.c.l.b16 %v2085
      %v2123 = vunpack.c.l.b16 %v2089
      %v2124 = vunpack.c.l.b16 %v2093
      %v2125 = vunpack.c.l.b16 %v2097
      %v2126 = vunpack.c.l.b16 %v2101
      %v2127 = vpack.c.b16 %v2120, %v2119
      %v2128 = vpack.c.b16 %v2122, %v2121
      %v2129 = vpack.c.b16 %v2124, %v2123
      %v2130 = vpack.c.b16 %v2126, %v2125
      %v2151 = vunpack.c.l.b16 %v2103
      %v2152 = vunpack.c.l.b16 %v2104
      %v2153 = vunpack.c.l.b16 %v2105
      %v2154 = vunpack.c.l.b16 %v2106
      %v2155 = vunpack.c.l.b16 %v2107
      %v2156 = vunpack.c.l.b16 %v2108
      %v2157 = vunpack.c.l.b16 %v2109
      %v2158 = vunpack.c.l.b16 %v2110
      %v2159 = vunpack.c.l.b16 %v2111
      %v2160 = vunpack.c.l.b16 %v2112
      %v2161 = vunpack.c.l.b16 %v2113
      %v2162 = vunpack.c.l.b16 %v2114
      %v2163 = vunpack.c.l.b16 %v2115
      %v2164 = vunpack.c.l.b16 %v2116
      %v2165 = vunpack.c.l.b16 %v2117
      %v2166 = vunpack.c.l.b16 %v2118
      %v2167 = vpack.c.b16 %v2152, %v2151
      %v2168 = vpack.c.b16 %v2154, %v2153
      %v2169 = vpack.c.b16 %v2156, %v2155
      %v2170 = vpack.c.b16 %v2158, %v2157
      %v2171 = vpack.c.b16 %v2160, %v2159
      %v2172 = vpack.c.b16 %v2162, %v2161
      %v2173 = vpack.c.b16 %v2164, %v2163
      %v2174 = vpack.c.b16 %v2166, %v2165
      %2183 = vmatprep.subr.bf16.mxu0 0
      %2184 = vmatpush1.bf16.msra.mxu0 %v2167
      %2185 = vmatprep.subr.bf16.mxu0 0
      %2186 = vmatpush1.bf16.msra.mxu0 %v2168
      %2187 = vmatprep.subr.bf16.mxu0 0
      %2188 = vmatpush1.bf16.msra.mxu0 %v2169
      %2189 = vmatprep.subr.bf16.mxu0 0
      %2190 = vmatpush1.bf16.msra.mxu0 %v2170
      %2191 = vmatprep.subr.bf16.mxu0 0
      %2192 = vmatpush1.bf16.msra.mxu0 %v2171
      %2193 = vmatprep.subr.bf16.mxu0 0
      %2194 = vmatpush1.bf16.msra.mxu0 %v2172
      %2195 = vmatprep.subr.bf16.mxu0 0
      %2196 = vmatpush1.bf16.msra.mxu0 %v2173
      %2197 = vmatprep.subr.bf16.mxu0 0
      %2198 = vmatpush1.bf16.msra.mxu0 %v2174
      %2199 = vmatprep.subr.bf16.mxu0 0
      %2200 = vmatpush1.bf16.msra.mxu0 0
      %2201 = vmatprep.subr.bf16.mxu0 0
      %2202 = vmatpush1.bf16.msra.mxu0 0
      %2203 = vmatprep.subr.bf16.mxu0 0
      %2204 = vmatpush1.bf16.msra.mxu0 0
      %2205 = vmatprep.subr.bf16.mxu0 0
      %2206 = vmatpush1.bf16.msra.mxu0 0
      %2207 = vmatprep.subr.bf16.mxu0 0
      %2208 = vmatpush1.bf16.msra.mxu0 0
      %2209 = vmatprep.subr.bf16.mxu0 0
      %2210 = vmatpush1.bf16.msra.mxu0 0
      %2211 = vmatprep.subr.bf16.mxu0 0
      %2212 = vmatpush1.bf16.msra.mxu0 0
      %2213 = vmatprep.subr.bf16.mxu0 0
      %2214 = vmatpush1.bf16.msra.mxu0 0
      %2215 = vmatprep.mubr.bf16.mxu0 0
      %2216 = vmatmul.mubr.bf16.gmra.mrb[0].mxu0 %v2127
      %v2217 = vpop.f32.mrb[0].mxu0
      %v2218 = vadd.f32 0.0, %v2217
      %v2219 = vpop.f32.mrb[0].mxu0
      %v2220 = vpop.f32.mrb[0].mxu0
      %v2221 = vadd.f32 0.0, %v2220
      %v2222 = vpop.f32.mrb[0].mxu0
      %2223 = vmatprep.mubr.bf16.mxu0 0
      %2224 = vmatmul.mubr.bf16.gmra.mrb[0].mxu0 %v2128
      %v2225 = vpop.f32.mrb[0].mxu0
      %v2226 = vadd.f32 0.0, %v2225
      %v2227 = vpop.f32.mrb[0].mxu0
      %v2228 = vpop.f32.mrb[0].mxu0
      %v2229 = vadd.f32 0.0, %v2228
      %v2230 = vpop.f32.mrb[0].mxu0
      %2231 = vmatprep.mubr.bf16.mxu0 0
      %2232 = vmatmul.mubr.bf16.gmra.mrb[0].mxu0 %v2129
      %v2233 = vpop.f32.mrb[0].mxu0
      %v2234 = vadd.f32 0.0, %v2233
      %v2235 = vpop.f32.mrb[0].mxu0
      %v2236 = vpop.f32.mrb[0].mxu0
      %v2237 = vadd.f32 0.0, %v2236
      %v2238 = vpop.f32.mrb[0].mxu0
      %2239 = vmatprep.mubr.bf16.mxu0 0
      %2240 = vmatmul.mubr.bf16.gmra.mrb[0].mxu0 %v2130
      %v2241 = vpop.f32.mrb[0].mxu0
      %v2242 = vadd.f32 0.0, %v2241
      %v2243 = vpop.f32.mrb[0].mxu0
      %v2244 = vpop.f32.mrb[0].mxu0
      %v2245 = vadd.f32 0.0, %v2244
      %v2246 = vpop.f32.mrb[0].mxu0
      %2247 = vdwg.mxu0
      %v2248 = vadd.f32 %v2038, %v2218
      %v2249 = vadd.f32 %v2039, %v2221
      %v2250 = vadd.f32 %v2040, %v2226
      %v2251 = vadd.f32 %v2041, %v2229
      %v2252 = vadd.f32 %v2042, %v2234
      %v2253 = vadd.f32 %v2043, %v2237
      %v2254 = vadd.f32 %v2044, %v2242
      %v2255 = vadd.f32 %v2045, %v2245
      %v2256 = vld [vmem:[%s2] sm:$0x1]
      %v2258 = vlaneseq
      %v2259 = vshrl.u32 %v2258, 7
      %v2260 = vsub.s32 0, %v2259
      %v2261 = vrot.slane %v2256, %v2260
      %v2263 = vadd.f32 %v2248, %v2261
      %v2264 = vadd.f32 %v2249, %v2261
      %v2265 = vadd.f32 %v2250, %v2261
      %v2266 = vadd.f32 %v2251, %v2261
      %v2267 = vadd.f32 %v2252, %v2261
      %v2268 = vadd.f32 %v2253, %v2261
      %v2269 = vadd.f32 %v2254, %v2261
      %v2270 = vadd.f32 %v2255, %v2261
      %v2271 = vmax.f32 %v2263, 0.0
      %v2272 = vmax.f32 %v2264, 0.0
      %v2273 = vmax.f32 %v2265, 0.0
      %v2274 = vmax.f32 %v2266, 0.0
      %v2275 = vmax.f32 %v2267, 0.0
      %v2276 = vmax.f32 %v2268, 0.0
      %v2277 = vmax.f32 %v2269, 0.0
      %v2278 = vmax.f32 %v2270, 0.0
      %v2279 = vld [vmem:[%s278] sm:$0xf]
      %v2280 = vld [vmem:[%s278 + $0x8] sm:$0xf]
      %v2281 = vld [vmem:[%s278 + $0x10] sm:$0xf]
      %v2282 = vld [vmem:[%s278 + $0x18] sm:$0xf]
      %v2283 = vld [vmem:[%s278 + $0x20] sm:$0xf]
      %v2284 = vld [vmem:[%s278 + $0x28] sm:$0xf]
      %v2285 = vld [vmem:[%s278 + $0x30] sm:$0xf]
      %v2286 = vld [vmem:[%s278 + $0x38] sm:$0xf]
      %v2287 = vld [vmem:[%s4] sm:$0xf]
      %v2288 = vld [vmem:[%s4 + $0x4] sm:$0xf]
      %v2289 = vld [vmem:[%s4 + $0x8] sm:$0xf]
      %v2290 = vld [vmem:[%s4 + $0xc] sm:$0xf]
      %v2291 = vld [vmem:[%s4 + $0x10] sm:$0xf]
      %v2292 = vld [vmem:[%s4 + $0x14] sm:$0xf]
      %v2293 = vld [vmem:[%s4 + $0x18] sm:$0xf]
      %v2294 = vld [vmem:[%s4 + $0x1c] sm:$0xf]
      %v2295 = vld [vmem:[%s4 + $0x20] sm:$0xf]
      %v2296 = vld [vmem:[%s4 + $0x24] sm:$0xf]
      %v2297 = vld [vmem:[%s4 + $0x28] sm:$0xf]
      %v2298 = vld [vmem:[%s4 + $0x2c] sm:$0xf]
      %v2299 = vld [vmem:[%s4 + $0x30] sm:$0xf]
      %v2300 = vld [vmem:[%s4 + $0x34] sm:$0xf]
      %v2301 = vld [vmem:[%s4 + $0x38] sm:$0xf]
      %v2302 = vld [vmem:[%s4 + $0x3c] sm:$0xf]
      %v2303 = vld [vmem:[%s5] sm:$0x1]
      %v2305 = vlaneseq
      %v2306 = vshrl.u32 %v2305, 7
      %v2307 = vsub.s32 0, %v2306
      %v2308 = vrot.slane %v2303, %v2307
      %v2318 = vunpack.c.l.b16 %v2279
      %v2319 = vunpack.c.l.b16 %v2280
      %v2320 = vunpack.c.l.b16 %v2281
      %v2321 = vunpack.c.l.b16 %v2282
      %v2322 = vunpack.c.l.b16 %v2283
      %v2323 = vunpack.c.l.b16 %v2284
      %v2324 = vunpack.c.l.b16 %v2285
      %v2325 = vunpack.c.l.b16 %v2286
      %v2326 = vpack.c.b16 %v2319, %v2318
      %v2327 = vpack.c.b16 %v2321, %v2320
      %v2328 = vpack.c.b16 %v2323, %v2322
      %v2329 = vpack.c.b16 %v2325, %v2324
      %v2350 = vunpack.c.l.b16 %v2287
      %v2351 = vunpack.c.l.b16 %v2288
      %v2352 = vunpack.c.l.b16 %v2289
      %v2353 = vunpack.c.l.b16 %v2290
      %v2354 = vunpack.c.l.b16 %v2291
      %v2355 = vunpack.c.l.b16 %v2292
      %v2356 = vunpack.c.l.b16 %v2293
      %v2357 = vunpack.c.l.b16 %v2294
      %v2358 = vunpack.c.l.b16 %v2295
      %v2359 = vunpack.c.l.b16 %v2296
      %v2360 = vunpack.c.l.b16 %v2297
      %v2361 = vunpack.c.l.b16 %v2298
      %v2362 = vunpack.c.l.b16 %v2299
      %v2363 = vunpack.c.l.b16 %v2300
      %v2364 = vunpack.c.l.b16 %v2301
      %v2365 = vunpack.c.l.b16 %v2302
      %v2366 = vpack.c.b16 %v2351, %v2350
      %v2367 = vpack.c.b16 %v2353, %v2352
      %v2368 = vpack.c.b16 %v2355, %v2354
      %v2369 = vpack.c.b16 %v2357, %v2356
      %v2370 = vpack.c.b16 %v2359, %v2358
      %v2371 = vpack.c.b16 %v2361, %v2360
      %v2372 = vpack.c.b16 %v2363, %v2362
      %v2373 = vpack.c.b16 %v2365, %v2364
      %2382 = vmatprep.subr.bf16.mxu0 0
      %2383 = vmatpush1.bf16.msra.mxu0 %v2366
      %2384 = vmatprep.subr.bf16.mxu0 0
      %2385 = vmatpush1.bf16.msra.mxu0 %v2367
      %2386 = vmatprep.subr.bf16.mxu0 0
      %2387 = vmatpush1.bf16.msra.mxu0 %v2368
      %2388 = vmatprep.subr.bf16.mxu0 0
      %2389 = vmatpush1.bf16.msra.mxu0 %v2369
      %2390 = vmatprep.subr.bf16.mxu0 0
      %2391 = vmatpush1.bf16.msra.mxu0 %v2370
      %2392 = vmatprep.subr.bf16.mxu0 0
      %2393 = vmatpush1.bf16.msra.mxu0 %v2371
      %2394 = vmatprep.subr.bf16.mxu0 0
      %2395 = vmatpush1.bf16.msra.mxu0 %v2372
      %2396 = vmatprep.subr.bf16.mxu0 0
      %2397 = vmatpush1.bf16.msra.mxu0 %v2373
      %2398 = vmatprep.subr.bf16.mxu0 0
      %2399 = vmatpush1.bf16.msra.mxu0 0
      %2400 = vmatprep.subr.bf16.mxu0 0
      %2401 = vmatpush1.bf16.msra.mxu0 0
      %2402 = vmatprep.subr.bf16.mxu0 0
      %2403 = vmatpush1.bf16.msra.mxu0 0
      %2404 = vmatprep.subr.bf16.mxu0 0
      %2405 = vmatpush1.bf16.msra.mxu0 0
      %2406 = vmatprep.subr.bf16.mxu0 0
      %2407 = vmatpush1.bf16.msra.mxu0 0
      %2408 = vmatprep.subr.bf16.mxu0 0
      %2409 = vmatpush1.bf16.msra.mxu0 0
      %2410 = vmatprep.subr.bf16.mxu0 0
      %2411 = vmatpush1.bf16.msra.mxu0 0
      %2412 = vmatprep.subr.bf16.mxu0 0
      %2413 = vmatpush1.bf16.msra.mxu0 0
      %2414 = vmatprep.mubr.bf16.mxu0 0
      %2415 = vmatmul.mubr.bf16.gmra.mrb[0].mxu0 %v2326
      %v2416 = vpop.f32.mrb[0].mxu0
      %v2417 = vadd.f32 %v2308, %v2416
      %v2418 = vpop.f32.mrb[0].mxu0
      %v2419 = vpop.f32.mrb[0].mxu0
      %v2420 = vadd.f32 %v2308, %v2419
      %v2421 = vpop.f32.mrb[0].mxu0
      %2422 = vmatprep.mubr.bf16.mxu0 0
      %2423 = vmatmul.mubr.bf16.gmra.mrb[0].mxu0 %v2327
      %v2424 = vpop.f32.mrb[0].mxu0
      %v2425 = vadd.f32 %v2308, %v2424
      %v2426 = vpop.f32.mrb[0].mxu0
      %v2427 = vpop.f32.mrb[0].mxu0
      %v2428 = vadd.f32 %v2308, %v2427
      %v2429 = vpop.f32.mrb[0].mxu0
      %2430 = vmatprep.mubr.bf16.mxu0 0
      %2431 = vmatmul.mubr.bf16.gmra.mrb[0].mxu0 %v2328
      %v2432 = vpop.f32.mrb[0].mxu0
      %v2433 = vadd.f32 %v2308, %v2432
      %v2434 = vpop.f32.mrb[0].mxu0
      %v2435 = vpop.f32.mrb[0].mxu0
      %v2436 = vadd.f32 %v2308, %v2435
      %v2437 = vpop.f32.mrb[0].mxu0
      %2438 = vmatprep.mubr.bf16.mxu0 0
      %2439 = vmatmul.mubr.bf16.gmra.mrb[0].mxu0 %v2329
      %v2440 = vpop.f32.mrb[0].mxu0
      %v2441 = vadd.f32 %v2308, %v2440
      %v2442 = vpop.f32.mrb[0].mxu0
      %v2443 = vpop.f32.mrb[0].mxu0
      %v2444 = vadd.f32 %v2308, %v2443
      %v2445 = vpop.f32.mrb[0].mxu0
      %2446 = vdwg.mxu0
      %v2447 = vmax.f32 %v2417, 0.0
      %v2448 = vmax.f32 %v2420, 0.0
      %v2449 = vmax.f32 %v2425, 0.0
      %v2450 = vmax.f32 %v2428, 0.0
      %v2451 = vmax.f32 %v2433, 0.0
      %v2452 = vmax.f32 %v2436, 0.0
      %v2453 = vmax.f32 %v2441, 0.0
      %v2454 = vmax.f32 %v2444, 0.0
      %v2455 = vadd.f32 %v2271, %v2447
      %v2456 = vadd.f32 %v2272, %v2448
      %v2457 = vadd.f32 %v2273, %v2449
      %v2458 = vadd.f32 %v2274, %v2450
      %v2459 = vadd.f32 %v2275, %v2451
      %v2460 = vadd.f32 %v2276, %v2452
      %v2461 = vadd.f32 %v2277, %v2453
      %v2462 = vadd.f32 %v2278, %v2454
      %v2463 = vpack.c.bf16 %v2456, %v2455
      %v2464 = vpack.c.bf16 %v2458, %v2457
      %v2465 = vpack.c.bf16 %v2460, %v2459
      %v2466 = vpack.c.bf16 %v2462, %v2461
      %v2471 = vunpack.c.l.b16 %v2463
      %v2472 = vunpack.c.h.b16 %v2463
      %v2473 = vunpack.c.l.b16 %v2464
      %v2474 = vunpack.c.h.b16 %v2464
      %v2475 = vunpack.c.l.b16 %v2465
      %v2476 = vunpack.c.h.b16 %v2465
      %v2477 = vunpack.c.l.b16 %v2466
      %v2478 = vunpack.c.h.b16 %v2466
      %v2479 = vpack.c.b16 %v2471, %v2471
      %v2480 = vpack.c.b16 %v2472, %v2472
      %v2481 = vpack.c.b16 %v2473, %v2473
      %v2482 = vpack.c.b16 %v2474, %v2474
      %v2483 = vpack.c.b16 %v2475, %v2475
      %v2484 = vpack.c.b16 %v2476, %v2476
      %v2485 = vpack.c.b16 %v2477, %v2477
      %v2486 = vpack.c.b16 %v2478, %v2478
      %2495 = vst [vmem:[%s285] sm:$0xf] %v2479
      %2496 = vst [vmem:[%s285 + $0x4] sm:$0xf] %v2480
      %2497 = vst [vmem:[%s285 + $0x8] sm:$0xf] %v2481
      %2498 = vst [vmem:[%s285 + $0xc] sm:$0xf] %v2482
      %2499 = vst [vmem:[%s285 + $0x10] sm:$0xf] %v2483
      %2500 = vst [vmem:[%s285 + $0x14] sm:$0xf] %v2484
      %2501 = vst [vmem:[%s285 + $0x18] sm:$0xf] %v2485
      %2502 = vst [vmem:[%s285 + $0x1c] sm:$0xf] %v2486
      %p2503 = scmp.lt.s32.totalorder %s17, 1
      %s2504 = scalar_select %p2503, %s17, 1
      %s2505 = smul.addr %s2504, 8
      %s2506 = smul.addr %s2505, 4
      %s2507 = scalar_lea.vmem %s6, %s2506
      // Predicated region
      $region45: #{basic_block_forward.3} parent=43 // pred_check
        %p2508 = pneg %p175
      $region46: #{basic_block_forward.3} parent=43 // pred_check_branch
        %2510 = sbr.rel (%p2508) target = $region48
      $region47: #{basic_block_forward.3} parent=43 // pred_region
        _
      $region48: #{basic_block_forward.3} parent=43 // pred_fallthru
        _
    $region44: #{basic_block_forward.3} parent=5 // pred_fallthru
      _
    %p2511 = scmp.le.s32.totalorder 2, %s12
    // Predicated region
    $region49: #{basic_block_forward.3} parent=5 // pred_check
      %p2512 = pneg %p2511
    $region50: #{basic_block_forward.3} parent=5 // pred_check_branch
      %2514 = sbr.rel (%p2512) target = $region52
    $region51: #{basic_block_forward.3} parent=5 // pred_region
      %s2515 = ssub.s32 %s12, 2
      // Predicated region
      $region53: #{basic_block_forward.3} parent=51 // pred_check
        %p2516 = pneg %p181
      $region54: #{basic_block_forward.3} parent=51 // pred_check_branch
        %2518 = sbr.rel (%p2516) target = $region56
      $region55: #{basic_block_forward.3} parent=51 // pred_region
        %p2519 = scmp.lt.s32.totalorder %s18, 1
        %s2520 = scalar_select %p2519, %s18, 1
        %s2521 = smul.addr %s2520, 8
        %s2522 = smul.addr %s2521, 4
        %s2523 = scalar_lea.vmem %s6, %s2522
      $region56: #{basic_block_forward.3} parent=51 // pred_fallthru
        _
    $region52: #{basic_block_forward.3} parent=5 // pred_fallthru
      _
  $region6: #{basic_block_forward.3} parent=0 // loop_footer
    %s16 = sadd.s32 1, %s12
  $region7: #{basic_block_forward.3} parent=0 // loop_footer_branch
    %11 = sbr.rel target = $region3
  $region8: #{basic_block_forward.3} parent=0 // loop_exit
    _

</llo_original>
